<compile_context>
chip_gen: v5e
topology: v5e:2x2
jax: 0.10.0
libtpu: 0.0.40
codegen_flags: <defaults>
</compile_context>

<pallas_src>
import functools
import numpy as np

import jax
import jax.numpy as jnp
from jax.experimental import pallas as pl
from jax.experimental.pallas import tpu as pltpu


_ON_TPU = jax.default_backend() == "tpu"
# bf16 operands feed the MXU on TPU; CPU / interpret backends do not support BF16xBF16=F32 dots.
_MM_DTYPE = jnp.bfloat16 if _ON_TPU else jnp.float32
_MM_SIZE = 2 if _ON_TPU else 4


def _round_up(v, m):
    return (v + m - 1) // m * m


def _pick_batch_tile(b):
    """Fill more MXU rows per step, but keep >=2 batch tiles (v7x: 2 TensorCores on the
    'parallel' grid axis) whenever the batch allows it."""
    if b <= 8:
        return 8
    bt = 8
    while bt * 2 <= 128 and _round_up(b, bt * 2) // (bt * 2) >= 2:
        bt *= 2
    return bt


def _sigmoid(x):
    # tanh form: a single EUP op per gate and strictly within [0, 1].
    return 0.5 * jnp.tanh(0.5 * x) + 0.5


def _lstm_recurrence_kernel(maxlen_ref, lens_ref, g_ref, whh_ref,
                            out_ref, h_out_ref, c_out_ref, *, tc, hp, mm_dtype):
    """Grid = (batch_tiles ["parallel"], time_chunks ["arbitrary"]).

      maxlen_ref : (n_tiles,)     int32 SMEM  max valid length per batch tile (scalar prefetch)
      lens_ref   : (BT, 1)        int32       valid length per sequence
      g_ref      : (BT, tc, 4*hp) mm_dtype    precomputed x_t @ W_ih^T + bias (gate-major)
      whh_ref    : (hp, 4*hp)     mm_dtype    recurrent weights (gate-major, hp-padded)
      out_ref    : (BT, tc, hp)   f32         batch-first hidden states (0 on padded steps)
      h_out_ref, c_out_ref : (BT, hp) f32     carried state; resident across the time axis
    """
    btile = pl.program_id(0)
    chunk = pl.program_id(1)
    t0 = chunk * tc

    # (re)initialize the carried state at the start of each batch tile's time loop
    @pl.when(chunk == 0)
    def _():
        h_out_ref[...] = jnp.zeros_like(h_out_ref)
        c_out_ref[...] = jnp.zeros_like(c_out_ref)

    tile_done = t0 >= maxlen_ref[btile]

    @pl.when(tile_done)
    def _():
        # every sequence in this tile already ended: pad_packed semantics -> exact zeros,
        # and all recurrence compute (the serial critical path) is skipped.
        out_ref[...] = jnp.zeros_like(out_ref)

    @pl.when(jnp.logical_not(tile_done))
    def _():
        lens = lens_ref[...]                      # (BT, 1) int32
        h = h_out_ref[...]                        # (BT, hp) f32
        c = c_out_ref[...]
        # static unroll: every slice / store below uses static indices
        for tt in range(tc):
            # recurrent projection on the MXU (mm_dtype operands, f32 accumulation)
            gates = g_ref[:, tt, :].astype(jnp.float32) + jnp.dot(
                h.astype(mm_dtype), whh_ref[...],
                preferred_element_type=jnp.float32)          # (BT, 4*hp)
            # lane-aligned gate slabs (hp is a multiple of 128); order i, f, g, o
            i_g = _sigmoid(gates[:, 0 * hp:1 * hp])
            f_g = _sigmoid(gates[:, 1 * hp:2 * hp])
            g_g = jnp.tanh(gates[:, 2 * hp:3 * hp])
            o_g = _sigmoid(gates[:, 3 * hp:4 * hp])

            c_new = f_g * c + i_g * g_g
            h_new = o_g * jnp.tanh(c_new)

            mask = lens > (t0 + tt)               # (BT, 1): valid timestep for this row
            h = jnp.where(mask, h_new, h)
            c = jnp.where(mask, c_new, c)
            out_ref[:, tt, :] = jnp.where(mask, h_new, 0.0)   # batch-first, lane-dense
        h_out_ref[...] = h
        c_out_ref[...] = c


def _gate_major(w, hp):
    """PyTorch (4H, K) with rows [i; f; g; o] -> (K, 4*hp); each gate zero-padded to hp lanes."""
    four_h, k = w.shape
    h = four_h // 4
    w4 = jnp.transpose(w.reshape(4, h, k), (2, 0, 1))          # (K, 4, H)
    w4 = jnp.pad(w4, ((0, 0), (0, 0), (0, hp - h)))
    return w4.reshape(k, 4 * hp)


def dynamic_lstm(x, x_len, w_ih, w_hh, b_ih, b_hh,
                 only_use_last_hidden_state=False, time_chunk=32):
    """x: (B, T, I) float32 batch_first; x_len: host int array (B,) of valid lengths."""
    B, T, I = x.shape
    H = w_hh.shape[1]

    lens_np = np.asarray(x_len, dtype=np.int32)
    t_eff = int(lens_np.max())                   # pad_packed_sequence pads to max(x_len)

    BT = _pick_batch_tile(B)
    Bp = _round_up(B, BT)
    n_btiles = Bp // BT
    Hp = _round_up(H, 128)                       # lane-aligned gate slabs

    def vmem_need(tc_):
        whh = Hp * 4 * Hp * _MM_SIZE * (1 if _ON_TPU else 2)   # single-buffered on TPU
        g = 2 * BT * tc_ * 4 * Hp * _MM_SIZE                   # double-buffered gates stream
        o = 2 * BT * tc_ * Hp * 4                              # double-buffered output block
        hc = 2 * 2 * BT * Hp * 4                               # resident h, c carries
        ln = 2 * BT * 128 * 4                                  # lens block (lane-padded)
        return whh + g + o + hc + ln

    # time chunk: amortize per-grid-step overhead, clamp by seq length and VMEM budget
    tc = max(8, min(_round_up(time_chunk, 8), _round_up(t_eff, 8)))
    while tc > 8 and vmem_need(tc) > 40 * (1 << 20):
        tc = max(8, (tc // 2) // 8 * 8)
    t_pad = _round_up(t_eff, tc)
    n_chunks = t_pad // tc

    # ---- hoisted input projection: one big batch-first GEMM, no transposes anywhere ----
    w_ih = jnp.asarray(w_ih, jnp.float32)
    w_hh = jnp.asarray(w_hh, jnp.float32)
    wih_p = _gate_major(w_ih, Hp).astype(_MM_DTYPE)                               # (I, 4Hp)
    whh_p = jnp.pad(_gate_major(w_hh, Hp),
                    ((0, Hp - H), (0, 0))).astype(_MM_DTYPE)                      # (Hp, 4Hp)
    bias_p = jnp.pad((jnp.asarray(b_ih, jnp.float32)
                      + jnp.asarray(b_hh, jnp.float32)).reshape(4, H),
                     ((0, 0), (0, Hp - H))).reshape(4 * Hp)                        # (4Hp,) f32

    x_p = jnp.pad(jnp.asarray(x, jnp.float32)[:, :t_eff, :].astype(_MM_DTYPE),
                  ((0, Bp - B), (0, t_pad - t_eff), (0, 0)))                       # (Bp,Tp,I)
    gates_pre = (jnp.einsum('bti,ig->btg', x_p, wih_p,
                            preferred_element_type=jnp.float32)
                 + bias_p).astype(_MM_DTYPE)                                       # (Bp,Tp,4Hp)

    lens_pad = np.zeros((Bp,), np.int32)
    lens_pad[:B] = lens_np
    lens = jnp.asarray(lens_pad).reshape(Bp, 1)
    # per-tile max length (scalar prefetch, SMEM) -> skip chunks where the whole tile is done
    tile_max = jnp.asarray(lens_pad.reshape(n_btiles, BT).max(axis=1))

    kernel = functools.partial(_lstm_recurrence_kernel, tc=tc, hp=Hp, mm_dtype=_MM_DTYPE)

    # constant-index recurrent weights: single-buffered on TPU (no doubled VMEM)
    whh_spec_kw = {"pipeline_mode": pl.Buffered(1)} if _ON_TPU else {}

    grid_spec = pltpu.PrefetchScalarGridSpec(
        num_scalar_prefetch=1,
        grid=(n_btiles, n_chunks),
        in_specs=[
            pl.BlockSpec((BT, 1), lambda b, c, ml: (b, 0)),
            pl.BlockSpec((BT, tc, 4 * Hp), lambda b, c, ml: (b, c, 0)),
            pl.BlockSpec((Hp, 4 * Hp), lambda b, c, ml: (0, 0), **whh_spec_kw),
        ],
        out_specs=[
            # batch-first output written directly (removes the post-kernel transpose pass)
            pl.BlockSpec((BT, tc, Hp), lambda b, c, ml: (b, c, 0)),
            pl.BlockSpec((BT, Hp), lambda b, c, ml: (b, 0)),   # h carry, resident over time
            pl.BlockSpec((BT, Hp), lambda b, c, ml: (b, 0)),   # c carry, resident over time
        ],
    )

    vmem_limit = int(min(96 * (1 << 20), max(32 * (1 << 20), 1.5 * vmem_need(tc))))

    out_bf, h_last, c_last = pl.pallas_call(
        kernel,
        out_shape=(
            jax.ShapeDtypeStruct((Bp, t_pad, Hp), jnp.float32),
            jax.ShapeDtypeStruct((Bp, Hp), jnp.float32),
            jax.ShapeDtypeStruct((Bp, Hp), jnp.float32),
        ),
        grid_spec=grid_spec,
        compiler_params=pltpu.CompilerParams(
            # batch tiles are independent (shardable across v7x's 2 TensorCores);
            # the time axis is the serial recurrence.
            dimension_semantics=("parallel", "arbitrary"),
            vmem_limit_bytes=vmem_limit),
    )(tile_max, lens, gates_pre, whh_p)

    ht = h_last[None, :B, :H]               # (num_layers * num_directions = 1, B, H)
    ct = c_last[None, :B, :H]
    if only_use_last_hidden_state:
        return ht
    out = out_bf[:B, :t_eff, :H]            # already batch_first (B, max(x_len), H)
    return out, (ht, ct)


def _reference_lstm(x, x_len, w_ih, w_hh, b_ih, b_hh):
    """Pure-JAX f32 reference (same masked-LSTM semantics as pack/unpack)."""
    B, T, I = x.shape
    H = w_hh.shape[1]
    lens_np = np.asarray(x_len, dtype=np.int32)
    t_eff = int(lens_np.max())
    lens = jnp.asarray(lens_np)
    h = jnp.zeros((B, H), jnp.float32)
    c = jnp.zeros((B, H), jnp.float32)
    outs = []
    for t in range(t_eff):
        gates = x[:, t] @ w_ih.T + h @ w_hh.T + b_ih + b_hh
        i_g = jax.nn.sigmoid(gates[:, :H])
        f_g = jax.nn.sigmoid(gates[:, H:2 * H])
        g_g = jnp.tanh(gates[:, 2 * H:3 * H])
        o_g = jax.nn.sigmoid(gates[:, 3 * H:])
        c_new = f_g * c + i_g * g_g
        h_new = o_g * jnp.tanh(c_new)
        m = (lens > t)[:, None]
        c = jnp.where(m, c_new, c)
        h = jnp.where(m, h_new, h)
        outs.append(jnp.where(m, h_new, 0.0))
    return jnp.stack(outs, axis=1), h[None], c[None]


if __name__ == "__main__":
    # small shapes consistent with the module: batch=4, seq=8, input_size=16, hidden=32
    B, T, I, H = 4, 8, 16, 32

    key = jax.random.PRNGKey(0)
    k_x, k_wi, k_wh, k_bi, k_bh = jax.random.split(key, 5)

    x = jax.random.normal(k_x, (B, T, I), dtype=jnp.float32)
    x_len = np.array([8, 3, 5, 1], dtype=np.int32)   # variable lengths

    # PyTorch-style uniform(-1/sqrt(H), 1/sqrt(H)) init
    bound = 1.0 / np.sqrt(H)
    w_ih = jax.random.uniform(k_wi, (4 * H, I), jnp.float32, -bound, bound)
    w_hh = jax.random.uniform(k_wh, (4 * H, H), jnp.float32, -bound, bound)
    b_ih = jax.random.uniform(k_bi, (4 * H,), jnp.float32, -bound, bound)
    b_hh = jax.random.uniform(k_bh, (4 * H,), jnp.float32, -bound, bound)

    out, (ht, ct) = dynamic_lstm(x, x_len, w_ih, w_hh, b_ih, b_hh)
    jax.block_until_ready((out, ht, ct))

    out_r, ht_r, ct_r = _reference_lstm(x, x_len, w_ih, w_hh, b_ih, b_hh)

    # bf16 matmul operands / bf16 gates storage on TPU -> compare against the pure-f32
    # reference with a bf16-level tolerance (logic errors would be O(0.1-1)).
    np.testing.assert_allclose(np.asarray(out), np.asarray(out_r), atol=2e-2, rtol=2e-2)
    np.testing.assert_allclose(np.asarray(ht), np.asarray(ht_r), atol=2e-2, rtol=2e-2)
    np.testing.assert_allclose(np.asarray(ct), np.asarray(ct_r), atol=2e-2, rtol=2e-2)

    # structural check: padded timesteps must be exactly zero (pack/pad semantics)
    out_np = np.asarray(out)
    for b in range(B):
        assert np.all(out_np[b, int(x_len[b]):] == 0.0), "padded timesteps must be exactly 0"

    print("KERNEL_OK")
</pallas_src>

<mosaic_0001>
module attributes {stable_mosaic.version = 11 : i64} {
  func.func @_lstm_recurrence_kernel(%arg0: i32, %arg1: i32, %arg2: memref<1xi32, #tpu.memory_space<smem>>, %arg3: memref<8x1xi32, #tpu.memory_space<vmem>>, %arg4: memref<8x8x512xf32, #tpu.memory_space<vmem>>, %arg5: memref<128x512xf32, #tpu.memory_space<vmem>>, %arg6: memref<8x8x128xf32, #tpu.memory_space<vmem>>, %arg7: memref<8x128xf32, #tpu.memory_space<vmem>>, %arg8: memref<8x128xf32, #tpu.memory_space<vmem>>) attributes {dimension_semantics = [#tpu.dimension_semantics<parallel>, #tpu.dimension_semantics<arbitrary>], iteration_bounds = array<i64: 1, 1>, scalar_prefetch = 1 : i64, scratch_operands = 0 : i64, tpu.core_type = #tpu.core_type<tc>, window_params = [{transform_indices = @transform_0, window_bounds = array<i64: 8, 1>}, {transform_indices = @transform_1, window_bounds = array<i64: 8, 8, 512>}, {pipeline_mode = #tpu.pipeline_mode<synchronous>, transform_indices = @transform_2, window_bounds = array<i64: 128, 512>}, {transform_indices = @transform_3, window_bounds = array<i64: 8, 8, 128>}, {transform_indices = @transform_4, window_bounds = array<i64: 8, 128>}, {transform_indices = @transform_5, window_bounds = array<i64: 8, 128>}]} {
    %c8_i32 = arith.constant 8 : i32
    %0 = arith.muli %arg1, %c8_i32 : i32
    %c0_i32 = arith.constant 0 : i32
    %1 = arith.cmpi eq, %arg1, %c0_i32 : i32
    %2 = arith.extui %1 : i1 to i32
    %c0_i32_0 = arith.constant 0 : i32
    %3 = arith.cmpi ne, %2, %c0_i32_0 : i32
    scf.if %3 {
      %cst = arith.constant 0.000000e+00 : f32
      %12 = vector.broadcast %cst : f32 to vector<8x128xf32>
      %c0 = arith.constant 0 : index
      %c0_3 = arith.constant 0 : index
      %13 = vector.load %arg7[%c0, %c0_3] : memref<8x128xf32, #tpu.memory_space<vmem>>, vector<8x128xf32>
      tpu.vector_store %arg7[%c0, %c0_3], %12 {strides = array<i32>} : memref<8x128xf32, #tpu.memory_space<vmem>>, vector<8x128xf32>,
      %cst_4 = arith.constant 0.000000e+00 : f32
      %14 = vector.broadcast %cst_4 : f32 to vector<8x128xf32>
      %c0_5 = arith.constant 0 : index
      %c0_6 = arith.constant 0 : index
      %15 = vector.load %arg8[%c0_5, %c0_6] : memref<8x128xf32, #tpu.memory_space<vmem>>, vector<8x128xf32>
      tpu.vector_store %arg8[%c0_5, %c0_6], %14 {strides = array<i32>} : memref<8x128xf32, #tpu.memory_space<vmem>>, vector<8x128xf32>,
    } else {
    }
    %4 = arith.index_cast %arg0 : i32 to index
    %5 = memref.load %arg2[%4] : memref<1xi32, #tpu.memory_space<smem>>
    %6 = arith.cmpi sge, %0, %5 : i32
    %7 = arith.extui %6 : i1 to i32
    %c0_i32_1 = arith.constant 0 : i32
    %8 = arith.cmpi ne, %7, %c0_i32_1 : i32
    scf.if %8 {
      %cst = arith.constant 0.000000e+00 : f32
      %12 = vector.broadcast %cst : f32 to vector<8x8x128xf32>
      %c0 = arith.constant 0 : index
      %c0_3 = arith.constant 0 : index
      %c0_4 = arith.constant 0 : index
      %13 = vector.load %arg6[%c0, %c0_3, %c0_4] : memref<8x8x128xf32, #tpu.memory_space<vmem>>, vector<8x8x128xf32>
      tpu.vector_store %arg6[%c0, %c0_3, %c0_4], %12 {strides = array<i32>} : memref<8x8x128xf32, #tpu.memory_space<vmem>>, vector<8x8x128xf32>,
    } else {
    }
    %true = arith.constant true
    %9 = arith.xori %6, %true : i1
    %10 = arith.extui %9 : i1 to i32
    %c0_i32_2 = arith.constant 0 : i32
    %11 = arith.cmpi ne, %10, %c0_i32_2 : i32
    scf.if %11 {
      %c0 = arith.constant 0 : index
      %c0_3 = arith.constant 0 : index
      %12 = vector.load %arg3[%c0, %c0_3] : memref<8x1xi32, #tpu.memory_space<vmem>>, vector<8x1xi32>
      %c0_4 = arith.constant 0 : index
      %c0_5 = arith.constant 0 : index
      %13 = vector.load %arg7[%c0_4, %c0_5] : memref<8x128xf32, #tpu.memory_space<vmem>>, vector<8x128xf32>
      %c0_6 = arith.constant 0 : index
      %c0_7 = arith.constant 0 : index
      %14 = vector.load %arg8[%c0_6, %c0_7] : memref<8x128xf32, #tpu.memory_space<vmem>>, vector<8x128xf32>
      %c0_8 = arith.constant 0 : index
      %c0_9 = arith.constant 0 : index
      %c0_10 = arith.constant 0 : index
      %15 = vector.load %arg4[%c0_8, %c0_9, %c0_10] : memref<8x8x512xf32, #tpu.memory_space<vmem>>, vector<8x1x512xf32>
      %16 = vector.shape_cast %15 : vector<8x1x512xf32> to vector<8x512xf32>
      %c0_11 = arith.constant 0 : index
      %c0_12 = arith.constant 0 : index
      %17 = vector.load %arg5[%c0_11, %c0_12] : memref<128x512xf32, #tpu.memory_space<vmem>>, vector<128x512xf32>
      %cst = arith.constant dense<0.000000e+00> : vector<8x512xf32>
      %18 = tpu.matmul %13, %17, %cst {dimension_numbers = #tpu.dot_dimension_numbers<[1], [0], [0], [1], [0, 0, 1, 1], [], []>} : vector<8x128xf32>, vector<128x512xf32>, vector<8x512xf32> -> vector<8x512xf32>
      %19 = arith.addf %16, %18 : vector<8x512xf32>
      %20 = vector.extract_strided_slice %19 {offsets = [0, 0], sizes = [8, 128], strides = [1, 1]} : vector<8x512xf32> to vector<8x128xf32>
      %cst_13 = arith.constant 5.000000e-01 : f32
      %21 = vector.broadcast %cst_13 : f32 to vector<8x128xf32>
      %22 = arith.mulf %21, %20 : vector<8x128xf32>
      %23 = math.tanh %22 : vector<8x128xf32>
      %cst_14 = arith.constant 5.000000e-01 : f32
      %24 = vector.broadcast %cst_14 : f32 to vector<8x128xf32>
      %25 = arith.mulf %24, %23 : vector<8x128xf32>
      %cst_15 = arith.constant 5.000000e-01 : f32
      %26 = vector.broadcast %cst_15 : f32 to vector<8x128xf32>
      %27 = arith.addf %25, %26 : vector<8x128xf32>
      %28 = vector.extract_strided_slice %19 {offsets = [0, 128], sizes = [8, 128], strides = [1, 1]} : vector<8x512xf32> to vector<8x128xf32>
      %cst_16 = arith.constant 5.000000e-01 : f32
      %29 = vector.broadcast %cst_16 : f32 to vector<8x128xf32>
      %30 = arith.mulf %29, %28 : vector<8x128xf32>
      %31 = math.tanh %30 : vector<8x128xf32>
      %cst_17 = arith.constant 5.000000e-01 : f32
      %32 = vector.broadcast %cst_17 : f32 to vector<8x128xf32>
      %33 = arith.mulf %32, %31 : vector<8x128xf32>
      %cst_18 = arith.constant 5.000000e-01 : f32
      %34 = vector.broadcast %cst_18 : f32 to vector<8x128xf32>
      %35 = arith.addf %33, %34 : vector<8x128xf32>
      %36 = vector.extract_strided_slice %19 {offsets = [0, 256], sizes = [8, 128], strides = [1, 1]} : vector<8x512xf32> to vector<8x128xf32>
      %37 = math.tanh %36 : vector<8x128xf32>
      %38 = vector.extract_strided_slice %19 {offsets = [0, 384], sizes = [8, 128], strides = [1, 1]} : vector<8x512xf32> to vector<8x128xf32>
      %cst_19 = arith.constant 5.000000e-01 : f32
      %39 = vector.broadcast %cst_19 : f32 to vector<8x128xf32>
      %40 = arith.mulf %39, %38 : vector<8x128xf32>
      %41 = math.tanh %40 : vector<8x128xf32>
      %cst_20 = arith.constant 5.000000e-01 : f32
      %42 = vector.broadcast %cst_20 : f32 to vector<8x128xf32>
      %43 = arith.mulf %42, %41 : vector<8x128xf32>
      %cst_21 = arith.constant 5.000000e-01 : f32
      %44 = vector.broadcast %cst_21 : f32 to vector<8x128xf32>
      %45 = arith.addf %43, %44 : vector<8x128xf32>
      %46 = arith.mulf %35, %14 : vector<8x128xf32>
      %47 = arith.mulf %27, %37 : vector<8x128xf32>
      %48 = arith.addf %46, %47 : vector<8x128xf32>
      %49 = math.tanh %48 : vector<8x128xf32>
      %50 = arith.mulf %45, %49 : vector<8x128xf32>
      %c0_i32_22 = arith.constant 0 : i32
      %51 = arith.addi %0, %c0_i32_22 : i32
      %52 = vector.broadcast %51 : i32 to vector<8x1xi32>
      %53 = arith.cmpi sgt, %12, %52 : vector<8x1xi32>
      %54 = vector.shape_cast %53 : vector<8x1xi1> to vector<8x1xi1>
      %55 = vector.broadcast %54 : vector<8x1xi1> to vector<8x128xi1>
      %56 = arith.select %55, %50, %13 : vector<8x128xi1>, vector<8x128xf32>
      %57 = vector.shape_cast %53 : vector<8x1xi1> to vector<8x1xi1>
      %58 = vector.broadcast %57 : vector<8x1xi1> to vector<8x128xi1>
      %59 = arith.select %58, %48, %14 : vector<8x128xi1>, vector<8x128xf32>
      %cst_23 = arith.constant 0.000000e+00 : f32
      %60 = vector.shape_cast %53 : vector<8x1xi1> to vector<8x1xi1>
      %61 = vector.broadcast %60 : vector<8x1xi1> to vector<8x128xi1>
      %62 = vector.broadcast %cst_23 : f32 to vector<8x128xf32>
      %63 = arith.select %61, %50, %62 : vector<8x128xi1>, vector<8x128xf32>
      %c0_24 = arith.constant 0 : index
      %c0_25 = arith.constant 0 : index
      %c0_26 = arith.constant 0 : index
      %64 = vector.load %arg6[%c0_24, %c0_25, %c0_26] : memref<8x8x128xf32, #tpu.memory_space<vmem>>, vector<8x1x128xf32>
      %65 = vector.shape_cast %64 : vector<8x1x128xf32> to vector<8x128xf32>
      %66 = vector.shape_cast %63 : vector<8x128xf32> to vector<8x1x128xf32>
      tpu.vector_store %arg6[%c0_24, %c0_25, %c0_26], %66 {strides = array<i32>} : memref<8x8x128xf32, #tpu.memory_space<vmem>>, vector<8x1x128xf32>,
      %c0_27 = arith.constant 0 : index
      %c1 = arith.constant 1 : index
      %c0_28 = arith.constant 0 : index
      %67 = vector.load %arg4[%c0_27, %c1, %c0_28] : memref<8x8x512xf32, #tpu.memory_space<vmem>>, vector<8x1x512xf32>
      %68 = vector.shape_cast %67 : vector<8x1x512xf32> to vector<8x512xf32>
      %c0_29 = arith.constant 0 : index
      %c0_30 = arith.constant 0 : index
      %69 = vector.load %arg5[%c0_29, %c0_30] : memref<128x512xf32, #tpu.memory_space<vmem>>, vector<128x512xf32>
      %cst_31 = arith.constant dense<0.000000e+00> : vector<8x512xf32>
      %70 = tpu.matmul %56, %69, %cst_31 {dimension_numbers = #tpu.dot_dimension_numbers<[1], [0], [0], [1], [0, 0, 1, 1], [], []>} : vector<8x128xf32>, vector<128x512xf32>, vector<8x512xf32> -> vector<8x512xf32>
      %71 = arith.addf %68, %70 : vector<8x512xf32>
      %72 = vector.extract_strided_slice %71 {offsets = [0, 0], sizes = [8, 128], strides = [1, 1]} : vector<8x512xf32> to vector<8x128xf32>
      %cst_32 = arith.constant 5.000000e-01 : f32
      %73 = vector.broadcast %cst_32 : f32 to vector<8x128xf32>
      %74 = arith.mulf %73, %72 : vector<8x128xf32>
      %75 = math.tanh %74 : vector<8x128xf32>
      %cst_33 = arith.constant 5.000000e-01 : f32
      %76 = vector.broadcast %cst_33 : f32 to vector<8x128xf32>
      %77 = arith.mulf %76, %75 : vector<8x128xf32>
      %cst_34 = arith.constant 5.000000e-01 : f32
      %78 = vector.broadcast %cst_34 : f32 to vector<8x128xf32>
      %79 = arith.addf %77, %78 : vector<8x128xf32>
      %80 = vector.extract_strided_slice %71 {offsets = [0, 128], sizes = [8, 128], strides = [1, 1]} : vector<8x512xf32> to vector<8x128xf32>
      %cst_35 = arith.constant 5.000000e-01 : f32
      %81 = vector.broadcast %cst_35 : f32 to vector<8x128xf32>
      %82 = arith.mulf %81, %80 : vector<8x128xf32>
      %83 = math.tanh %82 : vector<8x128xf32>
      %cst_36 = arith.constant 5.000000e-01 : f32
      %84 = vector.broadcast %cst_36 : f32 to vector<8x128xf32>
      %85 = arith.mulf %84, %83 : vector<8x128xf32>
      %cst_37 = arith.constant 5.000000e-01 : f32
      %86 = vector.broadcast %cst_37 : f32 to vector<8x128xf32>
      %87 = arith.addf %85, %86 : vector<8x128xf32>
      %88 = vector.extract_strided_slice %71 {offsets = [0, 256], sizes = [8, 128], strides = [1, 1]} : vector<8x512xf32> to vector<8x128xf32>
      %89 = math.tanh %88 : vector<8x128xf32>
      %90 = vector.extract_strided_slice %71 {offsets = [0, 384], sizes = [8, 128], strides = [1, 1]} : vector<8x512xf32> to vector<8x128xf32>
      %cst_38 = arith.constant 5.000000e-01 : f32
      %91 = vector.broadcast %cst_38 : f32 to vector<8x128xf32>
      %92 = arith.mulf %91, %90 : vector<8x128xf32>
      %93 = math.tanh %92 : vector<8x128xf32>
      %cst_39 = arith.constant 5.000000e-01 : f32
      %94 = vector.broadcast %cst_39 : f32 to vector<8x128xf32>
      %95 = arith.mulf %94, %93 : vector<8x128xf32>
      %cst_40 = arith.constant 5.000000e-01 : f32
      %96 = vector.broadcast %cst_40 : f32 to vector<8x128xf32>
      %97 = arith.addf %95, %96 : vector<8x128xf32>
      %98 = arith.mulf %87, %59 : vector<8x128xf32>
      %99 = arith.mulf %79, %89 : vector<8x128xf32>
      %100 = arith.addf %98, %99 : vector<8x128xf32>
      %101 = math.tanh %100 : vector<8x128xf32>
      %102 = arith.mulf %97, %101 : vector<8x128xf32>
      %c1_i32 = arith.constant 1 : i32
      %103 = arith.addi %0, %c1_i32 : i32
      %104 = vector.broadcast %103 : i32 to vector<8x1xi32>
      %105 = arith.cmpi sgt, %12, %104 : vector<8x1xi32>
      %106 = vector.shape_cast %105 : vector<8x1xi1> to vector<8x1xi1>
      %107 = vector.broadcast %106 : vector<8x1xi1> to vector<8x128xi1>
      %108 = arith.select %107, %102, %56 : vector<8x128xi1>, vector<8x128xf32>
      %109 = vector.shape_cast %105 : vector<8x1xi1> to vector<8x1xi1>
      %110 = vector.broadcast %109 : vector<8x1xi1> to vector<8x128xi1>
      %111 = arith.select %110, %100, %59 : vector<8x128xi1>, vector<8x128xf32>
      %cst_41 = arith.constant 0.000000e+00 : f32
      %112 = vector.shape_cast %105 : vector<8x1xi1> to vector<8x1xi1>
      %113 = vector.broadcast %112 : vector<8x1xi1> to vector<8x128xi1>
      %114 = vector.broadcast %cst_41 : f32 to vector<8x128xf32>
      %115 = arith.select %113, %102, %114 : vector<8x128xi1>, vector<8x128xf32>
      %c0_42 = arith.constant 0 : index
      %c1_43 = arith.constant 1 : index
      %c0_44 = arith.constant 0 : index
      %116 = vector.load %arg6[%c0_42, %c1_43, %c0_44] : memref<8x8x128xf32, #tpu.memory_space<vmem>>, vector<8x1x128xf32>
      %117 = vector.shape_cast %116 : vector<8x1x128xf32> to vector<8x128xf32>
      %118 = vector.shape_cast %115 : vector<8x128xf32> to vector<8x1x128xf32>
      tpu.vector_store %arg6[%c0_42, %c1_43, %c0_44], %118 {strides = array<i32>} : memref<8x8x128xf32, #tpu.memory_space<vmem>>, vector<8x1x128xf32>,
      %c0_45 = arith.constant 0 : index
      %c2 = arith.constant 2 : index
      %c0_46 = arith.constant 0 : index
      %119 = vector.load %arg4[%c0_45, %c2, %c0_46] : memref<8x8x512xf32, #tpu.memory_space<vmem>>, vector<8x1x512xf32>
      %120 = vector.shape_cast %119 : vector<8x1x512xf32> to vector<8x512xf32>
      %c0_47 = arith.constant 0 : index
      %c0_48 = arith.constant 0 : index
      %121 = vector.load %arg5[%c0_47, %c0_48] : memref<128x512xf32, #tpu.memory_space<vmem>>, vector<128x512xf32>
      %cst_49 = arith.constant dense<0.000000e+00> : vector<8x512xf32>
      %122 = tpu.matmul %108, %121, %cst_49 {dimension_numbers = #tpu.dot_dimension_numbers<[1], [0], [0], [1], [0, 0, 1, 1], [], []>} : vector<8x128xf32>, vector<128x512xf32>, vector<8x512xf32> -> vector<8x512xf32>
      %123 = arith.addf %120, %122 : vector<8x512xf32>
      %124 = vector.extract_strided_slice %123 {offsets = [0, 0], sizes = [8, 128], strides = [1, 1]} : vector<8x512xf32> to vector<8x128xf32>
      %cst_50 = arith.constant 5.000000e-01 : f32
      %125 = vector.broadcast %cst_50 : f32 to vector<8x128xf32>
      %126 = arith.mulf %125, %124 : vector<8x128xf32>
      %127 = math.tanh %126 : vector<8x128xf32>
      %cst_51 = arith.constant 5.000000e-01 : f32
      %128 = vector.broadcast %cst_51 : f32 to vector<8x128xf32>
      %129 = arith.mulf %128, %127 : vector<8x128xf32>
      %cst_52 = arith.constant 5.000000e-01 : f32
      %130 = vector.broadcast %cst_52 : f32 to vector<8x128xf32>
      %131 = arith.addf %129, %130 : vector<8x128xf32>
      %132 = vector.extract_strided_slice %123 {offsets = [0, 128], sizes = [8, 128], strides = [1, 1]} : vector<8x512xf32> to vector<8x128xf32>
      %cst_53 = arith.constant 5.000000e-01 : f32
      %133 = vector.broadcast %cst_53 : f32 to vector<8x128xf32>
      %134 = arith.mulf %133, %132 : vector<8x128xf32>
      %135 = math.tanh %134 : vector<8x128xf32>
      %cst_54 = arith.constant 5.000000e-01 : f32
      %136 = vector.broadcast %cst_54 : f32 to vector<8x128xf32>
      %137 = arith.mulf %136, %135 : vector<8x128xf32>
      %cst_55 = arith.constant 5.000000e-01 : f32
      %138 = vector.broadcast %cst_55 : f32 to vector<8x128xf32>
      %139 = arith.addf %137, %138 : vector<8x128xf32>
      %140 = vector.extract_strided_slice %123 {offsets = [0, 256], sizes = [8, 128], strides = [1, 1]} : vector<8x512xf32> to vector<8x128xf32>
      %141 = math.tanh %140 : vector<8x128xf32>
      %142 = vector.extract_strided_slice %123 {offsets = [0, 384], sizes = [8, 128], strides = [1, 1]} : vector<8x512xf32> to vector<8x128xf32>
      %cst_56 = arith.constant 5.000000e-01 : f32
      %143 = vector.broadcast %cst_56 : f32 to vector<8x128xf32>
      %144 = arith.mulf %143, %142 : vector<8x128xf32>
      %145 = math.tanh %144 : vector<8x128xf32>
      %cst_57 = arith.constant 5.000000e-01 : f32
      %146 = vector.broadcast %cst_57 : f32 to vector<8x128xf32>
      %147 = arith.mulf %146, %145 : vector<8x128xf32>
      %cst_58 = arith.constant 5.000000e-01 : f32
      %148 = vector.broadcast %cst_58 : f32 to vector<8x128xf32>
      %149 = arith.addf %147, %148 : vector<8x128xf32>
      %150 = arith.mulf %139, %111 : vector<8x128xf32>
      %151 = arith.mulf %131, %141 : vector<8x128xf32>
      %152 = arith.addf %150, %151 : vector<8x128xf32>
      %153 = math.tanh %152 : vector<8x128xf32>
      %154 = arith.mulf %149, %153 : vector<8x128xf32>
      %c2_i32 = arith.constant 2 : i32
      %155 = arith.addi %0, %c2_i32 : i32
      %156 = vector.broadcast %155 : i32 to vector<8x1xi32>
      %157 = arith.cmpi sgt, %12, %156 : vector<8x1xi32>
      %158 = vector.shape_cast %157 : vector<8x1xi1> to vector<8x1xi1>
      %159 = vector.broadcast %158 : vector<8x1xi1> to vector<8x128xi1>
      %160 = arith.select %159, %154, %108 : vector<8x128xi1>, vector<8x128xf32>
      %161 = vector.shape_cast %157 : vector<8x1xi1> to vector<8x1xi1>
      %162 = vector.broadcast %161 : vector<8x1xi1> to vector<8x128xi1>
      %163 = arith.select %162, %152, %111 : vector<8x128xi1>, vector<8x128xf32>
      %cst_59 = arith.constant 0.000000e+00 : f32
      %164 = vector.shape_cast %157 : vector<8x1xi1> to vector<8x1xi1>
      %165 = vector.broadcast %164 : vector<8x1xi1> to vector<8x128xi1>
      %166 = vector.broadcast %cst_59 : f32 to vector<8x128xf32>
      %167 = arith.select %165, %154, %166 : vector<8x128xi1>, vector<8x128xf32>
      %c0_60 = arith.constant 0 : index
      %c2_61 = arith.constant 2 : index
      %c0_62 = arith.constant 0 : index
      %168 = vector.load %arg6[%c0_60, %c2_61, %c0_62] : memref<8x8x128xf32, #tpu.memory_space<vmem>>, vector<8x1x128xf32>
      %169 = vector.shape_cast %168 : vector<8x1x128xf32> to vector<8x128xf32>
      %170 = vector.shape_cast %167 : vector<8x128xf32> to vector<8x1x128xf32>
      tpu.vector_store %arg6[%c0_60, %c2_61, %c0_62], %170 {strides = array<i32>} : memref<8x8x128xf32, #tpu.memory_space<vmem>>, vector<8x1x128xf32>,
      %c0_63 = arith.constant 0 : index
      %c3 = arith.constant 3 : index
      %c0_64 = arith.constant 0 : index
      %171 = vector.load %arg4[%c0_63, %c3, %c0_64] : memref<8x8x512xf32, #tpu.memory_space<vmem>>, vector<8x1x512xf32>
      %172 = vector.shape_cast %171 : vector<8x1x512xf32> to vector<8x512xf32>
      %c0_65 = arith.constant 0 : index
      %c0_66 = arith.constant 0 : index
      %173 = vector.load %arg5[%c0_65, %c0_66] : memref<128x512xf32, #tpu.memory_space<vmem>>, vector<128x512xf32>
      %cst_67 = arith.constant dense<0.000000e+00> : vector<8x512xf32>
      %174 = tpu.matmul %160, %173, %cst_67 {dimension_numbers = #tpu.dot_dimension_numbers<[1], [0], [0], [1], [0, 0, 1, 1], [], []>} : vector<8x128xf32>, vector<128x512xf32>, vector<8x512xf32> -> vector<8x512xf32>
      %175 = arith.addf %172, %174 : vector<8x512xf32>
      %176 = vector.extract_strided_slice %175 {offsets = [0, 0], sizes = [8, 128], strides = [1, 1]} : vector<8x512xf32> to vector<8x128xf32>
      %cst_68 = arith.constant 5.000000e-01 : f32
      %177 = vector.broadcast %cst_68 : f32 to vector<8x128xf32>
      %178 = arith.mulf %177, %176 : vector<8x128xf32>
      %179 = math.tanh %178 : vector<8x128xf32>
      %cst_69 = arith.constant 5.000000e-01 : f32
      %180 = vector.broadcast %cst_69 : f32 to vector<8x128xf32>
      %181 = arith.mulf %180, %179 : vector<8x128xf32>
      %cst_70 = arith.constant 5.000000e-01 : f32
      %182 = vector.broadcast %cst_70 : f32 to vector<8x128xf32>
      %183 = arith.addf %181, %182 : vector<8x128xf32>
      %184 = vector.extract_strided_slice %175 {offsets = [0, 128], sizes = [8, 128], strides = [1, 1]} : vector<8x512xf32> to vector<8x128xf32>
      %cst_71 = arith.constant 5.000000e-01 : f32
      %185 = vector.broadcast %cst_71 : f32 to vector<8x128xf32>
      %186 = arith.mulf %185, %184 : vector<8x128xf32>
      %187 = math.tanh %186 : vector<8x128xf32>
      %cst_72 = arith.constant 5.000000e-01 : f32
      %188 = vector.broadcast %cst_72 : f32 to vector<8x128xf32>
      %189 = arith.mulf %188, %187 : vector<8x128xf32>
      %cst_73 = arith.constant 5.000000e-01 : f32
      %190 = vector.broadcast %cst_73 : f32 to vector<8x128xf32>
      %191 = arith.addf %189, %190 : vector<8x128xf32>
      %192 = vector.extract_strided_slice %175 {offsets = [0, 256], sizes = [8, 128], strides = [1, 1]} : vector<8x512xf32> to vector<8x128xf32>
      %193 = math.tanh %192 : vector<8x128xf32>
      %194 = vector.extract_strided_slice %175 {offsets = [0, 384], sizes = [8, 128], strides = [1, 1]} : vector<8x512xf32> to vector<8x128xf32>
      %cst_74 = arith.constant 5.000000e-01 : f32
      %195 = vector.broadcast %cst_74 : f32 to vector<8x128xf32>
      %196 = arith.mulf %195, %194 : vector<8x128xf32>
      %197 = math.tanh %196 : vector<8x128xf32>
      %cst_75 = arith.constant 5.000000e-01 : f32
      %198 = vector.broadcast %cst_75 : f32 to vector<8x128xf32>
      %199 = arith.mulf %198, %197 : vector<8x128xf32>
      %cst_76 = arith.constant 5.000000e-01 : f32
      %200 = vector.broadcast %cst_76 : f32 to vector<8x128xf32>
      %201 = arith.addf %199, %200 : vector<8x128xf32>
      %202 = arith.mulf %191, %163 : vector<8x128xf32>
      %203 = arith.mulf %183, %193 : vector<8x128xf32>
      %204 = arith.addf %202, %203 : vector<8x128xf32>
      %205 = math.tanh %204 : vector<8x128xf32>
      %206 = arith.mulf %201, %205 : vector<8x128xf32>
      %c3_i32 = arith.constant 3 : i32
      %207 = arith.addi %0, %c3_i32 : i32
      %208 = vector.broadcast %207 : i32 to vector<8x1xi32>
      %209 = arith.cmpi sgt, %12, %208 : vector<8x1xi32>
      %210 = vector.shape_cast %209 : vector<8x1xi1> to vector<8x1xi1>
      %211 = vector.broadcast %210 : vector<8x1xi1> to vector<8x128xi1>
      %212 = arith.select %211, %206, %160 : vector<8x128xi1>, vector<8x128xf32>
      %213 = vector.shape_cast %209 : vector<8x1xi1> to vector<8x1xi1>
      %214 = vector.broadcast %213 : vector<8x1xi1> to vector<8x128xi1>
      %215 = arith.select %214, %204, %163 : vector<8x128xi1>, vector<8x128xf32>
      %cst_77 = arith.constant 0.000000e+00 : f32
      %216 = vector.shape_cast %209 : vector<8x1xi1> to vector<8x1xi1>
      %217 = vector.broadcast %216 : vector<8x1xi1> to vector<8x128xi1>
      %218 = vector.broadcast %cst_77 : f32 to vector<8x128xf32>
      %219 = arith.select %217, %206, %218 : vector<8x128xi1>, vector<8x128xf32>
      %c0_78 = arith.constant 0 : index
      %c3_79 = arith.constant 3 : index
      %c0_80 = arith.constant 0 : index
      %220 = vector.load %arg6[%c0_78, %c3_79, %c0_80] : memref<8x8x128xf32, #tpu.memory_space<vmem>>, vector<8x1x128xf32>
      %221 = vector.shape_cast %220 : vector<8x1x128xf32> to vector<8x128xf32>
      %222 = vector.shape_cast %219 : vector<8x128xf32> to vector<8x1x128xf32>
      tpu.vector_store %arg6[%c0_78, %c3_79, %c0_80], %222 {strides = array<i32>} : memref<8x8x128xf32, #tpu.memory_space<vmem>>, vector<8x1x128xf32>,
      %c0_81 = arith.constant 0 : index
      %c4 = arith.constant 4 : index
      %c0_82 = arith.constant 0 : index
      %223 = vector.load %arg4[%c0_81, %c4, %c0_82] : memref<8x8x512xf32, #tpu.memory_space<vmem>>, vector<8x1x512xf32>
      %224 = vector.shape_cast %223 : vector<8x1x512xf32> to vector<8x512xf32>
      %c0_83 = arith.constant 0 : index
      %c0_84 = arith.constant 0 : index
      %225 = vector.load %arg5[%c0_83, %c0_84] : memref<128x512xf32, #tpu.memory_space<vmem>>, vector<128x512xf32>
      %cst_85 = arith.constant dense<0.000000e+00> : vector<8x512xf32>
      %226 = tpu.matmul %212, %225, %cst_85 {dimension_numbers = #tpu.dot_dimension_numbers<[1], [0], [0], [1], [0, 0, 1, 1], [], []>} : vector<8x128xf32>, vector<128x512xf32>, vector<8x512xf32> -> vector<8x512xf32>
      %227 = arith.addf %224, %226 : vector<8x512xf32>
      %228 = vector.extract_strided_slice %227 {offsets = [0, 0], sizes = [8, 128], strides = [1, 1]} : vector<8x512xf32> to vector<8x128xf32>
      %cst_86 = arith.constant 5.000000e-01 : f32
      %229 = vector.broadcast %cst_86 : f32 to vector<8x128xf32>
      %230 = arith.mulf %229, %228 : vector<8x128xf32>
      %231 = math.tanh %230 : vector<8x128xf32>
      %cst_87 = arith.constant 5.000000e-01 : f32
      %232 = vector.broadcast %cst_87 : f32 to vector<8x128xf32>
      %233 = arith.mulf %232, %231 : vector<8x128xf32>
      %cst_88 = arith.constant 5.000000e-01 : f32
      %234 = vector.broadcast %cst_88 : f32 to vector<8x128xf32>
      %235 = arith.addf %233, %234 : vector<8x128xf32>
      %236 = vector.extract_strided_slice %227 {offsets = [0, 128], sizes = [8, 128], strides = [1, 1]} : vector<8x512xf32> to vector<8x128xf32>
      %cst_89 = arith.constant 5.000000e-01 : f32
      %237 = vector.broadcast %cst_89 : f32 to vector<8x128xf32>
      %238 = arith.mulf %237, %236 : vector<8x128xf32>
      %239 = math.tanh %238 : vector<8x128xf32>
      %cst_90 = arith.constant 5.000000e-01 : f32
      %240 = vector.broadcast %cst_90 : f32 to vector<8x128xf32>
      %241 = arith.mulf %240, %239 : vector<8x128xf32>
      %cst_91 = arith.constant 5.000000e-01 : f32
      %242 = vector.broadcast %cst_91 : f32 to vector<8x128xf32>
      %243 = arith.addf %241, %242 : vector<8x128xf32>
      %244 = vector.extract_strided_slice %227 {offsets = [0, 256], sizes = [8, 128], strides = [1, 1]} : vector<8x512xf32> to vector<8x128xf32>
      %245 = math.tanh %244 : vector<8x128xf32>
      %246 = vector.extract_strided_slice %227 {offsets = [0, 384], sizes = [8, 128], strides = [1, 1]} : vector<8x512xf32> to vector<8x128xf32>
      %cst_92 = arith.constant 5.000000e-01 : f32
      %247 = vector.broadcast %cst_92 : f32 to vector<8x128xf32>
      %248 = arith.mulf %247, %246 : vector<8x128xf32>
      %249 = math.tanh %248 : vector<8x128xf32>
      %cst_93 = arith.constant 5.000000e-01 : f32
      %250 = vector.broadcast %cst_93 : f32 to vector<8x128xf32>
      %251 = arith.mulf %250, %249 : vector<8x128xf32>
      %cst_94 = arith.constant 5.000000e-01 : f32
      %252 = vector.broadcast %cst_94 : f32 to vector<8x128xf32>
      %253 = arith.addf %251, %252 : vector<8x128xf32>
      %254 = arith.mulf %243, %215 : vector<8x128xf32>
      %255 = arith.mulf %235, %245 : vector<8x128xf32>
      %256 = arith.addf %254, %255 : vector<8x128xf32>
      %257 = math.tanh %256 : vector<8x128xf32>
      %258 = arith.mulf %253, %257 : vector<8x128xf32>
      %c4_i32 = arith.constant 4 : i32
      %259 = arith.addi %0, %c4_i32 : i32
      %260 = vector.broadcast %259 : i32 to vector<8x1xi32>
      %261 = arith.cmpi sgt, %12, %260 : vector<8x1xi32>
      %262 = vector.shape_cast %261 : vector<8x1xi1> to vector<8x1xi1>
      %263 = vector.broadcast %262 : vector<8x1xi1> to vector<8x128xi1>
      %264 = arith.select %263, %258, %212 : vector<8x128xi1>, vector<8x128xf32>
      %265 = vector.shape_cast %261 : vector<8x1xi1> to vector<8x1xi1>
      %266 = vector.broadcast %265 : vector<8x1xi1> to vector<8x128xi1>
      %267 = arith.select %266, %256, %215 : vector<8x128xi1>, vector<8x128xf32>
      %cst_95 = arith.constant 0.000000e+00 : f32
      %268 = vector.shape_cast %261 : vector<8x1xi1> to vector<8x1xi1>
      %269 = vector.broadcast %268 : vector<8x1xi1> to vector<8x128xi1>
      %270 = vector.broadcast %cst_95 : f32 to vector<8x128xf32>
      %271 = arith.select %269, %258, %270 : vector<8x128xi1>, vector<8x128xf32>
      %c0_96 = arith.constant 0 : index
      %c4_97 = arith.constant 4 : index
      %c0_98 = arith.constant 0 : index
      %272 = vector.load %arg6[%c0_96, %c4_97, %c0_98] : memref<8x8x128xf32, #tpu.memory_space<vmem>>, vector<8x1x128xf32>
      %273 = vector.shape_cast %272 : vector<8x1x128xf32> to vector<8x128xf32>
      %274 = vector.shape_cast %271 : vector<8x128xf32> to vector<8x1x128xf32>
      tpu.vector_store %arg6[%c0_96, %c4_97, %c0_98], %274 {strides = array<i32>} : memref<8x8x128xf32, #tpu.memory_space<vmem>>, vector<8x1x128xf32>,
      %c0_99 = arith.constant 0 : index
      %c5 = arith.constant 5 : index
      %c0_100 = arith.constant 0 : index
      %275 = vector.load %arg4[%c0_99, %c5, %c0_100] : memref<8x8x512xf32, #tpu.memory_space<vmem>>, vector<8x1x512xf32>
      %276 = vector.shape_cast %275 : vector<8x1x512xf32> to vector<8x512xf32>
      %c0_101 = arith.constant 0 : index
      %c0_102 = arith.constant 0 : index
      %277 = vector.load %arg5[%c0_101, %c0_102] : memref<128x512xf32, #tpu.memory_space<vmem>>, vector<128x512xf32>
      %cst_103 = arith.constant dense<0.000000e+00> : vector<8x512xf32>
      %278 = tpu.matmul %264, %277, %cst_103 {dimension_numbers = #tpu.dot_dimension_numbers<[1], [0], [0], [1], [0, 0, 1, 1], [], []>} : vector<8x128xf32>, vector<128x512xf32>, vector<8x512xf32> -> vector<8x512xf32>
      %279 = arith.addf %276, %278 : vector<8x512xf32>
      %280 = vector.extract_strided_slice %279 {offsets = [0, 0], sizes = [8, 128], strides = [1, 1]} : vector<8x512xf32> to vector<8x128xf32>
      %cst_104 = arith.constant 5.000000e-01 : f32
      %281 = vector.broadcast %cst_104 : f32 to vector<8x128xf32>
      %282 = arith.mulf %281, %280 : vector<8x128xf32>
      %283 = math.tanh %282 : vector<8x128xf32>
      %cst_105 = arith.constant 5.000000e-01 : f32
      %284 = vector.broadcast %cst_105 : f32 to vector<8x128xf32>
      %285 = arith.mulf %284, %283 : vector<8x128xf32>
      %cst_106 = arith.constant 5.000000e-01 : f32
      %286 = vector.broadcast %cst_106 : f32 to vector<8x128xf32>
      %287 = arith.addf %285, %286 : vector<8x128xf32>
      %288 = vector.extract_strided_slice %279 {offsets = [0, 128], sizes = [8, 128], strides = [1, 1]} : vector<8x512xf32> to vector<8x128xf32>
      %cst_107 = arith.constant 5.000000e-01 : f32
      %289 = vector.broadcast %cst_107 : f32 to vector<8x128xf32>
      %290 = arith.mulf %289, %288 : vector<8x128xf32>
      %291 = math.tanh %290 : vector<8x128xf32>
      %cst_108 = arith.constant 5.000000e-01 : f32
      %292 = vector.broadcast %cst_108 : f32 to vector<8x128xf32>
      %293 = arith.mulf %292, %291 : vector<8x128xf32>
      %cst_109 = arith.constant 5.000000e-01 : f32
      %294 = vector.broadcast %cst_109 : f32 to vector<8x128xf32>
      %295 = arith.addf %293, %294 : vector<8x128xf32>
      %296 = vector.extract_strided_slice %279 {offsets = [0, 256], sizes = [8, 128], strides = [1, 1]} : vector<8x512xf32> to vector<8x128xf32>
      %297 = math.tanh %296 : vector<8x128xf32>
      %298 = vector.extract_strided_slice %279 {offsets = [0, 384], sizes = [8, 128], strides = [1, 1]} : vector<8x512xf32> to vector<8x128xf32>
      %cst_110 = arith.constant 5.000000e-01 : f32
      %299 = vector.broadcast %cst_110 : f32 to vector<8x128xf32>
      %300 = arith.mulf %299, %298 : vector<8x128xf32>
      %301 = math.tanh %300 : vector<8x128xf32>
      %cst_111 = arith.constant 5.000000e-01 : f32
      %302 = vector.broadcast %cst_111 : f32 to vector<8x128xf32>
      %303 = arith.mulf %302, %301 : vector<8x128xf32>
      %cst_112 = arith.constant 5.000000e-01 : f32
      %304 = vector.broadcast %cst_112 : f32 to vector<8x128xf32>
      %305 = arith.addf %303, %304 : vector<8x128xf32>
      %306 = arith.mulf %295, %267 : vector<8x128xf32>
      %307 = arith.mulf %287, %297 : vector<8x128xf32>
      %308 = arith.addf %306, %307 : vector<8x128xf32>
      %309 = math.tanh %308 : vector<8x128xf32>
      %310 = arith.mulf %305, %309 : vector<8x128xf32>
      %c5_i32 = arith.constant 5 : i32
      %311 = arith.addi %0, %c5_i32 : i32
      %312 = vector.broadcast %311 : i32 to vector<8x1xi32>
      %313 = arith.cmpi sgt, %12, %312 : vector<8x1xi32>
      %314 = vector.shape_cast %313 : vector<8x1xi1> to vector<8x1xi1>
      %315 = vector.broadcast %314 : vector<8x1xi1> to vector<8x128xi1>
      %316 = arith.select %315, %310, %264 : vector<8x128xi1>, vector<8x128xf32>
      %317 = vector.shape_cast %313 : vector<8x1xi1> to vector<8x1xi1>
      %318 = vector.broadcast %317 : vector<8x1xi1> to vector<8x128xi1>
      %319 = arith.select %318, %308, %267 : vector<8x128xi1>, vector<8x128xf32>
      %cst_113 = arith.constant 0.000000e+00 : f32
      %320 = vector.shape_cast %313 : vector<8x1xi1> to vector<8x1xi1>
      %321 = vector.broadcast %320 : vector<8x1xi1> to vector<8x128xi1>
      %322 = vector.broadcast %cst_113 : f32 to vector<8x128xf32>
      %323 = arith.select %321, %310, %322 : vector<8x128xi1>, vector<8x128xf32>
      %c0_114 = arith.constant 0 : index
      %c5_115 = arith.constant 5 : index
      %c0_116 = arith.constant 0 : index
      %324 = vector.load %arg6[%c0_114, %c5_115, %c0_116] : memref<8x8x128xf32, #tpu.memory_space<vmem>>, vector<8x1x128xf32>
      %325 = vector.shape_cast %324 : vector<8x1x128xf32> to vector<8x128xf32>
      %326 = vector.shape_cast %323 : vector<8x128xf32> to vector<8x1x128xf32>
      tpu.vector_store %arg6[%c0_114, %c5_115, %c0_116], %326 {strides = array<i32>} : memref<8x8x128xf32, #tpu.memory_space<vmem>>, vector<8x1x128xf32>,
      %c0_117 = arith.constant 0 : index
      %c6 = arith.constant 6 : index
      %c0_118 = arith.constant 0 : index
      %327 = vector.load %arg4[%c0_117, %c6, %c0_118] : memref<8x8x512xf32, #tpu.memory_space<vmem>>, vector<8x1x512xf32>
      %328 = vector.shape_cast %327 : vector<8x1x512xf32> to vector<8x512xf32>
      %c0_119 = arith.constant 0 : index
      %c0_120 = arith.constant 0 : index
      %329 = vector.load %arg5[%c0_119, %c0_120] : memref<128x512xf32, #tpu.memory_space<vmem>>, vector<128x512xf32>
      %cst_121 = arith.constant dense<0.000000e+00> : vector<8x512xf32>
      %330 = tpu.matmul %316, %329, %cst_121 {dimension_numbers = #tpu.dot_dimension_numbers<[1], [0], [0], [1], [0, 0, 1, 1], [], []>} : vector<8x128xf32>, vector<128x512xf32>, vector<8x512xf32> -> vector<8x512xf32>
      %331 = arith.addf %328, %330 : vector<8x512xf32>
      %332 = vector.extract_strided_slice %331 {offsets = [0, 0], sizes = [8, 128], strides = [1, 1]} : vector<8x512xf32> to vector<8x128xf32>
      %cst_122 = arith.constant 5.000000e-01 : f32
      %333 = vector.broadcast %cst_122 : f32 to vector<8x128xf32>
      %334 = arith.mulf %333, %332 : vector<8x128xf32>
      %335 = math.tanh %334 : vector<8x128xf32>
      %cst_123 = arith.constant 5.000000e-01 : f32
      %336 = vector.broadcast %cst_123 : f32 to vector<8x128xf32>
      %337 = arith.mulf %336, %335 : vector<8x128xf32>
      %cst_124 = arith.constant 5.000000e-01 : f32
      %338 = vector.broadcast %cst_124 : f32 to vector<8x128xf32>
      %339 = arith.addf %337, %338 : vector<8x128xf32>
      %340 = vector.extract_strided_slice %331 {offsets = [0, 128], sizes = [8, 128], strides = [1, 1]} : vector<8x512xf32> to vector<8x128xf32>
      %cst_125 = arith.constant 5.000000e-01 : f32
      %341 = vector.broadcast %cst_125 : f32 to vector<8x128xf32>
      %342 = arith.mulf %341, %340 : vector<8x128xf32>
      %343 = math.tanh %342 : vector<8x128xf32>
      %cst_126 = arith.constant 5.000000e-01 : f32
      %344 = vector.broadcast %cst_126 : f32 to vector<8x128xf32>
      %345 = arith.mulf %344, %343 : vector<8x128xf32>
      %cst_127 = arith.constant 5.000000e-01 : f32
      %346 = vector.broadcast %cst_127 : f32 to vector<8x128xf32>
      %347 = arith.addf %345, %346 : vector<8x128xf32>
      %348 = vector.extract_strided_slice %331 {offsets = [0, 256], sizes = [8, 128], strides = [1, 1]} : vector<8x512xf32> to vector<8x128xf32>
      %349 = math.tanh %348 : vector<8x128xf32>
      %350 = vector.extract_strided_slice %331 {offsets = [0, 384], sizes = [8, 128], strides = [1, 1]} : vector<8x512xf32> to vector<8x128xf32>
      %cst_128 = arith.constant 5.000000e-01 : f32
      %351 = vector.broadcast %cst_128 : f32 to vector<8x128xf32>
      %352 = arith.mulf %351, %350 : vector<8x128xf32>
      %353 = math.tanh %352 : vector<8x128xf32>
      %cst_129 = arith.constant 5.000000e-01 : f32
      %354 = vector.broadcast %cst_129 : f32 to vector<8x128xf32>
      %355 = arith.mulf %354, %353 : vector<8x128xf32>
      %cst_130 = arith.constant 5.000000e-01 : f32
      %356 = vector.broadcast %cst_130 : f32 to vector<8x128xf32>
      %357 = arith.addf %355, %356 : vector<8x128xf32>
      %358 = arith.mulf %347, %319 : vector<8x128xf32>
      %359 = arith.mulf %339, %349 : vector<8x128xf32>
      %360 = arith.addf %358, %359 : vector<8x128xf32>
      %361 = math.tanh %360 : vector<8x128xf32>
      %362 = arith.mulf %357, %361 : vector<8x128xf32>
      %c6_i32 = arith.constant 6 : i32
      %363 = arith.addi %0, %c6_i32 : i32
      %364 = vector.broadcast %363 : i32 to vector<8x1xi32>
      %365 = arith.cmpi sgt, %12, %364 : vector<8x1xi32>
      %366 = vector.shape_cast %365 : vector<8x1xi1> to vector<8x1xi1>
      %367 = vector.broadcast %366 : vector<8x1xi1> to vector<8x128xi1>
      %368 = arith.select %367, %362, %316 : vector<8x128xi1>, vector<8x128xf32>
      %369 = vector.shape_cast %365 : vector<8x1xi1> to vector<8x1xi1>
      %370 = vector.broadcast %369 : vector<8x1xi1> to vector<8x128xi1>
      %371 = arith.select %370, %360, %319 : vector<8x128xi1>, vector<8x128xf32>
      %cst_131 = arith.constant 0.000000e+00 : f32
      %372 = vector.shape_cast %365 : vector<8x1xi1> to vector<8x1xi1>
      %373 = vector.broadcast %372 : vector<8x1xi1> to vector<8x128xi1>
      %374 = vector.broadcast %cst_131 : f32 to vector<8x128xf32>
      %375 = arith.select %373, %362, %374 : vector<8x128xi1>, vector<8x128xf32>
      %c0_132 = arith.constant 0 : index
      %c6_133 = arith.constant 6 : index
      %c0_134 = arith.constant 0 : index
      %376 = vector.load %arg6[%c0_132, %c6_133, %c0_134] : memref<8x8x128xf32, #tpu.memory_space<vmem>>, vector<8x1x128xf32>
      %377 = vector.shape_cast %376 : vector<8x1x128xf32> to vector<8x128xf32>
      %378 = vector.shape_cast %375 : vector<8x128xf32> to vector<8x1x128xf32>
      tpu.vector_store %arg6[%c0_132, %c6_133, %c0_134], %378 {strides = array<i32>} : memref<8x8x128xf32, #tpu.memory_space<vmem>>, vector<8x1x128xf32>,
      %c0_135 = arith.constant 0 : index
      %c7 = arith.constant 7 : index
      %c0_136 = arith.constant 0 : index
      %379 = vector.load %arg4[%c0_135, %c7, %c0_136] : memref<8x8x512xf32, #tpu.memory_space<vmem>>, vector<8x1x512xf32>
      %380 = vector.shape_cast %379 : vector<8x1x512xf32> to vector<8x512xf32>
      %c0_137 = arith.constant 0 : index
      %c0_138 = arith.constant 0 : index
      %381 = vector.load %arg5[%c0_137, %c0_138] : memref<128x512xf32, #tpu.memory_space<vmem>>, vector<128x512xf32>
      %cst_139 = arith.constant dense<0.000000e+00> : vector<8x512xf32>
      %382 = tpu.matmul %368, %381, %cst_139 {dimension_numbers = #tpu.dot_dimension_numbers<[1], [0], [0], [1], [0, 0, 1, 1], [], []>} : vector<8x128xf32>, vector<128x512xf32>, vector<8x512xf32> -> vector<8x512xf32>
      %383 = arith.addf %380, %382 : vector<8x512xf32>
      %384 = vector.extract_strided_slice %383 {offsets = [0, 0], sizes = [8, 128], strides = [1, 1]} : vector<8x512xf32> to vector<8x128xf32>
      %cst_140 = arith.constant 5.000000e-01 : f32
      %385 = vector.broadcast %cst_140 : f32 to vector<8x128xf32>
      %386 = arith.mulf %385, %384 : vector<8x128xf32>
      %387 = math.tanh %386 : vector<8x128xf32>
      %cst_141 = arith.constant 5.000000e-01 : f32
      %388 = vector.broadcast %cst_141 : f32 to vector<8x128xf32>
      %389 = arith.mulf %388, %387 : vector<8x128xf32>
      %cst_142 = arith.constant 5.000000e-01 : f32
      %390 = vector.broadcast %cst_142 : f32 to vector<8x128xf32>
      %391 = arith.addf %389, %390 : vector<8x128xf32>
      %392 = vector.extract_strided_slice %383 {offsets = [0, 128], sizes = [8, 128], strides = [1, 1]} : vector<8x512xf32> to vector<8x128xf32>
      %cst_143 = arith.constant 5.000000e-01 : f32
      %393 = vector.broadcast %cst_143 : f32 to vector<8x128xf32>
      %394 = arith.mulf %393, %392 : vector<8x128xf32>
      %395 = math.tanh %394 : vector<8x128xf32>
      %cst_144 = arith.constant 5.000000e-01 : f32
      %396 = vector.broadcast %cst_144 : f32 to vector<8x128xf32>
      %397 = arith.mulf %396, %395 : vector<8x128xf32>
      %cst_145 = arith.constant 5.000000e-01 : f32
      %398 = vector.broadcast %cst_145 : f32 to vector<8x128xf32>
      %399 = arith.addf %397, %398 : vector<8x128xf32>
      %400 = vector.extract_strided_slice %383 {offsets = [0, 256], sizes = [8, 128], strides = [1, 1]} : vector<8x512xf32> to vector<8x128xf32>
      %401 = math.tanh %400 : vector<8x128xf32>
      %402 = vector.extract_strided_slice %383 {offsets = [0, 384], sizes = [8, 128], strides = [1, 1]} : vector<8x512xf32> to vector<8x128xf32>
      %cst_146 = arith.constant 5.000000e-01 : f32
      %403 = vector.broadcast %cst_146 : f32 to vector<8x128xf32>
      %404 = arith.mulf %403, %402 : vector<8x128xf32>
      %405 = math.tanh %404 : vector<8x128xf32>
      %cst_147 = arith.constant 5.000000e-01 : f32
      %406 = vector.broadcast %cst_147 : f32 to vector<8x128xf32>
      %407 = arith.mulf %406, %405 : vector<8x128xf32>
      %cst_148 = arith.constant 5.000000e-01 : f32
      %408 = vector.broadcast %cst_148 : f32 to vector<8x128xf32>
      %409 = arith.addf %407, %408 : vector<8x128xf32>
      %410 = arith.mulf %399, %371 : vector<8x128xf32>
      %411 = arith.mulf %391, %401 : vector<8x128xf32>
      %412 = arith.addf %410, %411 : vector<8x128xf32>
      %413 = math.tanh %412 : vector<8x128xf32>
      %414 = arith.mulf %409, %413 : vector<8x128xf32>
      %c7_i32 = arith.constant 7 : i32
      %415 = arith.addi %0, %c7_i32 : i32
      %416 = vector.broadcast %415 : i32 to vector<8x1xi32>
      %417 = arith.cmpi sgt, %12, %416 : vector<8x1xi32>
      %418 = vector.shape_cast %417 : vector<8x1xi1> to vector<8x1xi1>
      %419 = vector.broadcast %418 : vector<8x1xi1> to vector<8x128xi1>
      %420 = arith.select %419, %414, %368 : vector<8x128xi1>, vector<8x128xf32>
      %421 = vector.shape_cast %417 : vector<8x1xi1> to vector<8x1xi1>
      %422 = vector.broadcast %421 : vector<8x1xi1> to vector<8x128xi1>
      %423 = arith.select %422, %412, %371 : vector<8x128xi1>, vector<8x128xf32>
      %cst_149 = arith.constant 0.000000e+00 : f32
      %424 = vector.shape_cast %417 : vector<8x1xi1> to vector<8x1xi1>
      %425 = vector.broadcast %424 : vector<8x1xi1> to vector<8x128xi1>
      %426 = vector.broadcast %cst_149 : f32 to vector<8x128xf32>
      %427 = arith.select %425, %414, %426 : vector<8x128xi1>, vector<8x128xf32>
      %c0_150 = arith.constant 0 : index
      %c7_151 = arith.constant 7 : index
      %c0_152 = arith.constant 0 : index
      %428 = vector.load %arg6[%c0_150, %c7_151, %c0_152] : memref<8x8x128xf32, #tpu.memory_space<vmem>>, vector<8x1x128xf32>
      %429 = vector.shape_cast %428 : vector<8x1x128xf32> to vector<8x128xf32>
      %430 = vector.shape_cast %427 : vector<8x128xf32> to vector<8x1x128xf32>
      tpu.vector_store %arg6[%c0_150, %c7_151, %c0_152], %430 {strides = array<i32>} : memref<8x8x128xf32, #tpu.memory_space<vmem>>, vector<8x1x128xf32>,
      %c0_153 = arith.constant 0 : index
      %c0_154 = arith.constant 0 : index
      %431 = vector.load %arg7[%c0_153, %c0_154] : memref<8x128xf32, #tpu.memory_space<vmem>>, vector<8x128xf32>
      tpu.vector_store %arg7[%c0_153, %c0_154], %420 {strides = array<i32>} : memref<8x128xf32, #tpu.memory_space<vmem>>, vector<8x128xf32>,
      %c0_155 = arith.constant 0 : index
      %c0_156 = arith.constant 0 : index
      %432 = vector.load %arg8[%c0_155, %c0_156] : memref<8x128xf32, #tpu.memory_space<vmem>>, vector<8x128xf32>
      tpu.vector_store %arg8[%c0_155, %c0_156], %423 {strides = array<i32>} : memref<8x128xf32, #tpu.memory_space<vmem>>, vector<8x128xf32>,
    } else {
    }
    return
  }
  func.func @transform_0(%arg0: i32, %arg1: i32, %arg2: memref<1xi32, #tpu.memory_space<smem>>) -> (i32, i32) {
    %c0_i32 = arith.constant 0 : i32
    %c0_i32_0 = arith.constant 0 : i32
    return %arg0, %c0_i32 : i32, i32
  }
  func.func @transform_1(%arg0: i32, %arg1: i32, %arg2: memref<1xi32, #tpu.memory_space<smem>>) -> (i32, i32, i32) {
    %c0_i32 = arith.constant 0 : i32
    %c0_i32_0 = arith.constant 0 : i32
    return %arg0, %arg1, %c0_i32 : i32, i32, i32
  }
  func.func @transform_2(%arg0: i32, %arg1: i32, %arg2: memref<1xi32, #tpu.memory_space<smem>>) -> (i32, i32) {
    %c0_i32 = arith.constant 0 : i32
    %c0_i32_0 = arith.constant 0 : i32
    %c0_i32_1 = arith.constant 0 : i32
    return %c0_i32, %c0_i32_0 : i32, i32
  }
  func.func @transform_3(%arg0: i32, %arg1: i32, %arg2: memref<1xi32, #tpu.memory_space<smem>>) -> (i32, i32, i32) {
    %c0_i32 = arith.constant 0 : i32
    %c0_i32_0 = arith.constant 0 : i32
    return %arg0, %arg1, %c0_i32 : i32, i32, i32
  }
  func.func @transform_4(%arg0: i32, %arg1: i32, %arg2: memref<1xi32, #tpu.memory_space<smem>>) -> (i32, i32) {
    %c0_i32 = arith.constant 0 : i32
    %c0_i32_0 = arith.constant 0 : i32
    return %arg0, %c0_i32 : i32, i32
  }
  func.func @transform_5(%arg0: i32, %arg1: i32, %arg2: memref<1xi32, #tpu.memory_space<smem>>) -> (i32, i32) {
    %c0_i32 = arith.constant 0 : i32
    %c0_i32_0 = arith.constant 0 : i32
    return %arg0, %c0_i32 : i32, i32
  }
}

</mosaic_0001>

<llo_original>
// kernel: tpu_custom_call.1
$region0: #{tpu_custom_call.1}
  #allocation0 [shape = 'u32[]', space=smem, size = 0x4, offset = 0x4, fixed_abs, tag = 'smem constant byte address 0x4 - core index']
  #allocation1 [shape = 'u32[72,128]{1,0:T(1,128)}', space=vmem, size = 0x9000, scoped, tag = 'internal scratch']
  #allocation2 [shape = 's32[1]{0}', space=sflag, size = 0x4, scoped, tag = 'scoped memory for tpu_custom_call.1']
  #allocation3 [shape = 's32[1]{0:T(128)S(6)}', space=smem, size = 0x200, scoped, tag = 'prefetched SMEM operand 0']
  %s0 = inlined_call_operand.<no memory space> [shape: s32[1], index: 0, kind: input, shape index: {}]
  %s1 = inlined_call_operand.vmem [shape: s32[8,1], index: 1, kind: input, shape index: {}]
  %s2 = inlined_call_operand.hbm [shape: f32[8,8,512], index: 2, kind: input, shape index: {}]
  %s3 = inlined_call_operand.hbm [shape: f32[128,512], index: 3, kind: input, shape index: {}]
  %s4 = inlined_call_operand.hbm [shape: f32[8,8,128], index: 4, kind: output, shape index: {0}]
  %s5 = inlined_call_operand.hbm [shape: f32[8,128], index: 5, kind: output, shape index: {1}]
  %s6 = inlined_call_operand.hbm [shape: f32[8,128], index: 6, kind: output, shape index: {2}]
  %7 = xla_tuple %s4, %s5, %s6
  %s8 = sld [smem:[#allocation0]]
  $region58: #{tpu_custom_call.1} parent=0
    _
  %s10 = ssub.s32 1, %s8
  %s11 = scalar_select 0, %s10, %s8
  %12 = sst [smem:[#allocation3]] %s0
  $region1: #{tpu_custom_call.1} parent=0
    #allocation4 [shape = 'u8[131072]{0}', space=vmem, size = 0x20000, scoped, tag = 'input window, operand 2, single buffered']
    #allocation5 [shape = 's32[1]{0}', space=sflag, size = 0x4, scoped, tag = 'scoped memory for tpu_custom_call.1']
    #allocation6 [shape = 's32[1]{0}', space=sflag, size = 0x4, scoped, tag = 'scoped memory for tpu_custom_call.1']
    #allocation7 [shape = 'u8[262144]{0}', space=vmem, size = 0x40000, scoped, tag = 'input window, operand 3, single buffered']
    #allocation8 [shape = 's32[1]{0}', space=sflag, size = 0x4, scoped, tag = 'scoped memory for tpu_custom_call.1']
    #allocation9 [shape = 'u8[32768]{0}', space=vmem, size = 0x8000, scoped, tag = 'output window, operand 0, single buffered']
    #allocation10 [shape = 'u8[4096]{0}', space=vmem, size = 0x1000, scoped, tag = 'output window, operand 1, single buffered']
    #allocation11 [shape = 's32[1]{0}', space=sflag, size = 0x4, scoped, tag = 'scoped memory for tpu_custom_call.1']
    #allocation12 [shape = 'u8[4096]{0}', space=vmem, size = 0x1000, scoped, tag = 'output window, operand 2, single buffered']
    %13 = vsyncpa [#allocation5], 0
    %14 = vsyncpa [#allocation8], 0
    %15 = vsyncpa [#allocation6], 0
    %16 = vsyncpa [#allocation11], 0
    // Predicated region
    $region2: #{tpu_custom_call.1} parent=1 // pred_check
      _
    $region3: #{tpu_custom_call.1} parent=1 // pred_check_branch
      %18 = sbr.rel (0) target = $region5
    $region4: #{tpu_custom_call.1} parent=1 // pred_region
      _
    $region5: #{tpu_custom_call.1} parent=1 // pred_fallthru
      _
    // Predicated region
    $region6: #{tpu_custom_call.1} parent=1 // pred_check
      _
    $region7: #{tpu_custom_call.1} parent=1 // pred_check_branch
      %20 = sbr.rel (0) target = $region9
    $region8: #{tpu_custom_call.1} parent=1 // pred_region
      %22 = vsyncadd [#allocation5], 0
      %s23 = sshll.u32 %s2, 4
      %s24 = int_to_ptr.hbm [resolvable:$true] %s23
      %s25 = sshll.u32 [#allocation4], 4
      %s26 = int_to_ptr.vmem [resolvable:$true] %s25
      %31 = dma.hbm_to_vmem [thread:$0]  %s24, 4096, %s26, [#allocation5], 512, 512, 32
    $region9: #{tpu_custom_call.1} parent=1 // pred_fallthru
      _
    // Predicated region
    $region10: #{tpu_custom_call.1} parent=1 // pred_check
      _
    $region11: #{tpu_custom_call.1} parent=1 // pred_check_branch
      %33 = sbr.rel (0) target = $region13
    $region12: #{tpu_custom_call.1} parent=1 // pred_region
      %35 = vsyncadd [#allocation8], 0
      %s36 = sshll.u32 %s3, 4
      %s37 = int_to_ptr.hbm [resolvable:$true] %s36
      %s38 = sshll.u32 [#allocation7], 4
      %s39 = int_to_ptr.vmem [resolvable:$true] %s38
      %44 = dma.hbm_to_vmem [thread:$0]  %s37, 8192, %s39, [#allocation8], 512, 512, 32
    $region13: #{tpu_custom_call.1} parent=1 // pred_fallthru
      _
    // Predicated region
    $region14: #{tpu_custom_call.1} parent=1 // pred_check
      _
    $region15: #{tpu_custom_call.1} parent=1 // pred_check_branch
      %46 = sbr.rel (0) target = $region17
    $region16: #{tpu_custom_call.1} parent=1 // pred_region
      %48 = dma.done [#allocation5], 4096
    $region17: #{tpu_custom_call.1} parent=1 // pred_fallthru
      _
    // Predicated region
    $region18: #{tpu_custom_call.1} parent=1 // pred_check
      _
    $region19: #{tpu_custom_call.1} parent=1 // pred_check_branch
      %50 = sbr.rel (0) target = $region21
    $region20: #{tpu_custom_call.1} parent=1 // pred_region
      %52 = dma.done [#allocation8], 8192
    $region21: #{tpu_custom_call.1} parent=1 // pred_fallthru
      _
    %s53 = smul.u32 0, 8
    %p54 = scmp.eq.s32.totalorder 0, 0
    // Predicated region
    $region22: #{tpu_custom_call.1} parent=1 // pred_check
      %p55 = pneg %p54
    $region23: #{tpu_custom_call.1} parent=1 // pred_check_branch
      %57 = sbr.rel (%p55) target = $region25
    $region24: #{tpu_custom_call.1} parent=1 // pred_region
      %58 = vst [vmem:[#allocation10] sm:$0xff] 0.0
      %59 = vst [vmem:[#allocation12] sm:$0xff] 0.0
    $region25: #{tpu_custom_call.1} parent=1 // pred_fallthru
      _
    %s60 = sld [smem:[#allocation3]]
    %p61 = scmp.ge.s32.totalorder %s53, %s60
    // Predicated region
    $region26: #{tpu_custom_call.1} parent=1 // pred_check
      %p62 = pneg %p61
    $region27: #{tpu_custom_call.1} parent=1 // pred_check_branch
      %64 = sbr.rel (%p62) target = $region29
    $region28: #{tpu_custom_call.1} parent=1 // pred_region
      %65 = vst [vmem:[#allocation9] sm:$0xff] 0.0
      %66 = vst [vmem:[#allocation9 + $0x8] sm:$0xff] 0.0
      %67 = vst [vmem:[#allocation9 + $0x10] sm:$0xff] 0.0
      %68 = vst [vmem:[#allocation9 + $0x18] sm:$0xff] 0.0
      %69 = vst [vmem:[#allocation9 + $0x20] sm:$0xff] 0.0
      %70 = vst [vmem:[#allocation9 + $0x28] sm:$0xff] 0.0
      %71 = vst [vmem:[#allocation9 + $0x30] sm:$0xff] 0.0
      %72 = vst [vmem:[#allocation9 + $0x38] sm:$0xff] 0.0
    $region29: #{tpu_custom_call.1} parent=1 // pred_fallthru
      _
    %p73 = scmp.lt.s32.totalorder %s53, %s60
    // Predicated region
    $region30: #{tpu_custom_call.1} parent=1 // pred_check
      %p74 = pneg %p73
    $region31: #{tpu_custom_call.1} parent=1 // pred_check_branch
      %76 = sbr.rel (%p74) target = $region33
    $region32: #{tpu_custom_call.1} parent=1 // pred_region
      %v77 = vld [vmem:[%s1] sm:$0xff]
      %v78 = vld [vmem:[#allocation10] sm:$0xff]
      %v79 = vld [vmem:[#allocation12] sm:$0xff]
      %v80 = vld [vmem:[#allocation4] ss:$8 sm:$0xf]
      %s81 = scalar_lea.vmem [#allocation4], 32
      %v82 = vld [vmem:[%s81] ss:$8 sm:$0xf]
      %s83 = scalar_lea.vmem [#allocation4], 64
      %v84 = vld [vmem:[%s83] ss:$8 sm:$0xf]
      %s85 = scalar_lea.vmem [#allocation4], 96
      %v86 = vld [vmem:[%s85] ss:$8 sm:$0xf]
      %s87 = scalar_lea.vmem [#allocation4], 128
      %v88 = vld [vmem:[%s87] ss:$8 sm:$0xf]
      %s89 = scalar_lea.vmem [#allocation4], 160
      %v90 = vld [vmem:[%s89] ss:$8 sm:$0xf]
      %s91 = scalar_lea.vmem [#allocation4], 192
      %v92 = vld [vmem:[%s91] ss:$8 sm:$0xf]
      %s93 = scalar_lea.vmem [#allocation4], 224
      %v94 = vld [vmem:[%s93] ss:$8 sm:$0xf]
      %v95 = vld [vmem:[#allocation7] sm:$0xff]
      %v96 = vld [vmem:[#allocation7 + $0x8] sm:$0xff]
      %v97 = vld [vmem:[#allocation7 + $0x10] sm:$0xff]
      %v98 = vld [vmem:[#allocation7 + $0x18] sm:$0xff]
      %v99 = vld [vmem:[#allocation7 + $0x20] sm:$0xff]
      %v100 = vld [vmem:[#allocation7 + $0x28] sm:$0xff]
      %v101 = vld [vmem:[#allocation7 + $0x30] sm:$0xff]
      %v102 = vld [vmem:[#allocation7 + $0x38] sm:$0xff]
      %v103 = vld [vmem:[#allocation7 + $0x40] sm:$0xff]
      %v104 = vld [vmem:[#allocation7 + $0x48] sm:$0xff]
      %v105 = vld [vmem:[#allocation7 + $0x50] sm:$0xff]
      %v106 = vld [vmem:[#allocation7 + $0x58] sm:$0xff]
      %v107 = vld [vmem:[#allocation7 + $0x60] sm:$0xff]
      %v108 = vld [vmem:[#allocation7 + $0x68] sm:$0xff]
      %v109 = vld [vmem:[#allocation7 + $0x70] sm:$0xff]
      %v110 = vld [vmem:[#allocation7 + $0x78] sm:$0xff]
      %v111 = vld [vmem:[#allocation7 + $0x80] sm:$0xff]
      %v112 = vld [vmem:[#allocation7 + $0x88] sm:$0xff]
      %v113 = vld [vmem:[#allocation7 + $0x90] sm:$0xff]
      %v114 = vld [vmem:[#allocation7 + $0x98] sm:$0xff]
      %v115 = vld [vmem:[#allocation7 + $0xa0] sm:$0xff]
      %v116 = vld [vmem:[#allocation7 + $0xa8] sm:$0xff]
      %v117 = vld [vmem:[#allocation7 + $0xb0] sm:$0xff]
      %v118 = vld [vmem:[#allocation7 + $0xb8] sm:$0xff]
      %v119 = vld [vmem:[#allocation7 + $0xc0] sm:$0xff]
      %v120 = vld [vmem:[#allocation7 + $0xc8] sm:$0xff]
      %v121 = vld [vmem:[#allocation7 + $0xd0] sm:$0xff]
      %v122 = vld [vmem:[#allocation7 + $0xd8] sm:$0xff]
      %v123 = vld [vmem:[#allocation7 + $0xe0] sm:$0xff]
      %v124 = vld [vmem:[#allocation7 + $0xe8] sm:$0xff]
      %v125 = vld [vmem:[#allocation7 + $0xf0] sm:$0xff]
      %v126 = vld [vmem:[#allocation7 + $0xf8] sm:$0xff]
      %v127 = vld [vmem:[#allocation7 + $0x100] sm:$0xff]
      %v128 = vld [vmem:[#allocation7 + $0x108] sm:$0xff]
      %v129 = vld [vmem:[#allocation7 + $0x110] sm:$0xff]
      %v130 = vld [vmem:[#allocation7 + $0x118] sm:$0xff]
      %v131 = vld [vmem:[#allocation7 + $0x120] sm:$0xff]
      %v132 = vld [vmem:[#allocation7 + $0x128] sm:$0xff]
      %v133 = vld [vmem:[#allocation7 + $0x130] sm:$0xff]
      %v134 = vld [vmem:[#allocation7 + $0x138] sm:$0xff]
      %v135 = vld [vmem:[#allocation7 + $0x140] sm:$0xff]
      %v136 = vld [vmem:[#allocation7 + $0x148] sm:$0xff]
      %v137 = vld [vmem:[#allocation7 + $0x150] sm:$0xff]
      %v138 = vld [vmem:[#allocation7 + $0x158] sm:$0xff]
      %v139 = vld [vmem:[#allocation7 + $0x160] sm:$0xff]
      %v140 = vld [vmem:[#allocation7 + $0x168] sm:$0xff]
      %v141 = vld [vmem:[#allocation7 + $0x170] sm:$0xff]
      %v142 = vld [vmem:[#allocation7 + $0x178] sm:$0xff]
      %v143 = vld [vmem:[#allocation7 + $0x180] sm:$0xff]
      %v144 = vld [vmem:[#allocation7 + $0x188] sm:$0xff]
      %v145 = vld [vmem:[#allocation7 + $0x190] sm:$0xff]
      %v146 = vld [vmem:[#allocation7 + $0x198] sm:$0xff]
      %v147 = vld [vmem:[#allocation7 + $0x1a0] sm:$0xff]
      %v148 = vld [vmem:[#allocation7 + $0x1a8] sm:$0xff]
      %v149 = vld [vmem:[#allocation7 + $0x1b0] sm:$0xff]
      %v150 = vld [vmem:[#allocation7 + $0x1b8] sm:$0xff]
      %v151 = vld [vmem:[#allocation7 + $0x1c0] sm:$0xff]
      %v152 = vld [vmem:[#allocation7 + $0x1c8] sm:$0xff]
      %v153 = vld [vmem:[#allocation7 + $0x1d0] sm:$0xff]
      %v154 = vld [vmem:[#allocation7 + $0x1d8] sm:$0xff]
      %v155 = vld [vmem:[#allocation7 + $0x1e0] sm:$0xff]
      %v156 = vld [vmem:[#allocation7 + $0x1e8] sm:$0xff]
      %v157 = vld [vmem:[#allocation7 + $0x1f0] sm:$0xff]
      %v158 = vld [vmem:[#allocation7 + $0x1f8] sm:$0xff]
      %159 = vmatpush.msra.mxu0 %v155
      %160 = vmatpush.msra.mxu0 %v151
      %161 = vmatpush.msra.mxu0 %v147
      %162 = vmatpush.msra.mxu0 %v143
      %163 = vmatpush.msra.mxu0 %v139
      %164 = vmatpush.msra.mxu0 %v135
      %165 = vmatpush.msra.mxu0 %v131
      %166 = vmatpush.msra.mxu0 %v127
      %167 = vmatpush.msra.mxu0 %v123
      %168 = vmatpush.msra.mxu0 %v119
      %169 = vmatpush.msra.mxu0 %v115
      %170 = vmatpush.msra.mxu0 %v111
      %171 = vmatpush.msra.mxu0 %v107
      %172 = vmatpush.msra.mxu0 %v103
      %173 = vmatpush.msra.mxu0 %v99
      %174 = vmatpush.msra.mxu0 %v95
      %175 = vmatmul.f32.gmra.mxu0 %v78
      %v176 = vpop.f32.mrf.mxu0
      %v177 = vadd.f32 0.0, %v176
      %178 = vdwg.mxu0
      %179 = vmatpush.msra.mxu0 %v156
      %180 = vmatpush.msra.mxu0 %v152
      %181 = vmatpush.msra.mxu0 %v148
      %182 = vmatpush.msra.mxu0 %v144
      %183 = vmatpush.msra.mxu0 %v140
      %184 = vmatpush.msra.mxu0 %v136
      %185 = vmatpush.msra.mxu0 %v132
      %186 = vmatpush.msra.mxu0 %v128
      %187 = vmatpush.msra.mxu0 %v124
      %188 = vmatpush.msra.mxu0 %v120
      %189 = vmatpush.msra.mxu0 %v116
      %190 = vmatpush.msra.mxu0 %v112
      %191 = vmatpush.msra.mxu0 %v108
      %192 = vmatpush.msra.mxu0 %v104
      %193 = vmatpush.msra.mxu0 %v100
      %194 = vmatpush.msra.mxu0 %v96
      %195 = vmatmul.f32.gmra.mxu0 %v78
      %v196 = vpop.f32.mrf.mxu0
      %v197 = vadd.f32 0.0, %v196
      %198 = vdwg.mxu0
      %199 = vmatpush.msra.mxu0 %v157
      %200 = vmatpush.msra.mxu0 %v153
      %201 = vmatpush.msra.mxu0 %v149
      %202 = vmatpush.msra.mxu0 %v145
      %203 = vmatpush.msra.mxu0 %v141
      %204 = vmatpush.msra.mxu0 %v137
      %205 = vmatpush.msra.mxu0 %v133
      %206 = vmatpush.msra.mxu0 %v129
      %207 = vmatpush.msra.mxu0 %v125
      %208 = vmatpush.msra.mxu0 %v121
      %209 = vmatpush.msra.mxu0 %v117
      %210 = vmatpush.msra.mxu0 %v113
      %211 = vmatpush.msra.mxu0 %v109
      %212 = vmatpush.msra.mxu0 %v105
      %213 = vmatpush.msra.mxu0 %v101
      %214 = vmatpush.msra.mxu0 %v97
      %215 = vmatmul.f32.gmra.mxu0 %v78
      %v216 = vpop.f32.mrf.mxu0
      %v217 = vadd.f32 0.0, %v216
      %218 = vdwg.mxu0
      %219 = vmatpush.msra.mxu0 %v158
      %220 = vmatpush.msra.mxu0 %v154
      %221 = vmatpush.msra.mxu0 %v150
      %222 = vmatpush.msra.mxu0 %v146
      %223 = vmatpush.msra.mxu0 %v142
      %224 = vmatpush.msra.mxu0 %v138
      %225 = vmatpush.msra.mxu0 %v134
      %226 = vmatpush.msra.mxu0 %v130
      %227 = vmatpush.msra.mxu0 %v126
      %228 = vmatpush.msra.mxu0 %v122
      %229 = vmatpush.msra.mxu0 %v118
      %230 = vmatpush.msra.mxu0 %v114
      %231 = vmatpush.msra.mxu0 %v110
      %232 = vmatpush.msra.mxu0 %v106
      %233 = vmatpush.msra.mxu0 %v102
      %234 = vmatpush.msra.mxu0 %v98
      %235 = vmatmul.f32.gmra.mxu0 %v78
      %v236 = vpop.f32.mrf.mxu0
      %v237 = vadd.f32 0.0, %v236
      %238 = vdwg.mxu0
      %v243 = vrot.slane %v197, 7
      %v244 = vrot.slane %v217, 6
      %v245 = vrot.slane %v237, 5
      %vm246 = vcmask 1040384
      %v247 = vsel %vm246, %v177, %v243
      %vm248 = vcmask 1042434
      %v249 = vsel %vm248, %v244, %v245
      %vm250 = vcmask 1041408
      %v251 = vsel %vm250, %v247, %v249
      %vm252 = vcmask 1041409
      %v253 = vsel %vm252, %v177, %v243
      %vm254 = vcmask 1043459
      %v255 = vsel %vm254, %v244, %v245
      %vm256 = vcmask 1042433
      %v257 = vsel %vm256, %v253, %v255
      %v258 = vrot.slane %v257, 1
      %v259 = vsel %vm248, %v177, %v243
      %vm260 = vcmask 1044484
      %v261 = vsel %vm260, %v244, %v245
      %vm262 = vcmask 1043458
      %v263 = vsel %vm262, %v259, %v261
      %v264 = vrot.slane %v263, 2
      %v265 = vsel %vm254, %v177, %v243
      %vm266 = vcmask 1045509
      %v267 = vsel %vm266, %v244, %v245
      %vm268 = vcmask 1044483
      %v269 = vsel %vm268, %v265, %v267
      %v270 = vrot.slane %v269, 3
      %v271 = vsel %vm260, %v177, %v243
      %vm272 = vcmask 1046534
      %v273 = vsel %vm272, %v244, %v245
      %vm274 = vcmask 1045508
      %v275 = vsel %vm274, %v271, %v273
      %v276 = vrot.slane %v275, 4
      %v277 = vsel %vm266, %v177, %v243
      %vm278 = vcmask 1046528
      %v279 = vsel %vm278, %v245, %v244
      %vm280 = vcmask 1046533
      %v281 = vsel %vm280, %v277, %v279
      %v282 = vrot.slane %v281, 5
      %v283 = vsel %vm272, %v177, %v243
      %v284 = vsel %vm246, %v244, %v245
      %vm285 = vcmask 1045504
      %v286 = vsel %vm285, %v284, %v283
      %v287 = vrot.slane %v286, 6
      %v288 = vsel %vm278, %v243, %v177
      %v289 = vsel %vm252, %v244, %v245
      %vm290 = vcmask 1046529
      %v291 = vsel %vm290, %v289, %v288
      %v292 = vrot.slane %v291, 7
      %v301 = vadd.f32 %v80, %v251
      %v302 = vadd.f32 %v82, %v258
      %v303 = vadd.f32 %v84, %v264
      %v304 = vadd.f32 %v86, %v270
      %v305 = vadd.f32 %v88, %v276
      %v306 = vadd.f32 %v90, %v282
      %v307 = vadd.f32 %v92, %v287
      %v308 = vadd.f32 %v94, %v292
      %v309 = vmul.f32 %v301, 0.5
      %v310 = vmul.f32 %v302, 0.5
      %v311 = vmul.f32 %v303, 0.5
      %v312 = vmul.f32 %v304, 0.5
      %v313 = vmul.f32 %v305, 0.5
      %v314 = vmul.f32 %v306, 0.5
      %v315 = vmul.f32 %v307, 0.5
      %v316 = vmul.f32 %v308, 0.5
      %v317 = vtanh.pop %v309
      %v318 = vtanh.pop %v310
      %v319 = vtanh.pop %v311
      %v320 = vtanh.pop %v312
      %v321 = vtanh.pop %v313
      %v322 = vtanh.pop %v314
      %v323 = vtanh.pop %v315
      %v324 = vtanh.pop %v316
      %v325 = vmul.f32 %v317, 0.5
      %v326 = vmul.f32 %v318, 0.5
      %v327 = vmul.f32 %v319, 0.5
      %v328 = vmul.f32 %v320, 0.5
      %v329 = vmul.f32 %v321, 0.5
      %v330 = vmul.f32 %v322, 0.5
      %v331 = vmul.f32 %v323, 0.5
      %v332 = vmul.f32 %v324, 0.5
      %v333 = vadd.f32 %v325, 0.5
      %v334 = vadd.f32 %v326, 0.5
      %v335 = vadd.f32 %v327, 0.5
      %v336 = vadd.f32 %v328, 0.5
      %v337 = vadd.f32 %v329, 0.5
      %v338 = vadd.f32 %v330, 0.5
      %v339 = vadd.f32 %v331, 0.5
      %v340 = vadd.f32 %v332, 0.5
      %v349 = vrot.slane %v301, 1
      %v350 = vrot.slane %v302, 1
      %v351 = vrot.slane %v303, 1
      %v352 = vrot.slane %v304, 1
      %v353 = vrot.slane %v305, 1
      %v354 = vrot.slane %v306, 1
      %v355 = vrot.slane %v307, 1
      %v356 = vrot.slane %v308, 1
      %v365 = vmul.f32 %v349, 0.5
      %v366 = vmul.f32 %v350, 0.5
      %v367 = vmul.f32 %v351, 0.5
      %v368 = vmul.f32 %v352, 0.5
      %v369 = vmul.f32 %v353, 0.5
      %v370 = vmul.f32 %v354, 0.5
      %v371 = vmul.f32 %v355, 0.5
      %v372 = vmul.f32 %v356, 0.5
      %v373 = vtanh.pop %v365
      %v374 = vtanh.pop %v366
      %v375 = vtanh.pop %v367
      %v376 = vtanh.pop %v368
      %v377 = vtanh.pop %v369
      %v378 = vtanh.pop %v370
      %v379 = vtanh.pop %v371
      %v380 = vtanh.pop %v372
      %v381 = vmul.f32 %v373, 0.5
      %v382 = vmul.f32 %v374, 0.5
      %v383 = vmul.f32 %v375, 0.5
      %v384 = vmul.f32 %v376, 0.5
      %v385 = vmul.f32 %v377, 0.5
      %v386 = vmul.f32 %v378, 0.5
      %v387 = vmul.f32 %v379, 0.5
      %v388 = vmul.f32 %v380, 0.5
      %v389 = vadd.f32 %v381, 0.5
      %v390 = vadd.f32 %v382, 0.5
      %v391 = vadd.f32 %v383, 0.5
      %v392 = vadd.f32 %v384, 0.5
      %v393 = vadd.f32 %v385, 0.5
      %v394 = vadd.f32 %v386, 0.5
      %v395 = vadd.f32 %v387, 0.5
      %v396 = vadd.f32 %v388, 0.5
      %v397 = vrot.slane %v301, 2
      %v398 = vrot.slane %v302, 2
      %v399 = vrot.slane %v303, 2
      %v400 = vrot.slane %v304, 2
      %v401 = vrot.slane %v305, 2
      %v402 = vrot.slane %v306, 2
      %v403 = vrot.slane %v307, 2
      %v404 = vrot.slane %v308, 2
      %v413 = vtanh.pop %v397
      %v414 = vtanh.pop %v398
      %v415 = vtanh.pop %v399
      %v416 = vtanh.pop %v400
      %v417 = vtanh.pop %v401
      %v418 = vtanh.pop %v402
      %v419 = vtanh.pop %v403
      %v420 = vtanh.pop %v404
      %v421 = vrot.slane %v301, 3
      %v422 = vrot.slane %v302, 3
      %v423 = vrot.slane %v303, 3
      %v424 = vrot.slane %v304, 3
      %v425 = vrot.slane %v305, 3
      %v426 = vrot.slane %v306, 3
      %v427 = vrot.slane %v307, 3
      %v428 = vrot.slane %v308, 3
      %v437 = vmul.f32 %v421, 0.5
      %v438 = vmul.f32 %v422, 0.5
      %v439 = vmul.f32 %v423, 0.5
      %v440 = vmul.f32 %v424, 0.5
      %v441 = vmul.f32 %v425, 0.5
      %v442 = vmul.f32 %v426, 0.5
      %v443 = vmul.f32 %v427, 0.5
      %v444 = vmul.f32 %v428, 0.5
      %v445 = vtanh.pop %v437
      %v446 = vtanh.pop %v438
      %v447 = vtanh.pop %v439
      %v448 = vtanh.pop %v440
      %v449 = vtanh.pop %v441
      %v450 = vtanh.pop %v442
      %v451 = vtanh.pop %v443
      %v452 = vtanh.pop %v444
      %v453 = vmul.f32 %v445, 0.5
      %v454 = vmul.f32 %v446, 0.5
      %v455 = vmul.f32 %v447, 0.5
      %v456 = vmul.f32 %v448, 0.5
      %v457 = vmul.f32 %v449, 0.5
      %v458 = vmul.f32 %v450, 0.5
      %v459 = vmul.f32 %v451, 0.5
      %v460 = vmul.f32 %v452, 0.5
      %v461 = vadd.f32 %v453, 0.5
      %v462 = vadd.f32 %v454, 0.5
      %v463 = vadd.f32 %v455, 0.5
      %v464 = vadd.f32 %v456, 0.5
      %v465 = vadd.f32 %v457, 0.5
      %v466 = vadd.f32 %v458, 0.5
      %v467 = vadd.f32 %v459, 0.5
      %v468 = vadd.f32 %v460, 0.5
      %v470 = vrot.slane %v79, 1
      %v471 = vrot.slane %v79, 2
      %v472 = vrot.slane %v79, 3
      %v473 = vrot.slane %v79, 4
      %v474 = vrot.slane %v79, 5
      %v475 = vrot.slane %v79, 6
      %v476 = vrot.slane %v79, 7
      %v484 = vmul.f32 %v389, %v79
      %v485 = vmul.f32 %v390, %v470
      %v486 = vmul.f32 %v391, %v471
      %v487 = vmul.f32 %v392, %v472
      %v488 = vmul.f32 %v393, %v473
      %v489 = vmul.f32 %v394, %v474
      %v490 = vmul.f32 %v395, %v475
      %v491 = vmul.f32 %v396, %v476
      %v492 = vmul.f32 %v333, %v413
      %v493 = vmul.f32 %v334, %v414
      %v494 = vmul.f32 %v335, %v415
      %v495 = vmul.f32 %v336, %v416
      %v496 = vmul.f32 %v337, %v417
      %v497 = vmul.f32 %v338, %v418
      %v498 = vmul.f32 %v339, %v419
      %v499 = vmul.f32 %v340, %v420
      %v500 = vadd.f32 %v484, %v492
      %v501 = vadd.f32 %v485, %v493
      %v502 = vadd.f32 %v486, %v494
      %v503 = vadd.f32 %v487, %v495
      %v504 = vadd.f32 %v488, %v496
      %v505 = vadd.f32 %v489, %v497
      %v506 = vadd.f32 %v490, %v498
      %v507 = vadd.f32 %v491, %v499
      %v508 = vtanh.pop %v500
      %v509 = vtanh.pop %v501
      %v510 = vtanh.pop %v502
      %v511 = vtanh.pop %v503
      %v512 = vtanh.pop %v504
      %v513 = vtanh.pop %v505
      %v514 = vtanh.pop %v506
      %v515 = vtanh.pop %v507
      %v516 = vmul.f32 %v461, %v508
      %v517 = vmul.f32 %v462, %v509
      %v518 = vmul.f32 %v463, %v510
      %v519 = vmul.f32 %v464, %v511
      %v520 = vmul.f32 %v465, %v512
      %v521 = vmul.f32 %v466, %v513
      %v522 = vmul.f32 %v467, %v514
      %v523 = vmul.f32 %v468, %v515
      %v524 = vstv %s53
      %vm525 = vcmp.gt.s32.totalorder %v77, %v524
      %v526 = vsel %vm525, 1, 0
      %527 = vset.pattern.permute.xlu0 0
      %528 = vperm.xlu0 %527, %v526
      %v529 = vpop.permute.xlu0 %528
      %vm530 = vcmp.eq.s32.totalorder %v529, 1
      %539 = vst [vmem:[#allocation1] ss:$9 sm:$0xff] %v516
      %s540 = scalar_lea.vmem [#allocation1], 1
      %541 = vst [vmem:[%s540] ss:$9 sm:$0xff] %v517
      %s542 = scalar_lea.vmem [#allocation1], 2
      %543 = vst [vmem:[%s542] ss:$9 sm:$0xff] %v518
      %s544 = scalar_lea.vmem [#allocation1], 3
      %545 = vst [vmem:[%s544] ss:$9 sm:$0xff] %v519
      %s546 = scalar_lea.vmem [#allocation1], 4
      %547 = vst [vmem:[%s546] ss:$9 sm:$0xff] %v520
      %s548 = scalar_lea.vmem [#allocation1], 5
      %549 = vst [vmem:[%s548] ss:$9 sm:$0xff] %v521
      %s550 = scalar_lea.vmem [#allocation1], 6
      %551 = vst [vmem:[%s550] ss:$9 sm:$0xff] %v522
      %s552 = scalar_lea.vmem [#allocation1], 7
      %553 = vst [vmem:[%s552] ss:$9 sm:$0xff] %v523
      %v554 = vld [vmem:[#allocation1] sm:$0xff]
      %v556 = vsel %vm530, %v554, %v78
      %565 = vst [vmem:[#allocation1] ss:$9 sm:$0xff] %v500
      %s566 = scalar_lea.vmem [#allocation1], 1
      %567 = vst [vmem:[%s566] ss:$9 sm:$0xff] %v501
      %s568 = scalar_lea.vmem [#allocation1], 2
      %569 = vst [vmem:[%s568] ss:$9 sm:$0xff] %v502
      %s570 = scalar_lea.vmem [#allocation1], 3
      %571 = vst [vmem:[%s570] ss:$9 sm:$0xff] %v503
      %s572 = scalar_lea.vmem [#allocation1], 4
      %573 = vst [vmem:[%s572] ss:$9 sm:$0xff] %v504
      %s574 = scalar_lea.vmem [#allocation1], 5
      %575 = vst [vmem:[%s574] ss:$9 sm:$0xff] %v505
      %s576 = scalar_lea.vmem [#allocation1], 6
      %577 = vst [vmem:[%s576] ss:$9 sm:$0xff] %v506
      %s578 = scalar_lea.vmem [#allocation1], 7
      %579 = vst [vmem:[%s578] ss:$9 sm:$0xff] %v507
      %v580 = vld [vmem:[#allocation1] sm:$0xff]
      %v582 = vsel %vm530, %v580, %v79
      %583 = vst [vmem:[#allocation1] ss:$9 sm:$0xff] %v516
      %s584 = scalar_lea.vmem [#allocation1], 1
      %585 = vst [vmem:[%s584] ss:$9 sm:$0xff] %v517
      %s586 = scalar_lea.vmem [#allocation1], 2
      %587 = vst [vmem:[%s586] ss:$9 sm:$0xff] %v518
      %s588 = scalar_lea.vmem [#allocation1], 3
      %589 = vst [vmem:[%s588] ss:$9 sm:$0xff] %v519
      %s590 = scalar_lea.vmem [#allocation1], 4
      %591 = vst [vmem:[%s590] ss:$9 sm:$0xff] %v520
      %s592 = scalar_lea.vmem [#allocation1], 5
      %593 = vst [vmem:[%s592] ss:$9 sm:$0xff] %v521
      %s594 = scalar_lea.vmem [#allocation1], 6
      %595 = vst [vmem:[%s594] ss:$9 sm:$0xff] %v522
      %s596 = scalar_lea.vmem [#allocation1], 7
      %597 = vst [vmem:[%s596] ss:$9 sm:$0xff] %v523
      %v598 = vld [vmem:[#allocation1] sm:$0xff]
      %v600 = vsel %vm530, %v598, 0.0
      %v602 = vrot.slane %v600, 1
      %v603 = vrot.slane %v600, 2
      %v604 = vrot.slane %v600, 3
      %v605 = vrot.slane %v600, 4
      %v606 = vrot.slane %v600, 5
      %v607 = vrot.slane %v600, 6
      %v608 = vrot.slane %v600, 7
      %616 = vst [vmem:[#allocation9] sm:$0x1] %v600
      %617 = vst [vmem:[#allocation9 + $0x8] sm:$0x1] %v602
      %618 = vst [vmem:[#allocation9 + $0x10] sm:$0x1] %v603
      %619 = vst [vmem:[#allocation9 + $0x18] sm:$0x1] %v604
      %620 = vst [vmem:[#allocation9 + $0x20] sm:$0x1] %v605
      %621 = vst [vmem:[#allocation9 + $0x28] sm:$0x1] %v606
      %622 = vst [vmem:[#allocation9 + $0x30] sm:$0x1] %v607
      %623 = vst [vmem:[#allocation9 + $0x38] sm:$0x1] %v608
      %s624 = scalar_lea.vmem [#allocation4], 1
      %v625 = vld [vmem:[%s624] ss:$8 sm:$0xf]
      %s626 = scalar_lea.vmem [#allocation4], 33
      %v627 = vld [vmem:[%s626] ss:$8 sm:$0xf]
      %s628 = scalar_lea.vmem [#allocation4], 65
      %v629 = vld [vmem:[%s628] ss:$8 sm:$0xf]
      %s630 = scalar_lea.vmem [#allocation4], 97
      %v631 = vld [vmem:[%s630] ss:$8 sm:$0xf]
      %s632 = scalar_lea.vmem [#allocation4], 129
      %v633 = vld [vmem:[%s632] ss:$8 sm:$0xf]
      %s634 = scalar_lea.vmem [#allocation4], 161
      %v635 = vld [vmem:[%s634] ss:$8 sm:$0xf]
      %s636 = scalar_lea.vmem [#allocation4], 193
      %v637 = vld [vmem:[%s636] ss:$8 sm:$0xf]
      %s638 = scalar_lea.vmem [#allocation4], 225
      %v639 = vld [vmem:[%s638] ss:$8 sm:$0xf]
      %v640 = vld [vmem:[#allocation7] sm:$0xff]
      %v641 = vld [vmem:[#allocation7 + $0x8] sm:$0xff]
      %v642 = vld [vmem:[#allocation7 + $0x10] sm:$0xff]
      %v643 = vld [vmem:[#allocation7 + $0x18] sm:$0xff]
      %v644 = vld [vmem:[#allocation7 + $0x20] sm:$0xff]
      %v645 = vld [vmem:[#allocation7 + $0x28] sm:$0xff]
      %v646 = vld [vmem:[#allocation7 + $0x30] sm:$0xff]
      %v647 = vld [vmem:[#allocation7 + $0x38] sm:$0xff]
      %v648 = vld [vmem:[#allocation7 + $0x40] sm:$0xff]
      %v649 = vld [vmem:[#allocation7 + $0x48] sm:$0xff]
      %v650 = vld [vmem:[#allocation7 + $0x50] sm:$0xff]
      %v651 = vld [vmem:[#allocation7 + $0x58] sm:$0xff]
      %v652 = vld [vmem:[#allocation7 + $0x60] sm:$0xff]
      %v653 = vld [vmem:[#allocation7 + $0x68] sm:$0xff]
      %v654 = vld [vmem:[#allocation7 + $0x70] sm:$0xff]
      %v655 = vld [vmem:[#allocation7 + $0x78] sm:$0xff]
      %v656 = vld [vmem:[#allocation7 + $0x80] sm:$0xff]
      %v657 = vld [vmem:[#allocation7 + $0x88] sm:$0xff]
      %v658 = vld [vmem:[#allocation7 + $0x90] sm:$0xff]
      %v659 = vld [vmem:[#allocation7 + $0x98] sm:$0xff]
      %v660 = vld [vmem:[#allocation7 + $0xa0] sm:$0xff]
      %v661 = vld [vmem:[#allocation7 + $0xa8] sm:$0xff]
      %v662 = vld [vmem:[#allocation7 + $0xb0] sm:$0xff]
      %v663 = vld [vmem:[#allocation7 + $0xb8] sm:$0xff]
      %v664 = vld [vmem:[#allocation7 + $0xc0] sm:$0xff]
      %v665 = vld [vmem:[#allocation7 + $0xc8] sm:$0xff]
      %v666 = vld [vmem:[#allocation7 + $0xd0] sm:$0xff]
      %v667 = vld [vmem:[#allocation7 + $0xd8] sm:$0xff]
      %v668 = vld [vmem:[#allocation7 + $0xe0] sm:$0xff]
      %v669 = vld [vmem:[#allocation7 + $0xe8] sm:$0xff]
      %v670 = vld [vmem:[#allocation7 + $0xf0] sm:$0xff]
      %v671 = vld [vmem:[#allocation7 + $0xf8] sm:$0xff]
      %v672 = vld [vmem:[#allocation7 + $0x100] sm:$0xff]
      %v673 = vld [vmem:[#allocation7 + $0x108] sm:$0xff]
      %v674 = vld [vmem:[#allocation7 + $0x110] sm:$0xff]
      %v675 = vld [vmem:[#allocation7 + $0x118] sm:$0xff]
      %v676 = vld [vmem:[#allocation7 + $0x120] sm:$0xff]
      %v677 = vld [vmem:[#allocation7 + $0x128] sm:$0xff]
      %v678 = vld [vmem:[#allocation7 + $0x130] sm:$0xff]
      %v679 = vld [vmem:[#allocation7 + $0x138] sm:$0xff]
      %v680 = vld [vmem:[#allocation7 + $0x140] sm:$0xff]
      %v681 = vld [vmem:[#allocation7 + $0x148] sm:$0xff]
      %v682 = vld [vmem:[#allocation7 + $0x150] sm:$0xff]
      %v683 = vld [vmem:[#allocation7 + $0x158] sm:$0xff]
      %v684 = vld [vmem:[#allocation7 + $0x160] sm:$0xff]
      %v685 = vld [vmem:[#allocation7 + $0x168] sm:$0xff]
      %v686 = vld [vmem:[#allocation7 + $0x170] sm:$0xff]
      %v687 = vld [vmem:[#allocation7 + $0x178] sm:$0xff]
      %v688 = vld [vmem:[#allocation7 + $0x180] sm:$0xff]
      %v689 = vld [vmem:[#allocation7 + $0x188] sm:$0xff]
      %v690 = vld [vmem:[#allocation7 + $0x190] sm:$0xff]
      %v691 = vld [vmem:[#allocation7 + $0x198] sm:$0xff]
      %v692 = vld [vmem:[#allocation7 + $0x1a0] sm:$0xff]
      %v693 = vld [vmem:[#allocation7 + $0x1a8] sm:$0xff]
      %v694 = vld [vmem:[#allocation7 + $0x1b0] sm:$0xff]
      %v695 = vld [vmem:[#allocation7 + $0x1b8] sm:$0xff]
      %v696 = vld [vmem:[#allocation7 + $0x1c0] sm:$0xff]
      %v697 = vld [vmem:[#allocation7 + $0x1c8] sm:$0xff]
      %v698 = vld [vmem:[#allocation7 + $0x1d0] sm:$0xff]
      %v699 = vld [vmem:[#allocation7 + $0x1d8] sm:$0xff]
      %v700 = vld [vmem:[#allocation7 + $0x1e0] sm:$0xff]
      %v701 = vld [vmem:[#allocation7 + $0x1e8] sm:$0xff]
      %v702 = vld [vmem:[#allocation7 + $0x1f0] sm:$0xff]
      %v703 = vld [vmem:[#allocation7 + $0x1f8] sm:$0xff]
      %704 = vmatpush.msra.mxu0 %v700
      %705 = vmatpush.msra.mxu0 %v696
      %706 = vmatpush.msra.mxu0 %v692
      %707 = vmatpush.msra.mxu0 %v688
      %708 = vmatpush.msra.mxu0 %v684
      %709 = vmatpush.msra.mxu0 %v680
      %710 = vmatpush.msra.mxu0 %v676
      %711 = vmatpush.msra.mxu0 %v672
      %712 = vmatpush.msra.mxu0 %v668
      %713 = vmatpush.msra.mxu0 %v664
      %714 = vmatpush.msra.mxu0 %v660
      %715 = vmatpush.msra.mxu0 %v656
      %716 = vmatpush.msra.mxu0 %v652
      %717 = vmatpush.msra.mxu0 %v648
      %718 = vmatpush.msra.mxu0 %v644
      %719 = vmatpush.msra.mxu0 %v640
      %720 = vmatmul.f32.gmra.mxu0 %v556
      %v721 = vpop.f32.mrf.mxu0
      %v722 = vadd.f32 0.0, %v721
      %723 = vdwg.mxu0
      %724 = vmatpush.msra.mxu0 %v701
      %725 = vmatpush.msra.mxu0 %v697
      %726 = vmatpush.msra.mxu0 %v693
      %727 = vmatpush.msra.mxu0 %v689
      %728 = vmatpush.msra.mxu0 %v685
      %729 = vmatpush.msra.mxu0 %v681
      %730 = vmatpush.msra.mxu0 %v677
      %731 = vmatpush.msra.mxu0 %v673
      %732 = vmatpush.msra.mxu0 %v669
      %733 = vmatpush.msra.mxu0 %v665
      %734 = vmatpush.msra.mxu0 %v661
      %735 = vmatpush.msra.mxu0 %v657
      %736 = vmatpush.msra.mxu0 %v653
      %737 = vmatpush.msra.mxu0 %v649
      %738 = vmatpush.msra.mxu0 %v645
      %739 = vmatpush.msra.mxu0 %v641
      %740 = vmatmul.f32.gmra.mxu0 %v556
      %v741 = vpop.f32.mrf.mxu0
      %v742 = vadd.f32 0.0, %v741
      %743 = vdwg.mxu0
      %744 = vmatpush.msra.mxu0 %v702
      %745 = vmatpush.msra.mxu0 %v698
      %746 = vmatpush.msra.mxu0 %v694
      %747 = vmatpush.msra.mxu0 %v690
      %748 = vmatpush.msra.mxu0 %v686
      %749 = vmatpush.msra.mxu0 %v682
      %750 = vmatpush.msra.mxu0 %v678
      %751 = vmatpush.msra.mxu0 %v674
      %752 = vmatpush.msra.mxu0 %v670
      %753 = vmatpush.msra.mxu0 %v666
      %754 = vmatpush.msra.mxu0 %v662
      %755 = vmatpush.msra.mxu0 %v658
      %756 = vmatpush.msra.mxu0 %v654
      %757 = vmatpush.msra.mxu0 %v650
      %758 = vmatpush.msra.mxu0 %v646
      %759 = vmatpush.msra.mxu0 %v642
      %760 = vmatmul.f32.gmra.mxu0 %v556
      %v761 = vpop.f32.mrf.mxu0
      %v762 = vadd.f32 0.0, %v761
      %763 = vdwg.mxu0
      %764 = vmatpush.msra.mxu0 %v703
      %765 = vmatpush.msra.mxu0 %v699
      %766 = vmatpush.msra.mxu0 %v695
      %767 = vmatpush.msra.mxu0 %v691
      %768 = vmatpush.msra.mxu0 %v687
      %769 = vmatpush.msra.mxu0 %v683
      %770 = vmatpush.msra.mxu0 %v679
      %771 = vmatpush.msra.mxu0 %v675
      %772 = vmatpush.msra.mxu0 %v671
      %773 = vmatpush.msra.mxu0 %v667
      %774 = vmatpush.msra.mxu0 %v663
      %775 = vmatpush.msra.mxu0 %v659
      %776 = vmatpush.msra.mxu0 %v655
      %777 = vmatpush.msra.mxu0 %v651
      %778 = vmatpush.msra.mxu0 %v647
      %779 = vmatpush.msra.mxu0 %v643
      %780 = vmatmul.f32.gmra.mxu0 %v556
      %v781 = vpop.f32.mrf.mxu0
      %v782 = vadd.f32 0.0, %v781
      %783 = vdwg.mxu0
      %v788 = vrot.slane %v742, 7
      %v789 = vrot.slane %v762, 6
      %v790 = vrot.slane %v782, 5
      %v791 = vsel %vm246, %v722, %v788
      %v792 = vsel %vm248, %v789, %v790
      %v793 = vsel %vm250, %v791, %v792
      %v794 = vsel %vm252, %v722, %v788
      %v795 = vsel %vm254, %v789, %v790
      %v796 = vsel %vm256, %v794, %v795
      %v797 = vrot.slane %v796, 1
      %v798 = vsel %vm248, %v722, %v788
      %v799 = vsel %vm260, %v789, %v790
      %v800 = vsel %vm262, %v798, %v799
      %v801 = vrot.slane %v800, 2
      %v802 = vsel %vm254, %v722, %v788
      %v803 = vsel %vm266, %v789, %v790
      %v804 = vsel %vm268, %v802, %v803
      %v805 = vrot.slane %v804, 3
      %v806 = vsel %vm260, %v722, %v788
      %v807 = vsel %vm272, %v789, %v790
      %v808 = vsel %vm274, %v806, %v807
      %v809 = vrot.slane %v808, 4
      %v810 = vsel %vm266, %v722, %v788
      %v811 = vsel %vm278, %v790, %v789
      %v812 = vsel %vm280, %v810, %v811
      %v813 = vrot.slane %v812, 5
      %v814 = vsel %vm272, %v722, %v788
      %v815 = vsel %vm246, %v789, %v790
      %v816 = vsel %vm285, %v815, %v814
      %v817 = vrot.slane %v816, 6
      %v818 = vsel %vm278, %v788, %v722
      %v819 = vsel %vm252, %v789, %v790
      %v820 = vsel %vm290, %v819, %v818
      %v821 = vrot.slane %v820, 7
      %v830 = vadd.f32 %v625, %v793
      %v831 = vadd.f32 %v627, %v797
      %v832 = vadd.f32 %v629, %v801
      %v833 = vadd.f32 %v631, %v805
      %v834 = vadd.f32 %v633, %v809
      %v835 = vadd.f32 %v635, %v813
      %v836 = vadd.f32 %v637, %v817
      %v837 = vadd.f32 %v639, %v821
      %v838 = vmul.f32 %v830, 0.5
      %v839 = vmul.f32 %v831, 0.5
      %v840 = vmul.f32 %v832, 0.5
      %v841 = vmul.f32 %v833, 0.5
      %v842 = vmul.f32 %v834, 0.5
      %v843 = vmul.f32 %v835, 0.5
      %v844 = vmul.f32 %v836, 0.5
      %v845 = vmul.f32 %v837, 0.5
      %v846 = vtanh.pop %v838
      %v847 = vtanh.pop %v839
      %v848 = vtanh.pop %v840
      %v849 = vtanh.pop %v841
      %v850 = vtanh.pop %v842
      %v851 = vtanh.pop %v843
      %v852 = vtanh.pop %v844
      %v853 = vtanh.pop %v845
      %v854 = vmul.f32 %v846, 0.5
      %v855 = vmul.f32 %v847, 0.5
      %v856 = vmul.f32 %v848, 0.5
      %v857 = vmul.f32 %v849, 0.5
      %v858 = vmul.f32 %v850, 0.5
      %v859 = vmul.f32 %v851, 0.5
      %v860 = vmul.f32 %v852, 0.5
      %v861 = vmul.f32 %v853, 0.5
      %v862 = vadd.f32 %v854, 0.5
      %v863 = vadd.f32 %v855, 0.5
      %v864 = vadd.f32 %v856, 0.5
      %v865 = vadd.f32 %v857, 0.5
      %v866 = vadd.f32 %v858, 0.5
      %v867 = vadd.f32 %v859, 0.5
      %v868 = vadd.f32 %v860, 0.5
      %v869 = vadd.f32 %v861, 0.5
      %v878 = vrot.slane %v830, 1
      %v879 = vrot.slane %v831, 1
      %v880 = vrot.slane %v832, 1
      %v881 = vrot.slane %v833, 1
      %v882 = vrot.slane %v834, 1
      %v883 = vrot.slane %v835, 1
      %v884 = vrot.slane %v836, 1
      %v885 = vrot.slane %v837, 1
      %v894 = vmul.f32 %v878, 0.5
      %v895 = vmul.f32 %v879, 0.5
      %v896 = vmul.f32 %v880, 0.5
      %v897 = vmul.f32 %v881, 0.5
      %v898 = vmul.f32 %v882, 0.5
      %v899 = vmul.f32 %v883, 0.5
      %v900 = vmul.f32 %v884, 0.5
      %v901 = vmul.f32 %v885, 0.5
      %v902 = vtanh.pop %v894
      %v903 = vtanh.pop %v895
      %v904 = vtanh.pop %v896
      %v905 = vtanh.pop %v897
      %v906 = vtanh.pop %v898
      %v907 = vtanh.pop %v899
      %v908 = vtanh.pop %v900
      %v909 = vtanh.pop %v901
      %v910 = vmul.f32 %v902, 0.5
      %v911 = vmul.f32 %v903, 0.5
      %v912 = vmul.f32 %v904, 0.5
      %v913 = vmul.f32 %v905, 0.5
      %v914 = vmul.f32 %v906, 0.5
      %v915 = vmul.f32 %v907, 0.5
      %v916 = vmul.f32 %v908, 0.5
      %v917 = vmul.f32 %v909, 0.5
      %v918 = vadd.f32 %v910, 0.5
      %v919 = vadd.f32 %v911, 0.5
      %v920 = vadd.f32 %v912, 0.5
      %v921 = vadd.f32 %v913, 0.5
      %v922 = vadd.f32 %v914, 0.5
      %v923 = vadd.f32 %v915, 0.5
      %v924 = vadd.f32 %v916, 0.5
      %v925 = vadd.f32 %v917, 0.5
      %v926 = vrot.slane %v830, 2
      %v927 = vrot.slane %v831, 2
      %v928 = vrot.slane %v832, 2
      %v929 = vrot.slane %v833, 2
      %v930 = vrot.slane %v834, 2
      %v931 = vrot.slane %v835, 2
      %v932 = vrot.slane %v836, 2
      %v933 = vrot.slane %v837, 2
      %v942 = vtanh.pop %v926
      %v943 = vtanh.pop %v927
      %v944 = vtanh.pop %v928
      %v945 = vtanh.pop %v929
      %v946 = vtanh.pop %v930
      %v947 = vtanh.pop %v931
      %v948 = vtanh.pop %v932
      %v949 = vtanh.pop %v933
      %v950 = vrot.slane %v830, 3
      %v951 = vrot.slane %v831, 3
      %v952 = vrot.slane %v832, 3
      %v953 = vrot.slane %v833, 3
      %v954 = vrot.slane %v834, 3
      %v955 = vrot.slane %v835, 3
      %v956 = vrot.slane %v836, 3
      %v957 = vrot.slane %v837, 3
      %v966 = vmul.f32 %v950, 0.5
      %v967 = vmul.f32 %v951, 0.5
      %v968 = vmul.f32 %v952, 0.5
      %v969 = vmul.f32 %v953, 0.5
      %v970 = vmul.f32 %v954, 0.5
      %v971 = vmul.f32 %v955, 0.5
      %v972 = vmul.f32 %v956, 0.5
      %v973 = vmul.f32 %v957, 0.5
      %v974 = vtanh.pop %v966
      %v975 = vtanh.pop %v967
      %v976 = vtanh.pop %v968
      %v977 = vtanh.pop %v969
      %v978 = vtanh.pop %v970
      %v979 = vtanh.pop %v971
      %v980 = vtanh.pop %v972
      %v981 = vtanh.pop %v973
      %v982 = vmul.f32 %v974, 0.5
      %v983 = vmul.f32 %v975, 0.5
      %v984 = vmul.f32 %v976, 0.5
      %v985 = vmul.f32 %v977, 0.5
      %v986 = vmul.f32 %v978, 0.5
      %v987 = vmul.f32 %v979, 0.5
      %v988 = vmul.f32 %v980, 0.5
      %v989 = vmul.f32 %v981, 0.5
      %v990 = vadd.f32 %v982, 0.5
      %v991 = vadd.f32 %v983, 0.5
      %v992 = vadd.f32 %v984, 0.5
      %v993 = vadd.f32 %v985, 0.5
      %v994 = vadd.f32 %v986, 0.5
      %v995 = vadd.f32 %v987, 0.5
      %v996 = vadd.f32 %v988, 0.5
      %v997 = vadd.f32 %v989, 0.5
      %v999 = vrot.slane %v582, 1
      %v1000 = vrot.slane %v582, 2
      %v1001 = vrot.slane %v582, 3
      %v1002 = vrot.slane %v582, 4
      %v1003 = vrot.slane %v582, 5
      %v1004 = vrot.slane %v582, 6
      %v1005 = vrot.slane %v582, 7
      %v1013 = vmul.f32 %v918, %v582
      %v1014 = vmul.f32 %v919, %v999
      %v1015 = vmul.f32 %v920, %v1000
      %v1016 = vmul.f32 %v921, %v1001
      %v1017 = vmul.f32 %v922, %v1002
      %v1018 = vmul.f32 %v923, %v1003
      %v1019 = vmul.f32 %v924, %v1004
      %v1020 = vmul.f32 %v925, %v1005
      %v1021 = vmul.f32 %v862, %v942
      %v1022 = vmul.f32 %v863, %v943
      %v1023 = vmul.f32 %v864, %v944
      %v1024 = vmul.f32 %v865, %v945
      %v1025 = vmul.f32 %v866, %v946
      %v1026 = vmul.f32 %v867, %v947
      %v1027 = vmul.f32 %v868, %v948
      %v1028 = vmul.f32 %v869, %v949
      %v1029 = vadd.f32 %v1013, %v1021
      %v1030 = vadd.f32 %v1014, %v1022
      %v1031 = vadd.f32 %v1015, %v1023
      %v1032 = vadd.f32 %v1016, %v1024
      %v1033 = vadd.f32 %v1017, %v1025
      %v1034 = vadd.f32 %v1018, %v1026
      %v1035 = vadd.f32 %v1019, %v1027
      %v1036 = vadd.f32 %v1020, %v1028
      %v1037 = vtanh.pop %v1029
      %v1038 = vtanh.pop %v1030
      %v1039 = vtanh.pop %v1031
      %v1040 = vtanh.pop %v1032
      %v1041 = vtanh.pop %v1033
      %v1042 = vtanh.pop %v1034
      %v1043 = vtanh.pop %v1035
      %v1044 = vtanh.pop %v1036
      %v1045 = vmul.f32 %v990, %v1037
      %v1046 = vmul.f32 %v991, %v1038
      %v1047 = vmul.f32 %v992, %v1039
      %v1048 = vmul.f32 %v993, %v1040
      %v1049 = vmul.f32 %v994, %v1041
      %v1050 = vmul.f32 %v995, %v1042
      %v1051 = vmul.f32 %v996, %v1043
      %v1052 = vmul.f32 %v997, %v1044
      %s1053 = sadd.s32 %s53, 1
      %v1054 = vstv %s1053
      %vm1055 = vcmp.gt.s32.totalorder %v77, %v1054
      %v1056 = vsel %vm1055, 1, 0
      %1057 = vset.pattern.permute.xlu0 0
      %1058 = vperm.xlu0 %1057, %v1056
      %v1059 = vpop.permute.xlu0 %1058
      %vm1060 = vcmp.eq.s32.totalorder %v1059, 1
      %1069 = vst [vmem:[#allocation1] ss:$9 sm:$0xff] %v1045
      %s1070 = scalar_lea.vmem [#allocation1], 1
      %1071 = vst [vmem:[%s1070] ss:$9 sm:$0xff] %v1046
      %s1072 = scalar_lea.vmem [#allocation1], 2
      %1073 = vst [vmem:[%s1072] ss:$9 sm:$0xff] %v1047
      %s1074 = scalar_lea.vmem [#allocation1], 3
      %1075 = vst [vmem:[%s1074] ss:$9 sm:$0xff] %v1048
      %s1076 = scalar_lea.vmem [#allocation1], 4
      %1077 = vst [vmem:[%s1076] ss:$9 sm:$0xff] %v1049
      %s1078 = scalar_lea.vmem [#allocation1], 5
      %1079 = vst [vmem:[%s1078] ss:$9 sm:$0xff] %v1050
      %s1080 = scalar_lea.vmem [#allocation1], 6
      %1081 = vst [vmem:[%s1080] ss:$9 sm:$0xff] %v1051
      %s1082 = scalar_lea.vmem [#allocation1], 7
      %1083 = vst [vmem:[%s1082] ss:$9 sm:$0xff] %v1052
      %v1084 = vld [vmem:[#allocation1] sm:$0xff]
      %v1086 = vsel %vm1060, %v1084, %v556
      %1095 = vst [vmem:[#allocation1] ss:$9 sm:$0xff] %v1029
      %s1096 = scalar_lea.vmem [#allocation1], 1
      %1097 = vst [vmem:[%s1096] ss:$9 sm:$0xff] %v1030
      %s1098 = scalar_lea.vmem [#allocation1], 2
      %1099 = vst [vmem:[%s1098] ss:$9 sm:$0xff] %v1031
      %s1100 = scalar_lea.vmem [#allocation1], 3
      %1101 = vst [vmem:[%s1100] ss:$9 sm:$0xff] %v1032
      %s1102 = scalar_lea.vmem [#allocation1], 4
      %1103 = vst [vmem:[%s1102] ss:$9 sm:$0xff] %v1033
      %s1104 = scalar_lea.vmem [#allocation1], 5
      %1105 = vst [vmem:[%s1104] ss:$9 sm:$0xff] %v1034
      %s1106 = scalar_lea.vmem [#allocation1], 6
      %1107 = vst [vmem:[%s1106] ss:$9 sm:$0xff] %v1035
      %s1108 = scalar_lea.vmem [#allocation1], 7
      %1109 = vst [vmem:[%s1108] ss:$9 sm:$0xff] %v1036
      %v1110 = vld [vmem:[#allocation1] sm:$0xff]
      %v1112 = vsel %vm1060, %v1110, %v582
      %1113 = vst [vmem:[#allocation1] ss:$9 sm:$0xff] %v1045
      %s1114 = scalar_lea.vmem [#allocation1], 1
      %1115 = vst [vmem:[%s1114] ss:$9 sm:$0xff] %v1046
      %s1116 = scalar_lea.vmem [#allocation1], 2
      %1117 = vst [vmem:[%s1116] ss:$9 sm:$0xff] %v1047
      %s1118 = scalar_lea.vmem [#allocation1], 3
      %1119 = vst [vmem:[%s1118] ss:$9 sm:$0xff] %v1048
      %s1120 = scalar_lea.vmem [#allocation1], 4
      %1121 = vst [vmem:[%s1120] ss:$9 sm:$0xff] %v1049
      %s1122 = scalar_lea.vmem [#allocation1], 5
      %1123 = vst [vmem:[%s1122] ss:$9 sm:$0xff] %v1050
      %s1124 = scalar_lea.vmem [#allocation1], 6
      %1125 = vst [vmem:[%s1124] ss:$9 sm:$0xff] %v1051
      %s1126 = scalar_lea.vmem [#allocation1], 7
      %1127 = vst [vmem:[%s1126] ss:$9 sm:$0xff] %v1052
      %v1128 = vld [vmem:[#allocation1] sm:$0xff]
      %v1130 = vsel %vm1060, %v1128, 0.0
      %v1132 = vrot.slane %v1130, 1
      %v1133 = vrot.slane %v1130, 2
      %v1134 = vrot.slane %v1130, 3
      %v1135 = vrot.slane %v1130, 4
      %v1136 = vrot.slane %v1130, 5
      %v1137 = vrot.slane %v1130, 6
      %v1138 = vrot.slane %v1130, 7
      %1146 = vst [vmem:[#allocation9 + $0x1] sm:$0x1] %v1130
      %1147 = vst [vmem:[#allocation9 + $0x9] sm:$0x1] %v1132
      %1148 = vst [vmem:[#allocation9 + $0x11] sm:$0x1] %v1133
      %1149 = vst [vmem:[#allocation9 + $0x19] sm:$0x1] %v1134
      %1150 = vst [vmem:[#allocation9 + $0x21] sm:$0x1] %v1135
      %1151 = vst [vmem:[#allocation9 + $0x29] sm:$0x1] %v1136
      %1152 = vst [vmem:[#allocation9 + $0x31] sm:$0x1] %v1137
      %1153 = vst [vmem:[#allocation9 + $0x39] sm:$0x1] %v1138
      %s1154 = scalar_lea.vmem [#allocation4], 2
      %v1155 = vld [vmem:[%s1154] ss:$8 sm:$0xf]
      %s1156 = scalar_lea.vmem [#allocation4], 34
      %v1157 = vld [vmem:[%s1156] ss:$8 sm:$0xf]
      %s1158 = scalar_lea.vmem [#allocation4], 66
      %v1159 = vld [vmem:[%s1158] ss:$8 sm:$0xf]
      %s1160 = scalar_lea.vmem [#allocation4], 98
      %v1161 = vld [vmem:[%s1160] ss:$8 sm:$0xf]
      %s1162 = scalar_lea.vmem [#allocation4], 130
      %v1163 = vld [vmem:[%s1162] ss:$8 sm:$0xf]
      %s1164 = scalar_lea.vmem [#allocation4], 162
      %v1165 = vld [vmem:[%s1164] ss:$8 sm:$0xf]
      %s1166 = scalar_lea.vmem [#allocation4], 194
      %v1167 = vld [vmem:[%s1166] ss:$8 sm:$0xf]
      %s1168 = scalar_lea.vmem [#allocation4], 226
      %v1169 = vld [vmem:[%s1168] ss:$8 sm:$0xf]
      %v1170 = vld [vmem:[#allocation7] sm:$0xff]
      %v1171 = vld [vmem:[#allocation7 + $0x8] sm:$0xff]
      %v1172 = vld [vmem:[#allocation7 + $0x10] sm:$0xff]
      %v1173 = vld [vmem:[#allocation7 + $0x18] sm:$0xff]
      %v1174 = vld [vmem:[#allocation7 + $0x20] sm:$0xff]
      %v1175 = vld [vmem:[#allocation7 + $0x28] sm:$0xff]
      %v1176 = vld [vmem:[#allocation7 + $0x30] sm:$0xff]
      %v1177 = vld [vmem:[#allocation7 + $0x38] sm:$0xff]
      %v1178 = vld [vmem:[#allocation7 + $0x40] sm:$0xff]
      %v1179 = vld [vmem:[#allocation7 + $0x48] sm:$0xff]
      %v1180 = vld [vmem:[#allocation7 + $0x50] sm:$0xff]
      %v1181 = vld [vmem:[#allocation7 + $0x58] sm:$0xff]
      %v1182 = vld [vmem:[#allocation7 + $0x60] sm:$0xff]
      %v1183 = vld [vmem:[#allocation7 + $0x68] sm:$0xff]
      %v1184 = vld [vmem:[#allocation7 + $0x70] sm:$0xff]
      %v1185 = vld [vmem:[#allocation7 + $0x78] sm:$0xff]
      %v1186 = vld [vmem:[#allocation7 + $0x80] sm:$0xff]
      %v1187 = vld [vmem:[#allocation7 + $0x88] sm:$0xff]
      %v1188 = vld [vmem:[#allocation7 + $0x90] sm:$0xff]
      %v1189 = vld [vmem:[#allocation7 + $0x98] sm:$0xff]
      %v1190 = vld [vmem:[#allocation7 + $0xa0] sm:$0xff]
      %v1191 = vld [vmem:[#allocation7 + $0xa8] sm:$0xff]
      %v1192 = vld [vmem:[#allocation7 + $0xb0] sm:$0xff]
      %v1193 = vld [vmem:[#allocation7 + $0xb8] sm:$0xff]
      %v1194 = vld [vmem:[#allocation7 + $0xc0] sm:$0xff]
      %v1195 = vld [vmem:[#allocation7 + $0xc8] sm:$0xff]
      %v1196 = vld [vmem:[#allocation7 + $0xd0] sm:$0xff]
      %v1197 = vld [vmem:[#allocation7 + $0xd8] sm:$0xff]
      %v1198 = vld [vmem:[#allocation7 + $0xe0] sm:$0xff]
      %v1199 = vld [vmem:[#allocation7 + $0xe8] sm:$0xff]
      %v1200 = vld [vmem:[#allocation7 + $0xf0] sm:$0xff]
      %v1201 = vld [vmem:[#allocation7 + $0xf8] sm:$0xff]
      %v1202 = vld [vmem:[#allocation7 + $0x100] sm:$0xff]
      %v1203 = vld [vmem:[#allocation7 + $0x108] sm:$0xff]
      %v1204 = vld [vmem:[#allocation7 + $0x110] sm:$0xff]
      %v1205 = vld [vmem:[#allocation7 + $0x118] sm:$0xff]
      %v1206 = vld [vmem:[#allocation7 + $0x120] sm:$0xff]
      %v1207 = vld [vmem:[#allocation7 + $0x128] sm:$0xff]
      %v1208 = vld [vmem:[#allocation7 + $0x130] sm:$0xff]
      %v1209 = vld [vmem:[#allocation7 + $0x138] sm:$0xff]
      %v1210 = vld [vmem:[#allocation7 + $0x140] sm:$0xff]
      %v1211 = vld [vmem:[#allocation7 + $0x148] sm:$0xff]
      %v1212 = vld [vmem:[#allocation7 + $0x150] sm:$0xff]
      %v1213 = vld [vmem:[#allocation7 + $0x158] sm:$0xff]
      %v1214 = vld [vmem:[#allocation7 + $0x160] sm:$0xff]
      %v1215 = vld [vmem:[#allocation7 + $0x168] sm:$0xff]
      %v1216 = vld [vmem:[#allocation7 + $0x170] sm:$0xff]
      %v1217 = vld [vmem:[#allocation7 + $0x178] sm:$0xff]
      %v1218 = vld [vmem:[#allocation7 + $0x180] sm:$0xff]
      %v1219 = vld [vmem:[#allocation7 + $0x188] sm:$0xff]
      %v1220 = vld [vmem:[#allocation7 + $0x190] sm:$0xff]
      %v1221 = vld [vmem:[#allocation7 + $0x198] sm:$0xff]
      %v1222 = vld [vmem:[#allocation7 + $0x1a0] sm:$0xff]
      %v1223 = vld [vmem:[#allocation7 + $0x1a8] sm:$0xff]
      %v1224 = vld [vmem:[#allocation7 + $0x1b0] sm:$0xff]
      %v1225 = vld [vmem:[#allocation7 + $0x1b8] sm:$0xff]
      %v1226 = vld [vmem:[#allocation7 + $0x1c0] sm:$0xff]
      %v1227 = vld [vmem:[#allocation7 + $0x1c8] sm:$0xff]
      %v1228 = vld [vmem:[#allocation7 + $0x1d0] sm:$0xff]
      %v1229 = vld [vmem:[#allocation7 + $0x1d8] sm:$0xff]
      %v1230 = vld [vmem:[#allocation7 + $0x1e0] sm:$0xff]
      %v1231 = vld [vmem:[#allocation7 + $0x1e8] sm:$0xff]
      %v1232 = vld [vmem:[#allocation7 + $0x1f0] sm:$0xff]
      %v1233 = vld [vmem:[#allocation7 + $0x1f8] sm:$0xff]
      %1234 = vmatpush.msra.mxu0 %v1230
      %1235 = vmatpush.msra.mxu0 %v1226
      %1236 = vmatpush.msra.mxu0 %v1222
      %1237 = vmatpush.msra.mxu0 %v1218
      %1238 = vmatpush.msra.mxu0 %v1214
      %1239 = vmatpush.msra.mxu0 %v1210
      %1240 = vmatpush.msra.mxu0 %v1206
      %1241 = vmatpush.msra.mxu0 %v1202
      %1242 = vmatpush.msra.mxu0 %v1198
      %1243 = vmatpush.msra.mxu0 %v1194
      %1244 = vmatpush.msra.mxu0 %v1190
      %1245 = vmatpush.msra.mxu0 %v1186
      %1246 = vmatpush.msra.mxu0 %v1182
      %1247 = vmatpush.msra.mxu0 %v1178
      %1248 = vmatpush.msra.mxu0 %v1174
      %1249 = vmatpush.msra.mxu0 %v1170
      %1250 = vmatmul.f32.gmra.mxu0 %v1086
      %v1251 = vpop.f32.mrf.mxu0
      %v1252 = vadd.f32 0.0, %v1251
      %1253 = vdwg.mxu0
      %1254 = vmatpush.msra.mxu0 %v1231
      %1255 = vmatpush.msra.mxu0 %v1227
      %1256 = vmatpush.msra.mxu0 %v1223
      %1257 = vmatpush.msra.mxu0 %v1219
      %1258 = vmatpush.msra.mxu0 %v1215
      %1259 = vmatpush.msra.mxu0 %v1211
      %1260 = vmatpush.msra.mxu0 %v1207
      %1261 = vmatpush.msra.mxu0 %v1203
      %1262 = vmatpush.msra.mxu0 %v1199
      %1263 = vmatpush.msra.mxu0 %v1195
      %1264 = vmatpush.msra.mxu0 %v1191
      %1265 = vmatpush.msra.mxu0 %v1187
      %1266 = vmatpush.msra.mxu0 %v1183
      %1267 = vmatpush.msra.mxu0 %v1179
      %1268 = vmatpush.msra.mxu0 %v1175
      %1269 = vmatpush.msra.mxu0 %v1171
      %1270 = vmatmul.f32.gmra.mxu0 %v1086
      %v1271 = vpop.f32.mrf.mxu0
      %v1272 = vadd.f32 0.0, %v1271
      %1273 = vdwg.mxu0
      %1274 = vmatpush.msra.mxu0 %v1232
      %1275 = vmatpush.msra.mxu0 %v1228
      %1276 = vmatpush.msra.mxu0 %v1224
      %1277 = vmatpush.msra.mxu0 %v1220
      %1278 = vmatpush.msra.mxu0 %v1216
      %1279 = vmatpush.msra.mxu0 %v1212
      %1280 = vmatpush.msra.mxu0 %v1208
      %1281 = vmatpush.msra.mxu0 %v1204
      %1282 = vmatpush.msra.mxu0 %v1200
      %1283 = vmatpush.msra.mxu0 %v1196
      %1284 = vmatpush.msra.mxu0 %v1192
      %1285 = vmatpush.msra.mxu0 %v1188
      %1286 = vmatpush.msra.mxu0 %v1184
      %1287 = vmatpush.msra.mxu0 %v1180
      %1288 = vmatpush.msra.mxu0 %v1176
      %1289 = vmatpush.msra.mxu0 %v1172
      %1290 = vmatmul.f32.gmra.mxu0 %v1086
      %v1291 = vpop.f32.mrf.mxu0
      %v1292 = vadd.f32 0.0, %v1291
      %1293 = vdwg.mxu0
      %1294 = vmatpush.msra.mxu0 %v1233
      %1295 = vmatpush.msra.mxu0 %v1229
      %1296 = vmatpush.msra.mxu0 %v1225
      %1297 = vmatpush.msra.mxu0 %v1221
      %1298 = vmatpush.msra.mxu0 %v1217
      %1299 = vmatpush.msra.mxu0 %v1213
      %1300 = vmatpush.msra.mxu0 %v1209
      %1301 = vmatpush.msra.mxu0 %v1205
      %1302 = vmatpush.msra.mxu0 %v1201
      %1303 = vmatpush.msra.mxu0 %v1197
      %1304 = vmatpush.msra.mxu0 %v1193
      %1305 = vmatpush.msra.mxu0 %v1189
      %1306 = vmatpush.msra.mxu0 %v1185
      %1307 = vmatpush.msra.mxu0 %v1181
      %1308 = vmatpush.msra.mxu0 %v1177
      %1309 = vmatpush.msra.mxu0 %v1173
      %1310 = vmatmul.f32.gmra.mxu0 %v1086
      %v1311 = vpop.f32.mrf.mxu0
      %v1312 = vadd.f32 0.0, %v1311
      %1313 = vdwg.mxu0
      %v1318 = vrot.slane %v1272, 7
      %v1319 = vrot.slane %v1292, 6
      %v1320 = vrot.slane %v1312, 5
      %v1321 = vsel %vm246, %v1252, %v1318
      %v1322 = vsel %vm248, %v1319, %v1320
      %v1323 = vsel %vm250, %v1321, %v1322
      %v1324 = vsel %vm252, %v1252, %v1318
      %v1325 = vsel %vm254, %v1319, %v1320
      %v1326 = vsel %vm256, %v1324, %v1325
      %v1327 = vrot.slane %v1326, 1
      %v1328 = vsel %vm248, %v1252, %v1318
      %v1329 = vsel %vm260, %v1319, %v1320
      %v1330 = vsel %vm262, %v1328, %v1329
      %v1331 = vrot.slane %v1330, 2
      %v1332 = vsel %vm254, %v1252, %v1318
      %v1333 = vsel %vm266, %v1319, %v1320
      %v1334 = vsel %vm268, %v1332, %v1333
      %v1335 = vrot.slane %v1334, 3
      %v1336 = vsel %vm260, %v1252, %v1318
      %v1337 = vsel %vm272, %v1319, %v1320
      %v1338 = vsel %vm274, %v1336, %v1337
      %v1339 = vrot.slane %v1338, 4
      %v1340 = vsel %vm266, %v1252, %v1318
      %v1341 = vsel %vm278, %v1320, %v1319
      %v1342 = vsel %vm280, %v1340, %v1341
      %v1343 = vrot.slane %v1342, 5
      %v1344 = vsel %vm272, %v1252, %v1318
      %v1345 = vsel %vm246, %v1319, %v1320
      %v1346 = vsel %vm285, %v1345, %v1344
      %v1347 = vrot.slane %v1346, 6
      %v1348 = vsel %vm278, %v1318, %v1252
      %v1349 = vsel %vm252, %v1319, %v1320
      %v1350 = vsel %vm290, %v1349, %v1348
      %v1351 = vrot.slane %v1350, 7
      %v1360 = vadd.f32 %v1155, %v1323
      %v1361 = vadd.f32 %v1157, %v1327
      %v1362 = vadd.f32 %v1159, %v1331
      %v1363 = vadd.f32 %v1161, %v1335
      %v1364 = vadd.f32 %v1163, %v1339
      %v1365 = vadd.f32 %v1165, %v1343
      %v1366 = vadd.f32 %v1167, %v1347
      %v1367 = vadd.f32 %v1169, %v1351
      %v1368 = vmul.f32 %v1360, 0.5
      %v1369 = vmul.f32 %v1361, 0.5
      %v1370 = vmul.f32 %v1362, 0.5
      %v1371 = vmul.f32 %v1363, 0.5
      %v1372 = vmul.f32 %v1364, 0.5
      %v1373 = vmul.f32 %v1365, 0.5
      %v1374 = vmul.f32 %v1366, 0.5
      %v1375 = vmul.f32 %v1367, 0.5
      %v1376 = vtanh.pop %v1368
      %v1377 = vtanh.pop %v1369
      %v1378 = vtanh.pop %v1370
      %v1379 = vtanh.pop %v1371
      %v1380 = vtanh.pop %v1372
      %v1381 = vtanh.pop %v1373
      %v1382 = vtanh.pop %v1374
      %v1383 = vtanh.pop %v1375
      %v1384 = vmul.f32 %v1376, 0.5
      %v1385 = vmul.f32 %v1377, 0.5
      %v1386 = vmul.f32 %v1378, 0.5
      %v1387 = vmul.f32 %v1379, 0.5
      %v1388 = vmul.f32 %v1380, 0.5
      %v1389 = vmul.f32 %v1381, 0.5
      %v1390 = vmul.f32 %v1382, 0.5
      %v1391 = vmul.f32 %v1383, 0.5
      %v1392 = vadd.f32 %v1384, 0.5
      %v1393 = vadd.f32 %v1385, 0.5
      %v1394 = vadd.f32 %v1386, 0.5
      %v1395 = vadd.f32 %v1387, 0.5
      %v1396 = vadd.f32 %v1388, 0.5
      %v1397 = vadd.f32 %v1389, 0.5
      %v1398 = vadd.f32 %v1390, 0.5
      %v1399 = vadd.f32 %v1391, 0.5
      %v1408 = vrot.slane %v1360, 1
      %v1409 = vrot.slane %v1361, 1
      %v1410 = vrot.slane %v1362, 1
      %v1411 = vrot.slane %v1363, 1
      %v1412 = vrot.slane %v1364, 1
      %v1413 = vrot.slane %v1365, 1
      %v1414 = vrot.slane %v1366, 1
      %v1415 = vrot.slane %v1367, 1
      %v1424 = vmul.f32 %v1408, 0.5
      %v1425 = vmul.f32 %v1409, 0.5
      %v1426 = vmul.f32 %v1410, 0.5
      %v1427 = vmul.f32 %v1411, 0.5
      %v1428 = vmul.f32 %v1412, 0.5
      %v1429 = vmul.f32 %v1413, 0.5
      %v1430 = vmul.f32 %v1414, 0.5
      %v1431 = vmul.f32 %v1415, 0.5
      %v1432 = vtanh.pop %v1424
      %v1433 = vtanh.pop %v1425
      %v1434 = vtanh.pop %v1426
      %v1435 = vtanh.pop %v1427
      %v1436 = vtanh.pop %v1428
      %v1437 = vtanh.pop %v1429
      %v1438 = vtanh.pop %v1430
      %v1439 = vtanh.pop %v1431
      %v1440 = vmul.f32 %v1432, 0.5
      %v1441 = vmul.f32 %v1433, 0.5
      %v1442 = vmul.f32 %v1434, 0.5
      %v1443 = vmul.f32 %v1435, 0.5
      %v1444 = vmul.f32 %v1436, 0.5
      %v1445 = vmul.f32 %v1437, 0.5
      %v1446 = vmul.f32 %v1438, 0.5
      %v1447 = vmul.f32 %v1439, 0.5
      %v1448 = vadd.f32 %v1440, 0.5
      %v1449 = vadd.f32 %v1441, 0.5
      %v1450 = vadd.f32 %v1442, 0.5
      %v1451 = vadd.f32 %v1443, 0.5
      %v1452 = vadd.f32 %v1444, 0.5
      %v1453 = vadd.f32 %v1445, 0.5
      %v1454 = vadd.f32 %v1446, 0.5
      %v1455 = vadd.f32 %v1447, 0.5
      %v1456 = vrot.slane %v1360, 2
      %v1457 = vrot.slane %v1361, 2
      %v1458 = vrot.slane %v1362, 2
      %v1459 = vrot.slane %v1363, 2
      %v1460 = vrot.slane %v1364, 2
      %v1461 = vrot.slane %v1365, 2
      %v1462 = vrot.slane %v1366, 2
      %v1463 = vrot.slane %v1367, 2
      %v1472 = vtanh.pop %v1456
      %v1473 = vtanh.pop %v1457
      %v1474 = vtanh.pop %v1458
      %v1475 = vtanh.pop %v1459
      %v1476 = vtanh.pop %v1460
      %v1477 = vtanh.pop %v1461
      %v1478 = vtanh.pop %v1462
      %v1479 = vtanh.pop %v1463
      %v1480 = vrot.slane %v1360, 3
      %v1481 = vrot.slane %v1361, 3
      %v1482 = vrot.slane %v1362, 3
      %v1483 = vrot.slane %v1363, 3
      %v1484 = vrot.slane %v1364, 3
      %v1485 = vrot.slane %v1365, 3
      %v1486 = vrot.slane %v1366, 3
      %v1487 = vrot.slane %v1367, 3
      %v1496 = vmul.f32 %v1480, 0.5
      %v1497 = vmul.f32 %v1481, 0.5
      %v1498 = vmul.f32 %v1482, 0.5
      %v1499 = vmul.f32 %v1483, 0.5
      %v1500 = vmul.f32 %v1484, 0.5
      %v1501 = vmul.f32 %v1485, 0.5
      %v1502 = vmul.f32 %v1486, 0.5
      %v1503 = vmul.f32 %v1487, 0.5
      %v1504 = vtanh.pop %v1496
      %v1505 = vtanh.pop %v1497
      %v1506 = vtanh.pop %v1498
      %v1507 = vtanh.pop %v1499
      %v1508 = vtanh.pop %v1500
      %v1509 = vtanh.pop %v1501
      %v1510 = vtanh.pop %v1502
      %v1511 = vtanh.pop %v1503
      %v1512 = vmul.f32 %v1504, 0.5
      %v1513 = vmul.f32 %v1505, 0.5
      %v1514 = vmul.f32 %v1506, 0.5
      %v1515 = vmul.f32 %v1507, 0.5
      %v1516 = vmul.f32 %v1508, 0.5
      %v1517 = vmul.f32 %v1509, 0.5
      %v1518 = vmul.f32 %v1510, 0.5
      %v1519 = vmul.f32 %v1511, 0.5
      %v1520 = vadd.f32 %v1512, 0.5
      %v1521 = vadd.f32 %v1513, 0.5
      %v1522 = vadd.f32 %v1514, 0.5
      %v1523 = vadd.f32 %v1515, 0.5
      %v1524 = vadd.f32 %v1516, 0.5
      %v1525 = vadd.f32 %v1517, 0.5
      %v1526 = vadd.f32 %v1518, 0.5
      %v1527 = vadd.f32 %v1519, 0.5
      %v1529 = vrot.slane %v1112, 1
      %v1530 = vrot.slane %v1112, 2
      %v1531 = vrot.slane %v1112, 3
      %v1532 = vrot.slane %v1112, 4
      %v1533 = vrot.slane %v1112, 5
      %v1534 = vrot.slane %v1112, 6
      %v1535 = vrot.slane %v1112, 7
      %v1543 = vmul.f32 %v1448, %v1112
      %v1544 = vmul.f32 %v1449, %v1529
      %v1545 = vmul.f32 %v1450, %v1530
      %v1546 = vmul.f32 %v1451, %v1531
      %v1547 = vmul.f32 %v1452, %v1532
      %v1548 = vmul.f32 %v1453, %v1533
      %v1549 = vmul.f32 %v1454, %v1534
      %v1550 = vmul.f32 %v1455, %v1535
      %v1551 = vmul.f32 %v1392, %v1472
      %v1552 = vmul.f32 %v1393, %v1473
      %v1553 = vmul.f32 %v1394, %v1474
      %v1554 = vmul.f32 %v1395, %v1475
      %v1555 = vmul.f32 %v1396, %v1476
      %v1556 = vmul.f32 %v1397, %v1477
      %v1557 = vmul.f32 %v1398, %v1478
      %v1558 = vmul.f32 %v1399, %v1479
      %v1559 = vadd.f32 %v1543, %v1551
      %v1560 = vadd.f32 %v1544, %v1552
      %v1561 = vadd.f32 %v1545, %v1553
      %v1562 = vadd.f32 %v1546, %v1554
      %v1563 = vadd.f32 %v1547, %v1555
      %v1564 = vadd.f32 %v1548, %v1556
      %v1565 = vadd.f32 %v1549, %v1557
      %v1566 = vadd.f32 %v1550, %v1558
      %v1567 = vtanh.pop %v1559
      %v1568 = vtanh.pop %v1560
      %v1569 = vtanh.pop %v1561
      %v1570 = vtanh.pop %v1562
      %v1571 = vtanh.pop %v1563
      %v1572 = vtanh.pop %v1564
      %v1573 = vtanh.pop %v1565
      %v1574 = vtanh.pop %v1566
      %v1575 = vmul.f32 %v1520, %v1567
      %v1576 = vmul.f32 %v1521, %v1568
      %v1577 = vmul.f32 %v1522, %v1569
      %v1578 = vmul.f32 %v1523, %v1570
      %v1579 = vmul.f32 %v1524, %v1571
      %v1580 = vmul.f32 %v1525, %v1572
      %v1581 = vmul.f32 %v1526, %v1573
      %v1582 = vmul.f32 %v1527, %v1574
      %s1583 = sadd.s32 %s53, 2
      %v1584 = vstv %s1583
      %vm1585 = vcmp.gt.s32.totalorder %v77, %v1584
      %v1586 = vsel %vm1585, 1, 0
      %1587 = vset.pattern.permute.xlu0 0
      %1588 = vperm.xlu0 %1587, %v1586
      %v1589 = vpop.permute.xlu0 %1588
      %vm1590 = vcmp.eq.s32.totalorder %v1589, 1
      %1599 = vst [vmem:[#allocation1] ss:$9 sm:$0xff] %v1575
      %s1600 = scalar_lea.vmem [#allocation1], 1
      %1601 = vst [vmem:[%s1600] ss:$9 sm:$0xff] %v1576
      %s1602 = scalar_lea.vmem [#allocation1], 2
      %1603 = vst [vmem:[%s1602] ss:$9 sm:$0xff] %v1577
      %s1604 = scalar_lea.vmem [#allocation1], 3
      %1605 = vst [vmem:[%s1604] ss:$9 sm:$0xff] %v1578
      %s1606 = scalar_lea.vmem [#allocation1], 4
      %1607 = vst [vmem:[%s1606] ss:$9 sm:$0xff] %v1579
      %s1608 = scalar_lea.vmem [#allocation1], 5
      %1609 = vst [vmem:[%s1608] ss:$9 sm:$0xff] %v1580
      %s1610 = scalar_lea.vmem [#allocation1], 6
      %1611 = vst [vmem:[%s1610] ss:$9 sm:$0xff] %v1581
      %s1612 = scalar_lea.vmem [#allocation1], 7
      %1613 = vst [vmem:[%s1612] ss:$9 sm:$0xff] %v1582
      %v1614 = vld [vmem:[#allocation1] sm:$0xff]
      %v1616 = vsel %vm1590, %v1614, %v1086
      %1625 = vst [vmem:[#allocation1] ss:$9 sm:$0xff] %v1559
      %s1626 = scalar_lea.vmem [#allocation1], 1
      %1627 = vst [vmem:[%s1626] ss:$9 sm:$0xff] %v1560
      %s1628 = scalar_lea.vmem [#allocation1], 2
      %1629 = vst [vmem:[%s1628] ss:$9 sm:$0xff] %v1561
      %s1630 = scalar_lea.vmem [#allocation1], 3
      %1631 = vst [vmem:[%s1630] ss:$9 sm:$0xff] %v1562
      %s1632 = scalar_lea.vmem [#allocation1], 4
      %1633 = vst [vmem:[%s1632] ss:$9 sm:$0xff] %v1563
      %s1634 = scalar_lea.vmem [#allocation1], 5
      %1635 = vst [vmem:[%s1634] ss:$9 sm:$0xff] %v1564
      %s1636 = scalar_lea.vmem [#allocation1], 6
      %1637 = vst [vmem:[%s1636] ss:$9 sm:$0xff] %v1565
      %s1638 = scalar_lea.vmem [#allocation1], 7
      %1639 = vst [vmem:[%s1638] ss:$9 sm:$0xff] %v1566
      %v1640 = vld [vmem:[#allocation1] sm:$0xff]
      %v1642 = vsel %vm1590, %v1640, %v1112
      %1643 = vst [vmem:[#allocation1] ss:$9 sm:$0xff] %v1575
      %s1644 = scalar_lea.vmem [#allocation1], 1
      %1645 = vst [vmem:[%s1644] ss:$9 sm:$0xff] %v1576
      %s1646 = scalar_lea.vmem [#allocation1], 2
      %1647 = vst [vmem:[%s1646] ss:$9 sm:$0xff] %v1577
      %s1648 = scalar_lea.vmem [#allocation1], 3
      %1649 = vst [vmem:[%s1648] ss:$9 sm:$0xff] %v1578
      %s1650 = scalar_lea.vmem [#allocation1], 4
      %1651 = vst [vmem:[%s1650] ss:$9 sm:$0xff] %v1579
      %s1652 = scalar_lea.vmem [#allocation1], 5
      %1653 = vst [vmem:[%s1652] ss:$9 sm:$0xff] %v1580
      %s1654 = scalar_lea.vmem [#allocation1], 6
      %1655 = vst [vmem:[%s1654] ss:$9 sm:$0xff] %v1581
      %s1656 = scalar_lea.vmem [#allocation1], 7
      %1657 = vst [vmem:[%s1656] ss:$9 sm:$0xff] %v1582
      %v1658 = vld [vmem:[#allocation1] sm:$0xff]
      %v1660 = vsel %vm1590, %v1658, 0.0
      %v1662 = vrot.slane %v1660, 1
      %v1663 = vrot.slane %v1660, 2
      %v1664 = vrot.slane %v1660, 3
      %v1665 = vrot.slane %v1660, 4
      %v1666 = vrot.slane %v1660, 5
      %v1667 = vrot.slane %v1660, 6
      %v1668 = vrot.slane %v1660, 7
      %1676 = vst [vmem:[#allocation9 + $0x2] sm:$0x1] %v1660
      %1677 = vst [vmem:[#allocation9 + $0xa] sm:$0x1] %v1662
      %1678 = vst [vmem:[#allocation9 + $0x12] sm:$0x1] %v1663
      %1679 = vst [vmem:[#allocation9 + $0x1a] sm:$0x1] %v1664
      %1680 = vst [vmem:[#allocation9 + $0x22] sm:$0x1] %v1665
      %1681 = vst [vmem:[#allocation9 + $0x2a] sm:$0x1] %v1666
      %1682 = vst [vmem:[#allocation9 + $0x32] sm:$0x1] %v1667
      %1683 = vst [vmem:[#allocation9 + $0x3a] sm:$0x1] %v1668
      %s1684 = scalar_lea.vmem [#allocation4], 3
      %v1685 = vld [vmem:[%s1684] ss:$8 sm:$0xf]
      %s1686 = scalar_lea.vmem [#allocation4], 35
      %v1687 = vld [vmem:[%s1686] ss:$8 sm:$0xf]
      %s1688 = scalar_lea.vmem [#allocation4], 67
      %v1689 = vld [vmem:[%s1688] ss:$8 sm:$0xf]
      %s1690 = scalar_lea.vmem [#allocation4], 99
      %v1691 = vld [vmem:[%s1690] ss:$8 sm:$0xf]
      %s1692 = scalar_lea.vmem [#allocation4], 131
      %v1693 = vld [vmem:[%s1692] ss:$8 sm:$0xf]
      %s1694 = scalar_lea.vmem [#allocation4], 163
      %v1695 = vld [vmem:[%s1694] ss:$8 sm:$0xf]
      %s1696 = scalar_lea.vmem [#allocation4], 195
      %v1697 = vld [vmem:[%s1696] ss:$8 sm:$0xf]
      %s1698 = scalar_lea.vmem [#allocation4], 227
      %v1699 = vld [vmem:[%s1698] ss:$8 sm:$0xf]
      %v1700 = vld [vmem:[#allocation7] sm:$0xff]
      %v1701 = vld [vmem:[#allocation7 + $0x8] sm:$0xff]
      %v1702 = vld [vmem:[#allocation7 + $0x10] sm:$0xff]
      %v1703 = vld [vmem:[#allocation7 + $0x18] sm:$0xff]
      %v1704 = vld [vmem:[#allocation7 + $0x20] sm:$0xff]
      %v1705 = vld [vmem:[#allocation7 + $0x28] sm:$0xff]
      %v1706 = vld [vmem:[#allocation7 + $0x30] sm:$0xff]
      %v1707 = vld [vmem:[#allocation7 + $0x38] sm:$0xff]
      %v1708 = vld [vmem:[#allocation7 + $0x40] sm:$0xff]
      %v1709 = vld [vmem:[#allocation7 + $0x48] sm:$0xff]
      %v1710 = vld [vmem:[#allocation7 + $0x50] sm:$0xff]
      %v1711 = vld [vmem:[#allocation7 + $0x58] sm:$0xff]
      %v1712 = vld [vmem:[#allocation7 + $0x60] sm:$0xff]
      %v1713 = vld [vmem:[#allocation7 + $0x68] sm:$0xff]
      %v1714 = vld [vmem:[#allocation7 + $0x70] sm:$0xff]
      %v1715 = vld [vmem:[#allocation7 + $0x78] sm:$0xff]
      %v1716 = vld [vmem:[#allocation7 + $0x80] sm:$0xff]
      %v1717 = vld [vmem:[#allocation7 + $0x88] sm:$0xff]
      %v1718 = vld [vmem:[#allocation7 + $0x90] sm:$0xff]
      %v1719 = vld [vmem:[#allocation7 + $0x98] sm:$0xff]
      %v1720 = vld [vmem:[#allocation7 + $0xa0] sm:$0xff]
      %v1721 = vld [vmem:[#allocation7 + $0xa8] sm:$0xff]
      %v1722 = vld [vmem:[#allocation7 + $0xb0] sm:$0xff]
      %v1723 = vld [vmem:[#allocation7 + $0xb8] sm:$0xff]
      %v1724 = vld [vmem:[#allocation7 + $0xc0] sm:$0xff]
      %v1725 = vld [vmem:[#allocation7 + $0xc8] sm:$0xff]
      %v1726 = vld [vmem:[#allocation7 + $0xd0] sm:$0xff]
      %v1727 = vld [vmem:[#allocation7 + $0xd8] sm:$0xff]
      %v1728 = vld [vmem:[#allocation7 + $0xe0] sm:$0xff]
      %v1729 = vld [vmem:[#allocation7 + $0xe8] sm:$0xff]
      %v1730 = vld [vmem:[#allocation7 + $0xf0] sm:$0xff]
      %v1731 = vld [vmem:[#allocation7 + $0xf8] sm:$0xff]
      %v1732 = vld [vmem:[#allocation7 + $0x100] sm:$0xff]
      %v1733 = vld [vmem:[#allocation7 + $0x108] sm:$0xff]
      %v1734 = vld [vmem:[#allocation7 + $0x110] sm:$0xff]
      %v1735 = vld [vmem:[#allocation7 + $0x118] sm:$0xff]
      %v1736 = vld [vmem:[#allocation7 + $0x120] sm:$0xff]
      %v1737 = vld [vmem:[#allocation7 + $0x128] sm:$0xff]
      %v1738 = vld [vmem:[#allocation7 + $0x130] sm:$0xff]
      %v1739 = vld [vmem:[#allocation7 + $0x138] sm:$0xff]
      %v1740 = vld [vmem:[#allocation7 + $0x140] sm:$0xff]
      %v1741 = vld [vmem:[#allocation7 + $0x148] sm:$0xff]
      %v1742 = vld [vmem:[#allocation7 + $0x150] sm:$0xff]
      %v1743 = vld [vmem:[#allocation7 + $0x158] sm:$0xff]
      %v1744 = vld [vmem:[#allocation7 + $0x160] sm:$0xff]
      %v1745 = vld [vmem:[#allocation7 + $0x168] sm:$0xff]
      %v1746 = vld [vmem:[#allocation7 + $0x170] sm:$0xff]
      %v1747 = vld [vmem:[#allocation7 + $0x178] sm:$0xff]
      %v1748 = vld [vmem:[#allocation7 + $0x180] sm:$0xff]
      %v1749 = vld [vmem:[#allocation7 + $0x188] sm:$0xff]
      %v1750 = vld [vmem:[#allocation7 + $0x190] sm:$0xff]
      %v1751 = vld [vmem:[#allocation7 + $0x198] sm:$0xff]
      %v1752 = vld [vmem:[#allocation7 + $0x1a0] sm:$0xff]
      %v1753 = vld [vmem:[#allocation7 + $0x1a8] sm:$0xff]
      %v1754 = vld [vmem:[#allocation7 + $0x1b0] sm:$0xff]
      %v1755 = vld [vmem:[#allocation7 + $0x1b8] sm:$0xff]
      %v1756 = vld [vmem:[#allocation7 + $0x1c0] sm:$0xff]
      %v1757 = vld [vmem:[#allocation7 + $0x1c8] sm:$0xff]
      %v1758 = vld [vmem:[#allocation7 + $0x1d0] sm:$0xff]
      %v1759 = vld [vmem:[#allocation7 + $0x1d8] sm:$0xff]
      %v1760 = vld [vmem:[#allocation7 + $0x1e0] sm:$0xff]
      %v1761 = vld [vmem:[#allocation7 + $0x1e8] sm:$0xff]
      %v1762 = vld [vmem:[#allocation7 + $0x1f0] sm:$0xff]
      %v1763 = vld [vmem:[#allocation7 + $0x1f8] sm:$0xff]
      %1764 = vmatpush.msra.mxu0 %v1760
      %1765 = vmatpush.msra.mxu0 %v1756
      %1766 = vmatpush.msra.mxu0 %v1752
      %1767 = vmatpush.msra.mxu0 %v1748
      %1768 = vmatpush.msra.mxu0 %v1744
      %1769 = vmatpush.msra.mxu0 %v1740
      %1770 = vmatpush.msra.mxu0 %v1736
      %1771 = vmatpush.msra.mxu0 %v1732
      %1772 = vmatpush.msra.mxu0 %v1728
      %1773 = vmatpush.msra.mxu0 %v1724
      %1774 = vmatpush.msra.mxu0 %v1720
      %1775 = vmatpush.msra.mxu0 %v1716
      %1776 = vmatpush.msra.mxu0 %v1712
      %1777 = vmatpush.msra.mxu0 %v1708
      %1778 = vmatpush.msra.mxu0 %v1704
      %1779 = vmatpush.msra.mxu0 %v1700
      %1780 = vmatmul.f32.gmra.mxu0 %v1616
      %v1781 = vpop.f32.mrf.mxu0
      %v1782 = vadd.f32 0.0, %v1781
      %1783 = vdwg.mxu0
      %1784 = vmatpush.msra.mxu0 %v1761
      %1785 = vmatpush.msra.mxu0 %v1757
      %1786 = vmatpush.msra.mxu0 %v1753
      %1787 = vmatpush.msra.mxu0 %v1749
      %1788 = vmatpush.msra.mxu0 %v1745
      %1789 = vmatpush.msra.mxu0 %v1741
      %1790 = vmatpush.msra.mxu0 %v1737
      %1791 = vmatpush.msra.mxu0 %v1733
      %1792 = vmatpush.msra.mxu0 %v1729
      %1793 = vmatpush.msra.mxu0 %v1725
      %1794 = vmatpush.msra.mxu0 %v1721
      %1795 = vmatpush.msra.mxu0 %v1717
      %1796 = vmatpush.msra.mxu0 %v1713
      %1797 = vmatpush.msra.mxu0 %v1709
      %1798 = vmatpush.msra.mxu0 %v1705
      %1799 = vmatpush.msra.mxu0 %v1701
      %1800 = vmatmul.f32.gmra.mxu0 %v1616
      %v1801 = vpop.f32.mrf.mxu0
      %v1802 = vadd.f32 0.0, %v1801
      %1803 = vdwg.mxu0
      %1804 = vmatpush.msra.mxu0 %v1762
      %1805 = vmatpush.msra.mxu0 %v1758
      %1806 = vmatpush.msra.mxu0 %v1754
      %1807 = vmatpush.msra.mxu0 %v1750
      %1808 = vmatpush.msra.mxu0 %v1746
      %1809 = vmatpush.msra.mxu0 %v1742
      %1810 = vmatpush.msra.mxu0 %v1738
      %1811 = vmatpush.msra.mxu0 %v1734
      %1812 = vmatpush.msra.mxu0 %v1730
      %1813 = vmatpush.msra.mxu0 %v1726
      %1814 = vmatpush.msra.mxu0 %v1722
      %1815 = vmatpush.msra.mxu0 %v1718
      %1816 = vmatpush.msra.mxu0 %v1714
      %1817 = vmatpush.msra.mxu0 %v1710
      %1818 = vmatpush.msra.mxu0 %v1706
      %1819 = vmatpush.msra.mxu0 %v1702
      %1820 = vmatmul.f32.gmra.mxu0 %v1616
      %v1821 = vpop.f32.mrf.mxu0
      %v1822 = vadd.f32 0.0, %v1821
      %1823 = vdwg.mxu0
      %1824 = vmatpush.msra.mxu0 %v1763
      %1825 = vmatpush.msra.mxu0 %v1759
      %1826 = vmatpush.msra.mxu0 %v1755
      %1827 = vmatpush.msra.mxu0 %v1751
      %1828 = vmatpush.msra.mxu0 %v1747
      %1829 = vmatpush.msra.mxu0 %v1743
      %1830 = vmatpush.msra.mxu0 %v1739
      %1831 = vmatpush.msra.mxu0 %v1735
      %1832 = vmatpush.msra.mxu0 %v1731
      %1833 = vmatpush.msra.mxu0 %v1727
      %1834 = vmatpush.msra.mxu0 %v1723
      %1835 = vmatpush.msra.mxu0 %v1719
      %1836 = vmatpush.msra.mxu0 %v1715
      %1837 = vmatpush.msra.mxu0 %v1711
      %1838 = vmatpush.msra.mxu0 %v1707
      %1839 = vmatpush.msra.mxu0 %v1703
      %1840 = vmatmul.f32.gmra.mxu0 %v1616
      %v1841 = vpop.f32.mrf.mxu0
      %v1842 = vadd.f32 0.0, %v1841
      %1843 = vdwg.mxu0
      %v1848 = vrot.slane %v1802, 7
      %v1849 = vrot.slane %v1822, 6
      %v1850 = vrot.slane %v1842, 5
      %v1851 = vsel %vm246, %v1782, %v1848
      %v1852 = vsel %vm248, %v1849, %v1850
      %v1853 = vsel %vm250, %v1851, %v1852
      %v1854 = vsel %vm252, %v1782, %v1848
      %v1855 = vsel %vm254, %v1849, %v1850
      %v1856 = vsel %vm256, %v1854, %v1855
      %v1857 = vrot.slane %v1856, 1
      %v1858 = vsel %vm248, %v1782, %v1848
      %v1859 = vsel %vm260, %v1849, %v1850
      %v1860 = vsel %vm262, %v1858, %v1859
      %v1861 = vrot.slane %v1860, 2
      %v1862 = vsel %vm254, %v1782, %v1848
      %v1863 = vsel %vm266, %v1849, %v1850
      %v1864 = vsel %vm268, %v1862, %v1863
      %v1865 = vrot.slane %v1864, 3
      %v1866 = vsel %vm260, %v1782, %v1848
      %v1867 = vsel %vm272, %v1849, %v1850
      %v1868 = vsel %vm274, %v1866, %v1867
      %v1869 = vrot.slane %v1868, 4
      %v1870 = vsel %vm266, %v1782, %v1848
      %v1871 = vsel %vm278, %v1850, %v1849
      %v1872 = vsel %vm280, %v1870, %v1871
      %v1873 = vrot.slane %v1872, 5
      %v1874 = vsel %vm272, %v1782, %v1848
      %v1875 = vsel %vm246, %v1849, %v1850
      %v1876 = vsel %vm285, %v1875, %v1874
      %v1877 = vrot.slane %v1876, 6
      %v1878 = vsel %vm278, %v1848, %v1782
      %v1879 = vsel %vm252, %v1849, %v1850
      %v1880 = vsel %vm290, %v1879, %v1878
      %v1881 = vrot.slane %v1880, 7
      %v1890 = vadd.f32 %v1685, %v1853
      %v1891 = vadd.f32 %v1687, %v1857
      %v1892 = vadd.f32 %v1689, %v1861
      %v1893 = vadd.f32 %v1691, %v1865
      %v1894 = vadd.f32 %v1693, %v1869
      %v1895 = vadd.f32 %v1695, %v1873
      %v1896 = vadd.f32 %v1697, %v1877
      %v1897 = vadd.f32 %v1699, %v1881
      %v1898 = vmul.f32 %v1890, 0.5
      %v1899 = vmul.f32 %v1891, 0.5
      %v1900 = vmul.f32 %v1892, 0.5
      %v1901 = vmul.f32 %v1893, 0.5
      %v1902 = vmul.f32 %v1894, 0.5
      %v1903 = vmul.f32 %v1895, 0.5
      %v1904 = vmul.f32 %v1896, 0.5
      %v1905 = vmul.f32 %v1897, 0.5
      %v1906 = vtanh.pop %v1898
      %v1907 = vtanh.pop %v1899
      %v1908 = vtanh.pop %v1900
      %v1909 = vtanh.pop %v1901
      %v1910 = vtanh.pop %v1902
      %v1911 = vtanh.pop %v1903
      %v1912 = vtanh.pop %v1904
      %v1913 = vtanh.pop %v1905
      %v1914 = vmul.f32 %v1906, 0.5
      %v1915 = vmul.f32 %v1907, 0.5
      %v1916 = vmul.f32 %v1908, 0.5
      %v1917 = vmul.f32 %v1909, 0.5
      %v1918 = vmul.f32 %v1910, 0.5
      %v1919 = vmul.f32 %v1911, 0.5
      %v1920 = vmul.f32 %v1912, 0.5
      %v1921 = vmul.f32 %v1913, 0.5
      %v1922 = vadd.f32 %v1914, 0.5
      %v1923 = vadd.f32 %v1915, 0.5
      %v1924 = vadd.f32 %v1916, 0.5
      %v1925 = vadd.f32 %v1917, 0.5
      %v1926 = vadd.f32 %v1918, 0.5
      %v1927 = vadd.f32 %v1919, 0.5
      %v1928 = vadd.f32 %v1920, 0.5
      %v1929 = vadd.f32 %v1921, 0.5
      %v1938 = vrot.slane %v1890, 1
      %v1939 = vrot.slane %v1891, 1
      %v1940 = vrot.slane %v1892, 1
      %v1941 = vrot.slane %v1893, 1
      %v1942 = vrot.slane %v1894, 1
      %v1943 = vrot.slane %v1895, 1
      %v1944 = vrot.slane %v1896, 1
      %v1945 = vrot.slane %v1897, 1
      %v1954 = vmul.f32 %v1938, 0.5
      %v1955 = vmul.f32 %v1939, 0.5
      %v1956 = vmul.f32 %v1940, 0.5
      %v1957 = vmul.f32 %v1941, 0.5
      %v1958 = vmul.f32 %v1942, 0.5
      %v1959 = vmul.f32 %v1943, 0.5
      %v1960 = vmul.f32 %v1944, 0.5
      %v1961 = vmul.f32 %v1945, 0.5
      %v1962 = vtanh.pop %v1954
      %v1963 = vtanh.pop %v1955
      %v1964 = vtanh.pop %v1956
      %v1965 = vtanh.pop %v1957
      %v1966 = vtanh.pop %v1958
      %v1967 = vtanh.pop %v1959
      %v1968 = vtanh.pop %v1960
      %v1969 = vtanh.pop %v1961
      %v1970 = vmul.f32 %v1962, 0.5
      %v1971 = vmul.f32 %v1963, 0.5
      %v1972 = vmul.f32 %v1964, 0.5
      %v1973 = vmul.f32 %v1965, 0.5
      %v1974 = vmul.f32 %v1966, 0.5
      %v1975 = vmul.f32 %v1967, 0.5
      %v1976 = vmul.f32 %v1968, 0.5
      %v1977 = vmul.f32 %v1969, 0.5
      %v1978 = vadd.f32 %v1970, 0.5
      %v1979 = vadd.f32 %v1971, 0.5
      %v1980 = vadd.f32 %v1972, 0.5
      %v1981 = vadd.f32 %v1973, 0.5
      %v1982 = vadd.f32 %v1974, 0.5
      %v1983 = vadd.f32 %v1975, 0.5
      %v1984 = vadd.f32 %v1976, 0.5
      %v1985 = vadd.f32 %v1977, 0.5
      %v1986 = vrot.slane %v1890, 2
      %v1987 = vrot.slane %v1891, 2
      %v1988 = vrot.slane %v1892, 2
      %v1989 = vrot.slane %v1893, 2
      %v1990 = vrot.slane %v1894, 2
      %v1991 = vrot.slane %v1895, 2
      %v1992 = vrot.slane %v1896, 2
      %v1993 = vrot.slane %v1897, 2
      %v2002 = vtanh.pop %v1986
      %v2003 = vtanh.pop %v1987
      %v2004 = vtanh.pop %v1988
      %v2005 = vtanh.pop %v1989
      %v2006 = vtanh.pop %v1990
      %v2007 = vtanh.pop %v1991
      %v2008 = vtanh.pop %v1992
      %v2009 = vtanh.pop %v1993
      %v2010 = vrot.slane %v1890, 3
      %v2011 = vrot.slane %v1891, 3
      %v2012 = vrot.slane %v1892, 3
      %v2013 = vrot.slane %v1893, 3
      %v2014 = vrot.slane %v1894, 3
      %v2015 = vrot.slane %v1895, 3
      %v2016 = vrot.slane %v1896, 3
      %v2017 = vrot.slane %v1897, 3
      %v2026 = vmul.f32 %v2010, 0.5
      %v2027 = vmul.f32 %v2011, 0.5
      %v2028 = vmul.f32 %v2012, 0.5
      %v2029 = vmul.f32 %v2013, 0.5
      %v2030 = vmul.f32 %v2014, 0.5
      %v2031 = vmul.f32 %v2015, 0.5
      %v2032 = vmul.f32 %v2016, 0.5
      %v2033 = vmul.f32 %v2017, 0.5
      %v2034 = vtanh.pop %v2026
      %v2035 = vtanh.pop %v2027
      %v2036 = vtanh.pop %v2028
      %v2037 = vtanh.pop %v2029
      %v2038 = vtanh.pop %v2030
      %v2039 = vtanh.pop %v2031
      %v2040 = vtanh.pop %v2032
      %v2041 = vtanh.pop %v2033
      %v2042 = vmul.f32 %v2034, 0.5
      %v2043 = vmul.f32 %v2035, 0.5
      %v2044 = vmul.f32 %v2036, 0.5
      %v2045 = vmul.f32 %v2037, 0.5
      %v2046 = vmul.f32 %v2038, 0.5
      %v2047 = vmul.f32 %v2039, 0.5
      %v2048 = vmul.f32 %v2040, 0.5
      %v2049 = vmul.f32 %v2041, 0.5
      %v2050 = vadd.f32 %v2042, 0.5
      %v2051 = vadd.f32 %v2043, 0.5
      %v2052 = vadd.f32 %v2044, 0.5
      %v2053 = vadd.f32 %v2045, 0.5
      %v2054 = vadd.f32 %v2046, 0.5
      %v2055 = vadd.f32 %v2047, 0.5
      %v2056 = vadd.f32 %v2048, 0.5
      %v2057 = vadd.f32 %v2049, 0.5
      %v2059 = vrot.slane %v1642, 1
      %v2060 = vrot.slane %v1642, 2
      %v2061 = vrot.slane %v1642, 3
      %v2062 = vrot.slane %v1642, 4
      %v2063 = vrot.slane %v1642, 5
      %v2064 = vrot.slane %v1642, 6
      %v2065 = vrot.slane %v1642, 7
      %v2073 = vmul.f32 %v1978, %v1642
      %v2074 = vmul.f32 %v1979, %v2059
      %v2075 = vmul.f32 %v1980, %v2060
      %v2076 = vmul.f32 %v1981, %v2061
      %v2077 = vmul.f32 %v1982, %v2062
      %v2078 = vmul.f32 %v1983, %v2063
      %v2079 = vmul.f32 %v1984, %v2064
      %v2080 = vmul.f32 %v1985, %v2065
      %v2081 = vmul.f32 %v1922, %v2002
      %v2082 = vmul.f32 %v1923, %v2003
      %v2083 = vmul.f32 %v1924, %v2004
      %v2084 = vmul.f32 %v1925, %v2005
      %v2085 = vmul.f32 %v1926, %v2006
      %v2086 = vmul.f32 %v1927, %v2007
      %v2087 = vmul.f32 %v1928, %v2008
      %v2088 = vmul.f32 %v1929, %v2009
      %v2089 = vadd.f32 %v2073, %v2081
      %v2090 = vadd.f32 %v2074, %v2082
      %v2091 = vadd.f32 %v2075, %v2083
      %v2092 = vadd.f32 %v2076, %v2084
      %v2093 = vadd.f32 %v2077, %v2085
      %v2094 = vadd.f32 %v2078, %v2086
      %v2095 = vadd.f32 %v2079, %v2087
      %v2096 = vadd.f32 %v2080, %v2088
      %v2097 = vtanh.pop %v2089
      %v2098 = vtanh.pop %v2090
      %v2099 = vtanh.pop %v2091
      %v2100 = vtanh.pop %v2092
      %v2101 = vtanh.pop %v2093
      %v2102 = vtanh.pop %v2094
      %v2103 = vtanh.pop %v2095
      %v2104 = vtanh.pop %v2096
      %v2105 = vmul.f32 %v2050, %v2097
      %v2106 = vmul.f32 %v2051, %v2098
      %v2107 = vmul.f32 %v2052, %v2099
      %v2108 = vmul.f32 %v2053, %v2100
      %v2109 = vmul.f32 %v2054, %v2101
      %v2110 = vmul.f32 %v2055, %v2102
      %v2111 = vmul.f32 %v2056, %v2103
      %v2112 = vmul.f32 %v2057, %v2104
      %s2113 = sadd.s32 %s53, 3
      %v2114 = vstv %s2113
      %vm2115 = vcmp.gt.s32.totalorder %v77, %v2114
      %v2116 = vsel %vm2115, 1, 0
      %2117 = vset.pattern.permute.xlu0 0
      %2118 = vperm.xlu0 %2117, %v2116
      %v2119 = vpop.permute.xlu0 %2118
      %vm2120 = vcmp.eq.s32.totalorder %v2119, 1
      %2129 = vst [vmem:[#allocation1] ss:$9 sm:$0xff] %v2105
      %s2130 = scalar_lea.vmem [#allocation1], 1
      %2131 = vst [vmem:[%s2130] ss:$9 sm:$0xff] %v2106
      %s2132 = scalar_lea.vmem [#allocation1], 2
      %2133 = vst [vmem:[%s2132] ss:$9 sm:$0xff] %v2107
      %s2134 = scalar_lea.vmem [#allocation1], 3
      %2135 = vst [vmem:[%s2134] ss:$9 sm:$0xff] %v2108
      %s2136 = scalar_lea.vmem [#allocation1], 4
      %2137 = vst [vmem:[%s2136] ss:$9 sm:$0xff] %v2109
      %s2138 = scalar_lea.vmem [#allocation1], 5
      %2139 = vst [vmem:[%s2138] ss:$9 sm:$0xff] %v2110
      %s2140 = scalar_lea.vmem [#allocation1], 6
      %2141 = vst [vmem:[%s2140] ss:$9 sm:$0xff] %v2111
      %s2142 = scalar_lea.vmem [#allocation1], 7
      %2143 = vst [vmem:[%s2142] ss:$9 sm:$0xff] %v2112
      %v2144 = vld [vmem:[#allocation1] sm:$0xff]
      %v2146 = vsel %vm2120, %v2144, %v1616
      %2155 = vst [vmem:[#allocation1] ss:$9 sm:$0xff] %v2089
      %s2156 = scalar_lea.vmem [#allocation1], 1
      %2157 = vst [vmem:[%s2156] ss:$9 sm:$0xff] %v2090
      %s2158 = scalar_lea.vmem [#allocation1], 2
      %2159 = vst [vmem:[%s2158] ss:$9 sm:$0xff] %v2091
      %s2160 = scalar_lea.vmem [#allocation1], 3
      %2161 = vst [vmem:[%s2160] ss:$9 sm:$0xff] %v2092
      %s2162 = scalar_lea.vmem [#allocation1], 4
      %2163 = vst [vmem:[%s2162] ss:$9 sm:$0xff] %v2093
      %s2164 = scalar_lea.vmem [#allocation1], 5
      %2165 = vst [vmem:[%s2164] ss:$9 sm:$0xff] %v2094
      %s2166 = scalar_lea.vmem [#allocation1], 6
      %2167 = vst [vmem:[%s2166] ss:$9 sm:$0xff] %v2095
      %s2168 = scalar_lea.vmem [#allocation1], 7
      %2169 = vst [vmem:[%s2168] ss:$9 sm:$0xff] %v2096
      %v2170 = vld [vmem:[#allocation1] sm:$0xff]
      %v2172 = vsel %vm2120, %v2170, %v1642
      %2173 = vst [vmem:[#allocation1] ss:$9 sm:$0xff] %v2105
      %s2174 = scalar_lea.vmem [#allocation1], 1
      %2175 = vst [vmem:[%s2174] ss:$9 sm:$0xff] %v2106
      %s2176 = scalar_lea.vmem [#allocation1], 2
      %2177 = vst [vmem:[%s2176] ss:$9 sm:$0xff] %v2107
      %s2178 = scalar_lea.vmem [#allocation1], 3
      %2179 = vst [vmem:[%s2178] ss:$9 sm:$0xff] %v2108
      %s2180 = scalar_lea.vmem [#allocation1], 4
      %2181 = vst [vmem:[%s2180] ss:$9 sm:$0xff] %v2109
      %s2182 = scalar_lea.vmem [#allocation1], 5
      %2183 = vst [vmem:[%s2182] ss:$9 sm:$0xff] %v2110
      %s2184 = scalar_lea.vmem [#allocation1], 6
      %2185 = vst [vmem:[%s2184] ss:$9 sm:$0xff] %v2111
      %s2186 = scalar_lea.vmem [#allocation1], 7
      %2187 = vst [vmem:[%s2186] ss:$9 sm:$0xff] %v2112
      %v2188 = vld [vmem:[#allocation1] sm:$0xff]
      %v2190 = vsel %vm2120, %v2188, 0.0
      %v2192 = vrot.slane %v2190, 1
      %v2193 = vrot.slane %v2190, 2
      %v2194 = vrot.slane %v2190, 3
      %v2195 = vrot.slane %v2190, 4
      %v2196 = vrot.slane %v2190, 5
      %v2197 = vrot.slane %v2190, 6
      %v2198 = vrot.slane %v2190, 7
      %2206 = vst [vmem:[#allocation9 + $0x3] sm:$0x1] %v2190
      %2207 = vst [vmem:[#allocation9 + $0xb] sm:$0x1] %v2192
      %2208 = vst [vmem:[#allocation9 + $0x13] sm:$0x1] %v2193
      %2209 = vst [vmem:[#allocation9 + $0x1b] sm:$0x1] %v2194
      %2210 = vst [vmem:[#allocation9 + $0x23] sm:$0x1] %v2195
      %2211 = vst [vmem:[#allocation9 + $0x2b] sm:$0x1] %v2196
      %2212 = vst [vmem:[#allocation9 + $0x33] sm:$0x1] %v2197
      %2213 = vst [vmem:[#allocation9 + $0x3b] sm:$0x1] %v2198
      %s2214 = scalar_lea.vmem [#allocation4], 4
      %v2215 = vld [vmem:[%s2214] ss:$8 sm:$0xf]
      %s2216 = scalar_lea.vmem [#allocation4], 36
      %v2217 = vld [vmem:[%s2216] ss:$8 sm:$0xf]
      %s2218 = scalar_lea.vmem [#allocation4], 68
      %v2219 = vld [vmem:[%s2218] ss:$8 sm:$0xf]
      %s2220 = scalar_lea.vmem [#allocation4], 100
      %v2221 = vld [vmem:[%s2220] ss:$8 sm:$0xf]
      %s2222 = scalar_lea.vmem [#allocation4], 132
      %v2223 = vld [vmem:[%s2222] ss:$8 sm:$0xf]
      %s2224 = scalar_lea.vmem [#allocation4], 164
      %v2225 = vld [vmem:[%s2224] ss:$8 sm:$0xf]
      %s2226 = scalar_lea.vmem [#allocation4], 196
      %v2227 = vld [vmem:[%s2226] ss:$8 sm:$0xf]
      %s2228 = scalar_lea.vmem [#allocation4], 228
      %v2229 = vld [vmem:[%s2228] ss:$8 sm:$0xf]
      %v2230 = vld [vmem:[#allocation7] sm:$0xff]
      %v2231 = vld [vmem:[#allocation7 + $0x8] sm:$0xff]
      %v2232 = vld [vmem:[#allocation7 + $0x10] sm:$0xff]
      %v2233 = vld [vmem:[#allocation7 + $0x18] sm:$0xff]
      %v2234 = vld [vmem:[#allocation7 + $0x20] sm:$0xff]
      %v2235 = vld [vmem:[#allocation7 + $0x28] sm:$0xff]
      %v2236 = vld [vmem:[#allocation7 + $0x30] sm:$0xff]
      %v2237 = vld [vmem:[#allocation7 + $0x38] sm:$0xff]
      %v2238 = vld [vmem:[#allocation7 + $0x40] sm:$0xff]
      %v2239 = vld [vmem:[#allocation7 + $0x48] sm:$0xff]
      %v2240 = vld [vmem:[#allocation7 + $0x50] sm:$0xff]
      %v2241 = vld [vmem:[#allocation7 + $0x58] sm:$0xff]
      %v2242 = vld [vmem:[#allocation7 + $0x60] sm:$0xff]
      %v2243 = vld [vmem:[#allocation7 + $0x68] sm:$0xff]
      %v2244 = vld [vmem:[#allocation7 + $0x70] sm:$0xff]
      %v2245 = vld [vmem:[#allocation7 + $0x78] sm:$0xff]
      %v2246 = vld [vmem:[#allocation7 + $0x80] sm:$0xff]
      %v2247 = vld [vmem:[#allocation7 + $0x88] sm:$0xff]
      %v2248 = vld [vmem:[#allocation7 + $0x90] sm:$0xff]
      %v2249 = vld [vmem:[#allocation7 + $0x98] sm:$0xff]
      %v2250 = vld [vmem:[#allocation7 + $0xa0] sm:$0xff]
      %v2251 = vld [vmem:[#allocation7 + $0xa8] sm:$0xff]
      %v2252 = vld [vmem:[#allocation7 + $0xb0] sm:$0xff]
      %v2253 = vld [vmem:[#allocation7 + $0xb8] sm:$0xff]
      %v2254 = vld [vmem:[#allocation7 + $0xc0] sm:$0xff]
      %v2255 = vld [vmem:[#allocation7 + $0xc8] sm:$0xff]
      %v2256 = vld [vmem:[#allocation7 + $0xd0] sm:$0xff]
      %v2257 = vld [vmem:[#allocation7 + $0xd8] sm:$0xff]
      %v2258 = vld [vmem:[#allocation7 + $0xe0] sm:$0xff]
      %v2259 = vld [vmem:[#allocation7 + $0xe8] sm:$0xff]
      %v2260 = vld [vmem:[#allocation7 + $0xf0] sm:$0xff]
      %v2261 = vld [vmem:[#allocation7 + $0xf8] sm:$0xff]
      %v2262 = vld [vmem:[#allocation7 + $0x100] sm:$0xff]
      %v2263 = vld [vmem:[#allocation7 + $0x108] sm:$0xff]
      %v2264 = vld [vmem:[#allocation7 + $0x110] sm:$0xff]
      %v2265 = vld [vmem:[#allocation7 + $0x118] sm:$0xff]
      %v2266 = vld [vmem:[#allocation7 + $0x120] sm:$0xff]
      %v2267 = vld [vmem:[#allocation7 + $0x128] sm:$0xff]
      %v2268 = vld [vmem:[#allocation7 + $0x130] sm:$0xff]
      %v2269 = vld [vmem:[#allocation7 + $0x138] sm:$0xff]
      %v2270 = vld [vmem:[#allocation7 + $0x140] sm:$0xff]
      %v2271 = vld [vmem:[#allocation7 + $0x148] sm:$0xff]
      %v2272 = vld [vmem:[#allocation7 + $0x150] sm:$0xff]
      %v2273 = vld [vmem:[#allocation7 + $0x158] sm:$0xff]
      %v2274 = vld [vmem:[#allocation7 + $0x160] sm:$0xff]
      %v2275 = vld [vmem:[#allocation7 + $0x168] sm:$0xff]
      %v2276 = vld [vmem:[#allocation7 + $0x170] sm:$0xff]
      %v2277 = vld [vmem:[#allocation7 + $0x178] sm:$0xff]
      %v2278 = vld [vmem:[#allocation7 + $0x180] sm:$0xff]
      %v2279 = vld [vmem:[#allocation7 + $0x188] sm:$0xff]
      %v2280 = vld [vmem:[#allocation7 + $0x190] sm:$0xff]
      %v2281 = vld [vmem:[#allocation7 + $0x198] sm:$0xff]
      %v2282 = vld [vmem:[#allocation7 + $0x1a0] sm:$0xff]
      %v2283 = vld [vmem:[#allocation7 + $0x1a8] sm:$0xff]
      %v2284 = vld [vmem:[#allocation7 + $0x1b0] sm:$0xff]
      %v2285 = vld [vmem:[#allocation7 + $0x1b8] sm:$0xff]
      %v2286 = vld [vmem:[#allocation7 + $0x1c0] sm:$0xff]
      %v2287 = vld [vmem:[#allocation7 + $0x1c8] sm:$0xff]
      %v2288 = vld [vmem:[#allocation7 + $0x1d0] sm:$0xff]
      %v2289 = vld [vmem:[#allocation7 + $0x1d8] sm:$0xff]
      %v2290 = vld [vmem:[#allocation7 + $0x1e0] sm:$0xff]
      %v2291 = vld [vmem:[#allocation7 + $0x1e8] sm:$0xff]
      %v2292 = vld [vmem:[#allocation7 + $0x1f0] sm:$0xff]
      %v2293 = vld [vmem:[#allocation7 + $0x1f8] sm:$0xff]
      %2294 = vmatpush.msra.mxu0 %v2290
      %2295 = vmatpush.msra.mxu0 %v2286
      %2296 = vmatpush.msra.mxu0 %v2282
      %2297 = vmatpush.msra.mxu0 %v2278
      %2298 = vmatpush.msra.mxu0 %v2274
      %2299 = vmatpush.msra.mxu0 %v2270
      %2300 = vmatpush.msra.mxu0 %v2266
      %2301 = vmatpush.msra.mxu0 %v2262
      %2302 = vmatpush.msra.mxu0 %v2258
      %2303 = vmatpush.msra.mxu0 %v2254
      %2304 = vmatpush.msra.mxu0 %v2250
      %2305 = vmatpush.msra.mxu0 %v2246
      %2306 = vmatpush.msra.mxu0 %v2242
      %2307 = vmatpush.msra.mxu0 %v2238
      %2308 = vmatpush.msra.mxu0 %v2234
      %2309 = vmatpush.msra.mxu0 %v2230
      %2310 = vmatmul.f32.gmra.mxu0 %v2146
      %v2311 = vpop.f32.mrf.mxu0
      %v2312 = vadd.f32 0.0, %v2311
      %2313 = vdwg.mxu0
      %2314 = vmatpush.msra.mxu0 %v2291
      %2315 = vmatpush.msra.mxu0 %v2287
      %2316 = vmatpush.msra.mxu0 %v2283
      %2317 = vmatpush.msra.mxu0 %v2279
      %2318 = vmatpush.msra.mxu0 %v2275
      %2319 = vmatpush.msra.mxu0 %v2271
      %2320 = vmatpush.msra.mxu0 %v2267
      %2321 = vmatpush.msra.mxu0 %v2263
      %2322 = vmatpush.msra.mxu0 %v2259
      %2323 = vmatpush.msra.mxu0 %v2255
      %2324 = vmatpush.msra.mxu0 %v2251
      %2325 = vmatpush.msra.mxu0 %v2247
      %2326 = vmatpush.msra.mxu0 %v2243
      %2327 = vmatpush.msra.mxu0 %v2239
      %2328 = vmatpush.msra.mxu0 %v2235
      %2329 = vmatpush.msra.mxu0 %v2231
      %2330 = vmatmul.f32.gmra.mxu0 %v2146
      %v2331 = vpop.f32.mrf.mxu0
      %v2332 = vadd.f32 0.0, %v2331
      %2333 = vdwg.mxu0
      %2334 = vmatpush.msra.mxu0 %v2292
      %2335 = vmatpush.msra.mxu0 %v2288
      %2336 = vmatpush.msra.mxu0 %v2284
      %2337 = vmatpush.msra.mxu0 %v2280
      %2338 = vmatpush.msra.mxu0 %v2276
      %2339 = vmatpush.msra.mxu0 %v2272
      %2340 = vmatpush.msra.mxu0 %v2268
      %2341 = vmatpush.msra.mxu0 %v2264
      %2342 = vmatpush.msra.mxu0 %v2260
      %2343 = vmatpush.msra.mxu0 %v2256
      %2344 = vmatpush.msra.mxu0 %v2252
      %2345 = vmatpush.msra.mxu0 %v2248
      %2346 = vmatpush.msra.mxu0 %v2244
      %2347 = vmatpush.msra.mxu0 %v2240
      %2348 = vmatpush.msra.mxu0 %v2236
      %2349 = vmatpush.msra.mxu0 %v2232
      %2350 = vmatmul.f32.gmra.mxu0 %v2146
      %v2351 = vpop.f32.mrf.mxu0
      %v2352 = vadd.f32 0.0, %v2351
      %2353 = vdwg.mxu0
      %2354 = vmatpush.msra.mxu0 %v2293
      %2355 = vmatpush.msra.mxu0 %v2289
      %2356 = vmatpush.msra.mxu0 %v2285
      %2357 = vmatpush.msra.mxu0 %v2281
      %2358 = vmatpush.msra.mxu0 %v2277
      %2359 = vmatpush.msra.mxu0 %v2273
      %2360 = vmatpush.msra.mxu0 %v2269
      %2361 = vmatpush.msra.mxu0 %v2265
      %2362 = vmatpush.msra.mxu0 %v2261
      %2363 = vmatpush.msra.mxu0 %v2257
      %2364 = vmatpush.msra.mxu0 %v2253
      %2365 = vmatpush.msra.mxu0 %v2249
      %2366 = vmatpush.msra.mxu0 %v2245
      %2367 = vmatpush.msra.mxu0 %v2241
      %2368 = vmatpush.msra.mxu0 %v2237
      %2369 = vmatpush.msra.mxu0 %v2233
      %2370 = vmatmul.f32.gmra.mxu0 %v2146
      %v2371 = vpop.f32.mrf.mxu0
      %v2372 = vadd.f32 0.0, %v2371
      %2373 = vdwg.mxu0
      %v2378 = vrot.slane %v2332, 7
      %v2379 = vrot.slane %v2352, 6
      %v2380 = vrot.slane %v2372, 5
      %v2381 = vsel %vm246, %v2312, %v2378
      %v2382 = vsel %vm248, %v2379, %v2380
      %v2383 = vsel %vm250, %v2381, %v2382
      %v2384 = vsel %vm252, %v2312, %v2378
      %v2385 = vsel %vm254, %v2379, %v2380
      %v2386 = vsel %vm256, %v2384, %v2385
      %v2387 = vrot.slane %v2386, 1
      %v2388 = vsel %vm248, %v2312, %v2378
      %v2389 = vsel %vm260, %v2379, %v2380
      %v2390 = vsel %vm262, %v2388, %v2389
      %v2391 = vrot.slane %v2390, 2
      %v2392 = vsel %vm254, %v2312, %v2378
      %v2393 = vsel %vm266, %v2379, %v2380
      %v2394 = vsel %vm268, %v2392, %v2393
      %v2395 = vrot.slane %v2394, 3
      %v2396 = vsel %vm260, %v2312, %v2378
      %v2397 = vsel %vm272, %v2379, %v2380
      %v2398 = vsel %vm274, %v2396, %v2397
      %v2399 = vrot.slane %v2398, 4
      %v2400 = vsel %vm266, %v2312, %v2378
      %v2401 = vsel %vm278, %v2380, %v2379
      %v2402 = vsel %vm280, %v2400, %v2401
      %v2403 = vrot.slane %v2402, 5
      %v2404 = vsel %vm272, %v2312, %v2378
      %v2405 = vsel %vm246, %v2379, %v2380
      %v2406 = vsel %vm285, %v2405, %v2404
      %v2407 = vrot.slane %v2406, 6
      %v2408 = vsel %vm278, %v2378, %v2312
      %v2409 = vsel %vm252, %v2379, %v2380
      %v2410 = vsel %vm290, %v2409, %v2408
      %v2411 = vrot.slane %v2410, 7
      %v2420 = vadd.f32 %v2215, %v2383
      %v2421 = vadd.f32 %v2217, %v2387
      %v2422 = vadd.f32 %v2219, %v2391
      %v2423 = vadd.f32 %v2221, %v2395
      %v2424 = vadd.f32 %v2223, %v2399
      %v2425 = vadd.f32 %v2225, %v2403
      %v2426 = vadd.f32 %v2227, %v2407
      %v2427 = vadd.f32 %v2229, %v2411
      %v2428 = vmul.f32 %v2420, 0.5
      %v2429 = vmul.f32 %v2421, 0.5
      %v2430 = vmul.f32 %v2422, 0.5
      %v2431 = vmul.f32 %v2423, 0.5
      %v2432 = vmul.f32 %v2424, 0.5
      %v2433 = vmul.f32 %v2425, 0.5
      %v2434 = vmul.f32 %v2426, 0.5
      %v2435 = vmul.f32 %v2427, 0.5
      %v2436 = vtanh.pop %v2428
      %v2437 = vtanh.pop %v2429
      %v2438 = vtanh.pop %v2430
      %v2439 = vtanh.pop %v2431
      %v2440 = vtanh.pop %v2432
      %v2441 = vtanh.pop %v2433
      %v2442 = vtanh.pop %v2434
      %v2443 = vtanh.pop %v2435
      %v2444 = vmul.f32 %v2436, 0.5
      %v2445 = vmul.f32 %v2437, 0.5
      %v2446 = vmul.f32 %v2438, 0.5
      %v2447 = vmul.f32 %v2439, 0.5
      %v2448 = vmul.f32 %v2440, 0.5
      %v2449 = vmul.f32 %v2441, 0.5
      %v2450 = vmul.f32 %v2442, 0.5
      %v2451 = vmul.f32 %v2443, 0.5
      %v2452 = vadd.f32 %v2444, 0.5
      %v2453 = vadd.f32 %v2445, 0.5
      %v2454 = vadd.f32 %v2446, 0.5
      %v2455 = vadd.f32 %v2447, 0.5
      %v2456 = vadd.f32 %v2448, 0.5
      %v2457 = vadd.f32 %v2449, 0.5
      %v2458 = vadd.f32 %v2450, 0.5
      %v2459 = vadd.f32 %v2451, 0.5
      %v2468 = vrot.slane %v2420, 1
      %v2469 = vrot.slane %v2421, 1
      %v2470 = vrot.slane %v2422, 1
      %v2471 = vrot.slane %v2423, 1
      %v2472 = vrot.slane %v2424, 1
      %v2473 = vrot.slane %v2425, 1
      %v2474 = vrot.slane %v2426, 1
      %v2475 = vrot.slane %v2427, 1
      %v2484 = vmul.f32 %v2468, 0.5
      %v2485 = vmul.f32 %v2469, 0.5
      %v2486 = vmul.f32 %v2470, 0.5
      %v2487 = vmul.f32 %v2471, 0.5
      %v2488 = vmul.f32 %v2472, 0.5
      %v2489 = vmul.f32 %v2473, 0.5
      %v2490 = vmul.f32 %v2474, 0.5
      %v2491 = vmul.f32 %v2475, 0.5
      %v2492 = vtanh.pop %v2484
      %v2493 = vtanh.pop %v2485
      %v2494 = vtanh.pop %v2486
      %v2495 = vtanh.pop %v2487
      %v2496 = vtanh.pop %v2488
      %v2497 = vtanh.pop %v2489
      %v2498 = vtanh.pop %v2490
      %v2499 = vtanh.pop %v2491
      %v2500 = vmul.f32 %v2492, 0.5
      %v2501 = vmul.f32 %v2493, 0.5
      %v2502 = vmul.f32 %v2494, 0.5
      %v2503 = vmul.f32 %v2495, 0.5
      %v2504 = vmul.f32 %v2496, 0.5
      %v2505 = vmul.f32 %v2497, 0.5
      %v2506 = vmul.f32 %v2498, 0.5
      %v2507 = vmul.f32 %v2499, 0.5
      %v2508 = vadd.f32 %v2500, 0.5
      %v2509 = vadd.f32 %v2501, 0.5
      %v2510 = vadd.f32 %v2502, 0.5
      %v2511 = vadd.f32 %v2503, 0.5
      %v2512 = vadd.f32 %v2504, 0.5
      %v2513 = vadd.f32 %v2505, 0.5
      %v2514 = vadd.f32 %v2506, 0.5
      %v2515 = vadd.f32 %v2507, 0.5
      %v2516 = vrot.slane %v2420, 2
      %v2517 = vrot.slane %v2421, 2
      %v2518 = vrot.slane %v2422, 2
      %v2519 = vrot.slane %v2423, 2
      %v2520 = vrot.slane %v2424, 2
      %v2521 = vrot.slane %v2425, 2
      %v2522 = vrot.slane %v2426, 2
      %v2523 = vrot.slane %v2427, 2
      %v2532 = vtanh.pop %v2516
      %v2533 = vtanh.pop %v2517
      %v2534 = vtanh.pop %v2518
      %v2535 = vtanh.pop %v2519
      %v2536 = vtanh.pop %v2520
      %v2537 = vtanh.pop %v2521
      %v2538 = vtanh.pop %v2522
      %v2539 = vtanh.pop %v2523
      %v2540 = vrot.slane %v2420, 3
      %v2541 = vrot.slane %v2421, 3
      %v2542 = vrot.slane %v2422, 3
      %v2543 = vrot.slane %v2423, 3
      %v2544 = vrot.slane %v2424, 3
      %v2545 = vrot.slane %v2425, 3
      %v2546 = vrot.slane %v2426, 3
      %v2547 = vrot.slane %v2427, 3
      %v2556 = vmul.f32 %v2540, 0.5
      %v2557 = vmul.f32 %v2541, 0.5
      %v2558 = vmul.f32 %v2542, 0.5
      %v2559 = vmul.f32 %v2543, 0.5
      %v2560 = vmul.f32 %v2544, 0.5
      %v2561 = vmul.f32 %v2545, 0.5
      %v2562 = vmul.f32 %v2546, 0.5
      %v2563 = vmul.f32 %v2547, 0.5
      %v2564 = vtanh.pop %v2556
      %v2565 = vtanh.pop %v2557
      %v2566 = vtanh.pop %v2558
      %v2567 = vtanh.pop %v2559
      %v2568 = vtanh.pop %v2560
      %v2569 = vtanh.pop %v2561
      %v2570 = vtanh.pop %v2562
      %v2571 = vtanh.pop %v2563
      %v2572 = vmul.f32 %v2564, 0.5
      %v2573 = vmul.f32 %v2565, 0.5
      %v2574 = vmul.f32 %v2566, 0.5
      %v2575 = vmul.f32 %v2567, 0.5
      %v2576 = vmul.f32 %v2568, 0.5
      %v2577 = vmul.f32 %v2569, 0.5
      %v2578 = vmul.f32 %v2570, 0.5
      %v2579 = vmul.f32 %v2571, 0.5
      %v2580 = vadd.f32 %v2572, 0.5
      %v2581 = vadd.f32 %v2573, 0.5
      %v2582 = vadd.f32 %v2574, 0.5
      %v2583 = vadd.f32 %v2575, 0.5
      %v2584 = vadd.f32 %v2576, 0.5
      %v2585 = vadd.f32 %v2577, 0.5
      %v2586 = vadd.f32 %v2578, 0.5
      %v2587 = vadd.f32 %v2579, 0.5
      %v2589 = vrot.slane %v2172, 1
      %v2590 = vrot.slane %v2172, 2
      %v2591 = vrot.slane %v2172, 3
      %v2592 = vrot.slane %v2172, 4
      %v2593 = vrot.slane %v2172, 5
      %v2594 = vrot.slane %v2172, 6
      %v2595 = vrot.slane %v2172, 7
      %v2603 = vmul.f32 %v2508, %v2172
      %v2604 = vmul.f32 %v2509, %v2589
      %v2605 = vmul.f32 %v2510, %v2590
      %v2606 = vmul.f32 %v2511, %v2591
      %v2607 = vmul.f32 %v2512, %v2592
      %v2608 = vmul.f32 %v2513, %v2593
      %v2609 = vmul.f32 %v2514, %v2594
      %v2610 = vmul.f32 %v2515, %v2595
      %v2611 = vmul.f32 %v2452, %v2532
      %v2612 = vmul.f32 %v2453, %v2533
      %v2613 = vmul.f32 %v2454, %v2534
      %v2614 = vmul.f32 %v2455, %v2535
      %v2615 = vmul.f32 %v2456, %v2536
      %v2616 = vmul.f32 %v2457, %v2537
      %v2617 = vmul.f32 %v2458, %v2538
      %v2618 = vmul.f32 %v2459, %v2539
      %v2619 = vadd.f32 %v2603, %v2611
      %v2620 = vadd.f32 %v2604, %v2612
      %v2621 = vadd.f32 %v2605, %v2613
      %v2622 = vadd.f32 %v2606, %v2614
      %v2623 = vadd.f32 %v2607, %v2615
      %v2624 = vadd.f32 %v2608, %v2616
      %v2625 = vadd.f32 %v2609, %v2617
      %v2626 = vadd.f32 %v2610, %v2618
      %v2627 = vtanh.pop %v2619
      %v2628 = vtanh.pop %v2620
      %v2629 = vtanh.pop %v2621
      %v2630 = vtanh.pop %v2622
      %v2631 = vtanh.pop %v2623
      %v2632 = vtanh.pop %v2624
      %v2633 = vtanh.pop %v2625
      %v2634 = vtanh.pop %v2626
      %v2635 = vmul.f32 %v2580, %v2627
      %v2636 = vmul.f32 %v2581, %v2628
      %v2637 = vmul.f32 %v2582, %v2629
      %v2638 = vmul.f32 %v2583, %v2630
      %v2639 = vmul.f32 %v2584, %v2631
      %v2640 = vmul.f32 %v2585, %v2632
      %v2641 = vmul.f32 %v2586, %v2633
      %v2642 = vmul.f32 %v2587, %v2634
      %s2643 = sadd.s32 %s53, 4
      %v2644 = vstv %s2643
      %vm2645 = vcmp.gt.s32.totalorder %v77, %v2644
      %v2646 = vsel %vm2645, 1, 0
      %2647 = vset.pattern.permute.xlu0 0
      %2648 = vperm.xlu0 %2647, %v2646
      %v2649 = vpop.permute.xlu0 %2648
      %vm2650 = vcmp.eq.s32.totalorder %v2649, 1
      %2659 = vst [vmem:[#allocation1] ss:$9 sm:$0xff] %v2635
      %s2660 = scalar_lea.vmem [#allocation1], 1
      %2661 = vst [vmem:[%s2660] ss:$9 sm:$0xff] %v2636
      %s2662 = scalar_lea.vmem [#allocation1], 2
      %2663 = vst [vmem:[%s2662] ss:$9 sm:$0xff] %v2637
      %s2664 = scalar_lea.vmem [#allocation1], 3
      %2665 = vst [vmem:[%s2664] ss:$9 sm:$0xff] %v2638
      %s2666 = scalar_lea.vmem [#allocation1], 4
      %2667 = vst [vmem:[%s2666] ss:$9 sm:$0xff] %v2639
      %s2668 = scalar_lea.vmem [#allocation1], 5
      %2669 = vst [vmem:[%s2668] ss:$9 sm:$0xff] %v2640
      %s2670 = scalar_lea.vmem [#allocation1], 6
      %2671 = vst [vmem:[%s2670] ss:$9 sm:$0xff] %v2641
      %s2672 = scalar_lea.vmem [#allocation1], 7
      %2673 = vst [vmem:[%s2672] ss:$9 sm:$0xff] %v2642
      %v2674 = vld [vmem:[#allocation1] sm:$0xff]
      %v2676 = vsel %vm2650, %v2674, %v2146
      %2685 = vst [vmem:[#allocation1] ss:$9 sm:$0xff] %v2619
      %s2686 = scalar_lea.vmem [#allocation1], 1
      %2687 = vst [vmem:[%s2686] ss:$9 sm:$0xff] %v2620
      %s2688 = scalar_lea.vmem [#allocation1], 2
      %2689 = vst [vmem:[%s2688] ss:$9 sm:$0xff] %v2621
      %s2690 = scalar_lea.vmem [#allocation1], 3
      %2691 = vst [vmem:[%s2690] ss:$9 sm:$0xff] %v2622
      %s2692 = scalar_lea.vmem [#allocation1], 4
      %2693 = vst [vmem:[%s2692] ss:$9 sm:$0xff] %v2623
      %s2694 = scalar_lea.vmem [#allocation1], 5
      %2695 = vst [vmem:[%s2694] ss:$9 sm:$0xff] %v2624
      %s2696 = scalar_lea.vmem [#allocation1], 6
      %2697 = vst [vmem:[%s2696] ss:$9 sm:$0xff] %v2625
      %s2698 = scalar_lea.vmem [#allocation1], 7
      %2699 = vst [vmem:[%s2698] ss:$9 sm:$0xff] %v2626
      %v2700 = vld [vmem:[#allocation1] sm:$0xff]
      %v2702 = vsel %vm2650, %v2700, %v2172
      %2703 = vst [vmem:[#allocation1] ss:$9 sm:$0xff] %v2635
      %s2704 = scalar_lea.vmem [#allocation1], 1
      %2705 = vst [vmem:[%s2704] ss:$9 sm:$0xff] %v2636
      %s2706 = scalar_lea.vmem [#allocation1], 2
      %2707 = vst [vmem:[%s2706] ss:$9 sm:$0xff] %v2637
      %s2708 = scalar_lea.vmem [#allocation1], 3
      %2709 = vst [vmem:[%s2708] ss:$9 sm:$0xff] %v2638
      %s2710 = scalar_lea.vmem [#allocation1], 4
      %2711 = vst [vmem:[%s2710] ss:$9 sm:$0xff] %v2639
      %s2712 = scalar_lea.vmem [#allocation1], 5
      %2713 = vst [vmem:[%s2712] ss:$9 sm:$0xff] %v2640
      %s2714 = scalar_lea.vmem [#allocation1], 6
      %2715 = vst [vmem:[%s2714] ss:$9 sm:$0xff] %v2641
      %s2716 = scalar_lea.vmem [#allocation1], 7
      %2717 = vst [vmem:[%s2716] ss:$9 sm:$0xff] %v2642
      %v2718 = vld [vmem:[#allocation1] sm:$0xff]
      %v2720 = vsel %vm2650, %v2718, 0.0
      %v2722 = vrot.slane %v2720, 1
      %v2723 = vrot.slane %v2720, 2
      %v2724 = vrot.slane %v2720, 3
      %v2725 = vrot.slane %v2720, 4
      %v2726 = vrot.slane %v2720, 5
      %v2727 = vrot.slane %v2720, 6
      %v2728 = vrot.slane %v2720, 7
      %2736 = vst [vmem:[#allocation9 + $0x4] sm:$0x1] %v2720
      %2737 = vst [vmem:[#allocation9 + $0xc] sm:$0x1] %v2722
      %2738 = vst [vmem:[#allocation9 + $0x14] sm:$0x1] %v2723
      %2739 = vst [vmem:[#allocation9 + $0x1c] sm:$0x1] %v2724
      %2740 = vst [vmem:[#allocation9 + $0x24] sm:$0x1] %v2725
      %2741 = vst [vmem:[#allocation9 + $0x2c] sm:$0x1] %v2726
      %2742 = vst [vmem:[#allocation9 + $0x34] sm:$0x1] %v2727
      %2743 = vst [vmem:[#allocation9 + $0x3c] sm:$0x1] %v2728
      %s2744 = scalar_lea.vmem [#allocation4], 5
      %v2745 = vld [vmem:[%s2744] ss:$8 sm:$0xf]
      %s2746 = scalar_lea.vmem [#allocation4], 37
      %v2747 = vld [vmem:[%s2746] ss:$8 sm:$0xf]
      %s2748 = scalar_lea.vmem [#allocation4], 69
      %v2749 = vld [vmem:[%s2748] ss:$8 sm:$0xf]
      %s2750 = scalar_lea.vmem [#allocation4], 101
      %v2751 = vld [vmem:[%s2750] ss:$8 sm:$0xf]
      %s2752 = scalar_lea.vmem [#allocation4], 133
      %v2753 = vld [vmem:[%s2752] ss:$8 sm:$0xf]
      %s2754 = scalar_lea.vmem [#allocation4], 165
      %v2755 = vld [vmem:[%s2754] ss:$8 sm:$0xf]
      %s2756 = scalar_lea.vmem [#allocation4], 197
      %v2757 = vld [vmem:[%s2756] ss:$8 sm:$0xf]
      %s2758 = scalar_lea.vmem [#allocation4], 229
      %v2759 = vld [vmem:[%s2758] ss:$8 sm:$0xf]
      %v2760 = vld [vmem:[#allocation7] sm:$0xff]
      %v2761 = vld [vmem:[#allocation7 + $0x8] sm:$0xff]
      %v2762 = vld [vmem:[#allocation7 + $0x10] sm:$0xff]
      %v2763 = vld [vmem:[#allocation7 + $0x18] sm:$0xff]
      %v2764 = vld [vmem:[#allocation7 + $0x20] sm:$0xff]
      %v2765 = vld [vmem:[#allocation7 + $0x28] sm:$0xff]
      %v2766 = vld [vmem:[#allocation7 + $0x30] sm:$0xff]
      %v2767 = vld [vmem:[#allocation7 + $0x38] sm:$0xff]
      %v2768 = vld [vmem:[#allocation7 + $0x40] sm:$0xff]
      %v2769 = vld [vmem:[#allocation7 + $0x48] sm:$0xff]
      %v2770 = vld [vmem:[#allocation7 + $0x50] sm:$0xff]
      %v2771 = vld [vmem:[#allocation7 + $0x58] sm:$0xff]
      %v2772 = vld [vmem:[#allocation7 + $0x60] sm:$0xff]
      %v2773 = vld [vmem:[#allocation7 + $0x68] sm:$0xff]
      %v2774 = vld [vmem:[#allocation7 + $0x70] sm:$0xff]
      %v2775 = vld [vmem:[#allocation7 + $0x78] sm:$0xff]
      %v2776 = vld [vmem:[#allocation7 + $0x80] sm:$0xff]
      %v2777 = vld [vmem:[#allocation7 + $0x88] sm:$0xff]
      %v2778 = vld [vmem:[#allocation7 + $0x90] sm:$0xff]
      %v2779 = vld [vmem:[#allocation7 + $0x98] sm:$0xff]
      %v2780 = vld [vmem:[#allocation7 + $0xa0] sm:$0xff]
      %v2781 = vld [vmem:[#allocation7 + $0xa8] sm:$0xff]
      %v2782 = vld [vmem:[#allocation7 + $0xb0] sm:$0xff]
      %v2783 = vld [vmem:[#allocation7 + $0xb8] sm:$0xff]
      %v2784 = vld [vmem:[#allocation7 + $0xc0] sm:$0xff]
      %v2785 = vld [vmem:[#allocation7 + $0xc8] sm:$0xff]
      %v2786 = vld [vmem:[#allocation7 + $0xd0] sm:$0xff]
      %v2787 = vld [vmem:[#allocation7 + $0xd8] sm:$0xff]
      %v2788 = vld [vmem:[#allocation7 + $0xe0] sm:$0xff]
      %v2789 = vld [vmem:[#allocation7 + $0xe8] sm:$0xff]
      %v2790 = vld [vmem:[#allocation7 + $0xf0] sm:$0xff]
      %v2791 = vld [vmem:[#allocation7 + $0xf8] sm:$0xff]
      %v2792 = vld [vmem:[#allocation7 + $0x100] sm:$0xff]
      %v2793 = vld [vmem:[#allocation7 + $0x108] sm:$0xff]
      %v2794 = vld [vmem:[#allocation7 + $0x110] sm:$0xff]
      %v2795 = vld [vmem:[#allocation7 + $0x118] sm:$0xff]
      %v2796 = vld [vmem:[#allocation7 + $0x120] sm:$0xff]
      %v2797 = vld [vmem:[#allocation7 + $0x128] sm:$0xff]
      %v2798 = vld [vmem:[#allocation7 + $0x130] sm:$0xff]
      %v2799 = vld [vmem:[#allocation7 + $0x138] sm:$0xff]
      %v2800 = vld [vmem:[#allocation7 + $0x140] sm:$0xff]
      %v2801 = vld [vmem:[#allocation7 + $0x148] sm:$0xff]
      %v2802 = vld [vmem:[#allocation7 + $0x150] sm:$0xff]
      %v2803 = vld [vmem:[#allocation7 + $0x158] sm:$0xff]
      %v2804 = vld [vmem:[#allocation7 + $0x160] sm:$0xff]
      %v2805 = vld [vmem:[#allocation7 + $0x168] sm:$0xff]
      %v2806 = vld [vmem:[#allocation7 + $0x170] sm:$0xff]
      %v2807 = vld [vmem:[#allocation7 + $0x178] sm:$0xff]
      %v2808 = vld [vmem:[#allocation7 + $0x180] sm:$0xff]
      %v2809 = vld [vmem:[#allocation7 + $0x188] sm:$0xff]
      %v2810 = vld [vmem:[#allocation7 + $0x190] sm:$0xff]
      %v2811 = vld [vmem:[#allocation7 + $0x198] sm:$0xff]
      %v2812 = vld [vmem:[#allocation7 + $0x1a0] sm:$0xff]
      %v2813 = vld [vmem:[#allocation7 + $0x1a8] sm:$0xff]
      %v2814 = vld [vmem:[#allocation7 + $0x1b0] sm:$0xff]
      %v2815 = vld [vmem:[#allocation7 + $0x1b8] sm:$0xff]
      %v2816 = vld [vmem:[#allocation7 + $0x1c0] sm:$0xff]
      %v2817 = vld [vmem:[#allocation7 + $0x1c8] sm:$0xff]
      %v2818 = vld [vmem:[#allocation7 + $0x1d0] sm:$0xff]
      %v2819 = vld [vmem:[#allocation7 + $0x1d8] sm:$0xff]
      %v2820 = vld [vmem:[#allocation7 + $0x1e0] sm:$0xff]
      %v2821 = vld [vmem:[#allocation7 + $0x1e8] sm:$0xff]
      %v2822 = vld [vmem:[#allocation7 + $0x1f0] sm:$0xff]
      %v2823 = vld [vmem:[#allocation7 + $0x1f8] sm:$0xff]
      %2824 = vmatpush.msra.mxu0 %v2820
      %2825 = vmatpush.msra.mxu0 %v2816
      %2826 = vmatpush.msra.mxu0 %v2812
      %2827 = vmatpush.msra.mxu0 %v2808
      %2828 = vmatpush.msra.mxu0 %v2804
      %2829 = vmatpush.msra.mxu0 %v2800
      %2830 = vmatpush.msra.mxu0 %v2796
      %2831 = vmatpush.msra.mxu0 %v2792
      %2832 = vmatpush.msra.mxu0 %v2788
      %2833 = vmatpush.msra.mxu0 %v2784
      %2834 = vmatpush.msra.mxu0 %v2780
      %2835 = vmatpush.msra.mxu0 %v2776
      %2836 = vmatpush.msra.mxu0 %v2772
      %2837 = vmatpush.msra.mxu0 %v2768
      %2838 = vmatpush.msra.mxu0 %v2764
      %2839 = vmatpush.msra.mxu0 %v2760
      %2840 = vmatmul.f32.gmra.mxu0 %v2676
      %v2841 = vpop.f32.mrf.mxu0
      %v2842 = vadd.f32 0.0, %v2841
      %2843 = vdwg.mxu0
      %2844 = vmatpush.msra.mxu0 %v2821
      %2845 = vmatpush.msra.mxu0 %v2817
      %2846 = vmatpush.msra.mxu0 %v2813
      %2847 = vmatpush.msra.mxu0 %v2809
      %2848 = vmatpush.msra.mxu0 %v2805
      %2849 = vmatpush.msra.mxu0 %v2801
      %2850 = vmatpush.msra.mxu0 %v2797
      %2851 = vmatpush.msra.mxu0 %v2793
      %2852 = vmatpush.msra.mxu0 %v2789
      %2853 = vmatpush.msra.mxu0 %v2785
      %2854 = vmatpush.msra.mxu0 %v2781
      %2855 = vmatpush.msra.mxu0 %v2777
      %2856 = vmatpush.msra.mxu0 %v2773
      %2857 = vmatpush.msra.mxu0 %v2769
      %2858 = vmatpush.msra.mxu0 %v2765
      %2859 = vmatpush.msra.mxu0 %v2761
      %2860 = vmatmul.f32.gmra.mxu0 %v2676
      %v2861 = vpop.f32.mrf.mxu0
      %v2862 = vadd.f32 0.0, %v2861
      %2863 = vdwg.mxu0
      %2864 = vmatpush.msra.mxu0 %v2822
      %2865 = vmatpush.msra.mxu0 %v2818
      %2866 = vmatpush.msra.mxu0 %v2814
      %2867 = vmatpush.msra.mxu0 %v2810
      %2868 = vmatpush.msra.mxu0 %v2806
      %2869 = vmatpush.msra.mxu0 %v2802
      %2870 = vmatpush.msra.mxu0 %v2798
      %2871 = vmatpush.msra.mxu0 %v2794
      %2872 = vmatpush.msra.mxu0 %v2790
      %2873 = vmatpush.msra.mxu0 %v2786
      %2874 = vmatpush.msra.mxu0 %v2782
      %2875 = vmatpush.msra.mxu0 %v2778
      %2876 = vmatpush.msra.mxu0 %v2774
      %2877 = vmatpush.msra.mxu0 %v2770
      %2878 = vmatpush.msra.mxu0 %v2766
      %2879 = vmatpush.msra.mxu0 %v2762
      %2880 = vmatmul.f32.gmra.mxu0 %v2676
      %v2881 = vpop.f32.mrf.mxu0
      %v2882 = vadd.f32 0.0, %v2881
      %2883 = vdwg.mxu0
      %2884 = vmatpush.msra.mxu0 %v2823
      %2885 = vmatpush.msra.mxu0 %v2819
      %2886 = vmatpush.msra.mxu0 %v2815
      %2887 = vmatpush.msra.mxu0 %v2811
      %2888 = vmatpush.msra.mxu0 %v2807
      %2889 = vmatpush.msra.mxu0 %v2803
      %2890 = vmatpush.msra.mxu0 %v2799
      %2891 = vmatpush.msra.mxu0 %v2795
      %2892 = vmatpush.msra.mxu0 %v2791
      %2893 = vmatpush.msra.mxu0 %v2787
      %2894 = vmatpush.msra.mxu0 %v2783
      %2895 = vmatpush.msra.mxu0 %v2779
      %2896 = vmatpush.msra.mxu0 %v2775
      %2897 = vmatpush.msra.mxu0 %v2771
      %2898 = vmatpush.msra.mxu0 %v2767
      %2899 = vmatpush.msra.mxu0 %v2763
      %2900 = vmatmul.f32.gmra.mxu0 %v2676
      %v2901 = vpop.f32.mrf.mxu0
      %v2902 = vadd.f32 0.0, %v2901
      %2903 = vdwg.mxu0
      %v2908 = vrot.slane %v2862, 7
      %v2909 = vrot.slane %v2882, 6
      %v2910 = vrot.slane %v2902, 5
      %v2911 = vsel %vm246, %v2842, %v2908
      %v2912 = vsel %vm248, %v2909, %v2910
      %v2913 = vsel %vm250, %v2911, %v2912
      %v2914 = vsel %vm252, %v2842, %v2908
      %v2915 = vsel %vm254, %v2909, %v2910
      %v2916 = vsel %vm256, %v2914, %v2915
      %v2917 = vrot.slane %v2916, 1
      %v2918 = vsel %vm248, %v2842, %v2908
      %v2919 = vsel %vm260, %v2909, %v2910
      %v2920 = vsel %vm262, %v2918, %v2919
      %v2921 = vrot.slane %v2920, 2
      %v2922 = vsel %vm254, %v2842, %v2908
      %v2923 = vsel %vm266, %v2909, %v2910
      %v2924 = vsel %vm268, %v2922, %v2923
      %v2925 = vrot.slane %v2924, 3
      %v2926 = vsel %vm260, %v2842, %v2908
      %v2927 = vsel %vm272, %v2909, %v2910
      %v2928 = vsel %vm274, %v2926, %v2927
      %v2929 = vrot.slane %v2928, 4
      %v2930 = vsel %vm266, %v2842, %v2908
      %v2931 = vsel %vm278, %v2910, %v2909
      %v2932 = vsel %vm280, %v2930, %v2931
      %v2933 = vrot.slane %v2932, 5
      %v2934 = vsel %vm272, %v2842, %v2908
      %v2935 = vsel %vm246, %v2909, %v2910
      %v2936 = vsel %vm285, %v2935, %v2934
      %v2937 = vrot.slane %v2936, 6
      %v2938 = vsel %vm278, %v2908, %v2842
      %v2939 = vsel %vm252, %v2909, %v2910
      %v2940 = vsel %vm290, %v2939, %v2938
      %v2941 = vrot.slane %v2940, 7
      %v2950 = vadd.f32 %v2745, %v2913
      %v2951 = vadd.f32 %v2747, %v2917
      %v2952 = vadd.f32 %v2749, %v2921
      %v2953 = vadd.f32 %v2751, %v2925
      %v2954 = vadd.f32 %v2753, %v2929
      %v2955 = vadd.f32 %v2755, %v2933
      %v2956 = vadd.f32 %v2757, %v2937
      %v2957 = vadd.f32 %v2759, %v2941
      %v2958 = vmul.f32 %v2950, 0.5
      %v2959 = vmul.f32 %v2951, 0.5
      %v2960 = vmul.f32 %v2952, 0.5
      %v2961 = vmul.f32 %v2953, 0.5
      %v2962 = vmul.f32 %v2954, 0.5
      %v2963 = vmul.f32 %v2955, 0.5
      %v2964 = vmul.f32 %v2956, 0.5
      %v2965 = vmul.f32 %v2957, 0.5
      %v2966 = vtanh.pop %v2958
      %v2967 = vtanh.pop %v2959
      %v2968 = vtanh.pop %v2960
      %v2969 = vtanh.pop %v2961
      %v2970 = vtanh.pop %v2962
      %v2971 = vtanh.pop %v2963
      %v2972 = vtanh.pop %v2964
      %v2973 = vtanh.pop %v2965
      %v2974 = vmul.f32 %v2966, 0.5
      %v2975 = vmul.f32 %v2967, 0.5
      %v2976 = vmul.f32 %v2968, 0.5
      %v2977 = vmul.f32 %v2969, 0.5
      %v2978 = vmul.f32 %v2970, 0.5
      %v2979 = vmul.f32 %v2971, 0.5
      %v2980 = vmul.f32 %v2972, 0.5
      %v2981 = vmul.f32 %v2973, 0.5
      %v2982 = vadd.f32 %v2974, 0.5
      %v2983 = vadd.f32 %v2975, 0.5
      %v2984 = vadd.f32 %v2976, 0.5
      %v2985 = vadd.f32 %v2977, 0.5
      %v2986 = vadd.f32 %v2978, 0.5
      %v2987 = vadd.f32 %v2979, 0.5
      %v2988 = vadd.f32 %v2980, 0.5
      %v2989 = vadd.f32 %v2981, 0.5
      %v2998 = vrot.slane %v2950, 1
      %v2999 = vrot.slane %v2951, 1
      %v3000 = vrot.slane %v2952, 1
      %v3001 = vrot.slane %v2953, 1
      %v3002 = vrot.slane %v2954, 1
      %v3003 = vrot.slane %v2955, 1
      %v3004 = vrot.slane %v2956, 1
      %v3005 = vrot.slane %v2957, 1
      %v3014 = vmul.f32 %v2998, 0.5
      %v3015 = vmul.f32 %v2999, 0.5
      %v3016 = vmul.f32 %v3000, 0.5
      %v3017 = vmul.f32 %v3001, 0.5
      %v3018 = vmul.f32 %v3002, 0.5
      %v3019 = vmul.f32 %v3003, 0.5
      %v3020 = vmul.f32 %v3004, 0.5
      %v3021 = vmul.f32 %v3005, 0.5
      %v3022 = vtanh.pop %v3014
      %v3023 = vtanh.pop %v3015
      %v3024 = vtanh.pop %v3016
      %v3025 = vtanh.pop %v3017
      %v3026 = vtanh.pop %v3018
      %v3027 = vtanh.pop %v3019
      %v3028 = vtanh.pop %v3020
      %v3029 = vtanh.pop %v3021
      %v3030 = vmul.f32 %v3022, 0.5
      %v3031 = vmul.f32 %v3023, 0.5
      %v3032 = vmul.f32 %v3024, 0.5
      %v3033 = vmul.f32 %v3025, 0.5
      %v3034 = vmul.f32 %v3026, 0.5
      %v3035 = vmul.f32 %v3027, 0.5
      %v3036 = vmul.f32 %v3028, 0.5
      %v3037 = vmul.f32 %v3029, 0.5
      %v3038 = vadd.f32 %v3030, 0.5
      %v3039 = vadd.f32 %v3031, 0.5
      %v3040 = vadd.f32 %v3032, 0.5
      %v3041 = vadd.f32 %v3033, 0.5
      %v3042 = vadd.f32 %v3034, 0.5
      %v3043 = vadd.f32 %v3035, 0.5
      %v3044 = vadd.f32 %v3036, 0.5
      %v3045 = vadd.f32 %v3037, 0.5
      %v3046 = vrot.slane %v2950, 2
      %v3047 = vrot.slane %v2951, 2
      %v3048 = vrot.slane %v2952, 2
      %v3049 = vrot.slane %v2953, 2
      %v3050 = vrot.slane %v2954, 2
      %v3051 = vrot.slane %v2955, 2
      %v3052 = vrot.slane %v2956, 2
      %v3053 = vrot.slane %v2957, 2
      %v3062 = vtanh.pop %v3046
      %v3063 = vtanh.pop %v3047
      %v3064 = vtanh.pop %v3048
      %v3065 = vtanh.pop %v3049
      %v3066 = vtanh.pop %v3050
      %v3067 = vtanh.pop %v3051
      %v3068 = vtanh.pop %v3052
      %v3069 = vtanh.pop %v3053
      %v3070 = vrot.slane %v2950, 3
      %v3071 = vrot.slane %v2951, 3
      %v3072 = vrot.slane %v2952, 3
      %v3073 = vrot.slane %v2953, 3
      %v3074 = vrot.slane %v2954, 3
      %v3075 = vrot.slane %v2955, 3
      %v3076 = vrot.slane %v2956, 3
      %v3077 = vrot.slane %v2957, 3
      %v3086 = vmul.f32 %v3070, 0.5
      %v3087 = vmul.f32 %v3071, 0.5
      %v3088 = vmul.f32 %v3072, 0.5
      %v3089 = vmul.f32 %v3073, 0.5
      %v3090 = vmul.f32 %v3074, 0.5
      %v3091 = vmul.f32 %v3075, 0.5
      %v3092 = vmul.f32 %v3076, 0.5
      %v3093 = vmul.f32 %v3077, 0.5
      %v3094 = vtanh.pop %v3086
      %v3095 = vtanh.pop %v3087
      %v3096 = vtanh.pop %v3088
      %v3097 = vtanh.pop %v3089
      %v3098 = vtanh.pop %v3090
      %v3099 = vtanh.pop %v3091
      %v3100 = vtanh.pop %v3092
      %v3101 = vtanh.pop %v3093
      %v3102 = vmul.f32 %v3094, 0.5
      %v3103 = vmul.f32 %v3095, 0.5
      %v3104 = vmul.f32 %v3096, 0.5
      %v3105 = vmul.f32 %v3097, 0.5
      %v3106 = vmul.f32 %v3098, 0.5
      %v3107 = vmul.f32 %v3099, 0.5
      %v3108 = vmul.f32 %v3100, 0.5
      %v3109 = vmul.f32 %v3101, 0.5
      %v3110 = vadd.f32 %v3102, 0.5
      %v3111 = vadd.f32 %v3103, 0.5
      %v3112 = vadd.f32 %v3104, 0.5
      %v3113 = vadd.f32 %v3105, 0.5
      %v3114 = vadd.f32 %v3106, 0.5
      %v3115 = vadd.f32 %v3107, 0.5
      %v3116 = vadd.f32 %v3108, 0.5
      %v3117 = vadd.f32 %v3109, 0.5
      %v3119 = vrot.slane %v2702, 1
      %v3120 = vrot.slane %v2702, 2
      %v3121 = vrot.slane %v2702, 3
      %v3122 = vrot.slane %v2702, 4
      %v3123 = vrot.slane %v2702, 5
      %v3124 = vrot.slane %v2702, 6
      %v3125 = vrot.slane %v2702, 7
      %v3133 = vmul.f32 %v3038, %v2702
      %v3134 = vmul.f32 %v3039, %v3119
      %v3135 = vmul.f32 %v3040, %v3120
      %v3136 = vmul.f32 %v3041, %v3121
      %v3137 = vmul.f32 %v3042, %v3122
      %v3138 = vmul.f32 %v3043, %v3123
      %v3139 = vmul.f32 %v3044, %v3124
      %v3140 = vmul.f32 %v3045, %v3125
      %v3141 = vmul.f32 %v2982, %v3062
      %v3142 = vmul.f32 %v2983, %v3063
      %v3143 = vmul.f32 %v2984, %v3064
      %v3144 = vmul.f32 %v2985, %v3065
      %v3145 = vmul.f32 %v2986, %v3066
      %v3146 = vmul.f32 %v2987, %v3067
      %v3147 = vmul.f32 %v2988, %v3068
      %v3148 = vmul.f32 %v2989, %v3069
      %v3149 = vadd.f32 %v3133, %v3141
      %v3150 = vadd.f32 %v3134, %v3142
      %v3151 = vadd.f32 %v3135, %v3143
      %v3152 = vadd.f32 %v3136, %v3144
      %v3153 = vadd.f32 %v3137, %v3145
      %v3154 = vadd.f32 %v3138, %v3146
      %v3155 = vadd.f32 %v3139, %v3147
      %v3156 = vadd.f32 %v3140, %v3148
      %v3157 = vtanh.pop %v3149
      %v3158 = vtanh.pop %v3150
      %v3159 = vtanh.pop %v3151
      %v3160 = vtanh.pop %v3152
      %v3161 = vtanh.pop %v3153
      %v3162 = vtanh.pop %v3154
      %v3163 = vtanh.pop %v3155
      %v3164 = vtanh.pop %v3156
      %v3165 = vmul.f32 %v3110, %v3157
      %v3166 = vmul.f32 %v3111, %v3158
      %v3167 = vmul.f32 %v3112, %v3159
      %v3168 = vmul.f32 %v3113, %v3160
      %v3169 = vmul.f32 %v3114, %v3161
      %v3170 = vmul.f32 %v3115, %v3162
      %v3171 = vmul.f32 %v3116, %v3163
      %v3172 = vmul.f32 %v3117, %v3164
      %s3173 = sadd.s32 %s53, 5
      %v3174 = vstv %s3173
      %vm3175 = vcmp.gt.s32.totalorder %v77, %v3174
      %v3176 = vsel %vm3175, 1, 0
      %3177 = vset.pattern.permute.xlu0 0
      %3178 = vperm.xlu0 %3177, %v3176
      %v3179 = vpop.permute.xlu0 %3178
      %vm3180 = vcmp.eq.s32.totalorder %v3179, 1
      %3189 = vst [vmem:[#allocation1] ss:$9 sm:$0xff] %v3165
      %s3190 = scalar_lea.vmem [#allocation1], 1
      %3191 = vst [vmem:[%s3190] ss:$9 sm:$0xff] %v3166
      %s3192 = scalar_lea.vmem [#allocation1], 2
      %3193 = vst [vmem:[%s3192] ss:$9 sm:$0xff] %v3167
      %s3194 = scalar_lea.vmem [#allocation1], 3
      %3195 = vst [vmem:[%s3194] ss:$9 sm:$0xff] %v3168
      %s3196 = scalar_lea.vmem [#allocation1], 4
      %3197 = vst [vmem:[%s3196] ss:$9 sm:$0xff] %v3169
      %s3198 = scalar_lea.vmem [#allocation1], 5
      %3199 = vst [vmem:[%s3198] ss:$9 sm:$0xff] %v3170
      %s3200 = scalar_lea.vmem [#allocation1], 6
      %3201 = vst [vmem:[%s3200] ss:$9 sm:$0xff] %v3171
      %s3202 = scalar_lea.vmem [#allocation1], 7
      %3203 = vst [vmem:[%s3202] ss:$9 sm:$0xff] %v3172
      %v3204 = vld [vmem:[#allocation1] sm:$0xff]
      %v3206 = vsel %vm3180, %v3204, %v2676
      %3215 = vst [vmem:[#allocation1] ss:$9 sm:$0xff] %v3149
      %s3216 = scalar_lea.vmem [#allocation1], 1
      %3217 = vst [vmem:[%s3216] ss:$9 sm:$0xff] %v3150
      %s3218 = scalar_lea.vmem [#allocation1], 2
      %3219 = vst [vmem:[%s3218] ss:$9 sm:$0xff] %v3151
      %s3220 = scalar_lea.vmem [#allocation1], 3
      %3221 = vst [vmem:[%s3220] ss:$9 sm:$0xff] %v3152
      %s3222 = scalar_lea.vmem [#allocation1], 4
      %3223 = vst [vmem:[%s3222] ss:$9 sm:$0xff] %v3153
      %s3224 = scalar_lea.vmem [#allocation1], 5
      %3225 = vst [vmem:[%s3224] ss:$9 sm:$0xff] %v3154
      %s3226 = scalar_lea.vmem [#allocation1], 6
      %3227 = vst [vmem:[%s3226] ss:$9 sm:$0xff] %v3155
      %s3228 = scalar_lea.vmem [#allocation1], 7
      %3229 = vst [vmem:[%s3228] ss:$9 sm:$0xff] %v3156
      %v3230 = vld [vmem:[#allocation1] sm:$0xff]
      %v3232 = vsel %vm3180, %v3230, %v2702
      %3233 = vst [vmem:[#allocation1] ss:$9 sm:$0xff] %v3165
      %s3234 = scalar_lea.vmem [#allocation1], 1
      %3235 = vst [vmem:[%s3234] ss:$9 sm:$0xff] %v3166
      %s3236 = scalar_lea.vmem [#allocation1], 2
      %3237 = vst [vmem:[%s3236] ss:$9 sm:$0xff] %v3167
      %s3238 = scalar_lea.vmem [#allocation1], 3
      %3239 = vst [vmem:[%s3238] ss:$9 sm:$0xff] %v3168
      %s3240 = scalar_lea.vmem [#allocation1], 4
      %3241 = vst [vmem:[%s3240] ss:$9 sm:$0xff] %v3169
      %s3242 = scalar_lea.vmem [#allocation1], 5
      %3243 = vst [vmem:[%s3242] ss:$9 sm:$0xff] %v3170
      %s3244 = scalar_lea.vmem [#allocation1], 6
      %3245 = vst [vmem:[%s3244] ss:$9 sm:$0xff] %v3171
      %s3246 = scalar_lea.vmem [#allocation1], 7
      %3247 = vst [vmem:[%s3246] ss:$9 sm:$0xff] %v3172
      %v3248 = vld [vmem:[#allocation1] sm:$0xff]
      %v3250 = vsel %vm3180, %v3248, 0.0
      %v3252 = vrot.slane %v3250, 1
      %v3253 = vrot.slane %v3250, 2
      %v3254 = vrot.slane %v3250, 3
      %v3255 = vrot.slane %v3250, 4
      %v3256 = vrot.slane %v3250, 5
      %v3257 = vrot.slane %v3250, 6
      %v3258 = vrot.slane %v3250, 7
      %3266 = vst [vmem:[#allocation9 + $0x5] sm:$0x1] %v3250
      %3267 = vst [vmem:[#allocation9 + $0xd] sm:$0x1] %v3252
      %3268 = vst [vmem:[#allocation9 + $0x15] sm:$0x1] %v3253
      %3269 = vst [vmem:[#allocation9 + $0x1d] sm:$0x1] %v3254
      %3270 = vst [vmem:[#allocation9 + $0x25] sm:$0x1] %v3255
      %3271 = vst [vmem:[#allocation9 + $0x2d] sm:$0x1] %v3256
      %3272 = vst [vmem:[#allocation9 + $0x35] sm:$0x1] %v3257
      %3273 = vst [vmem:[#allocation9 + $0x3d] sm:$0x1] %v3258
      %s3274 = scalar_lea.vmem [#allocation4], 6
      %v3275 = vld [vmem:[%s3274] ss:$8 sm:$0xf]
      %s3276 = scalar_lea.vmem [#allocation4], 38
      %v3277 = vld [vmem:[%s3276] ss:$8 sm:$0xf]
      %s3278 = scalar_lea.vmem [#allocation4], 70
      %v3279 = vld [vmem:[%s3278] ss:$8 sm:$0xf]
      %s3280 = scalar_lea.vmem [#allocation4], 102
      %v3281 = vld [vmem:[%s3280] ss:$8 sm:$0xf]
      %s3282 = scalar_lea.vmem [#allocation4], 134
      %v3283 = vld [vmem:[%s3282] ss:$8 sm:$0xf]
      %s3284 = scalar_lea.vmem [#allocation4], 166
      %v3285 = vld [vmem:[%s3284] ss:$8 sm:$0xf]
      %s3286 = scalar_lea.vmem [#allocation4], 198
      %v3287 = vld [vmem:[%s3286] ss:$8 sm:$0xf]
      %s3288 = scalar_lea.vmem [#allocation4], 230
      %v3289 = vld [vmem:[%s3288] ss:$8 sm:$0xf]
      %v3290 = vld [vmem:[#allocation7] sm:$0xff]
      %v3291 = vld [vmem:[#allocation7 + $0x8] sm:$0xff]
      %v3292 = vld [vmem:[#allocation7 + $0x10] sm:$0xff]
      %v3293 = vld [vmem:[#allocation7 + $0x18] sm:$0xff]
      %v3294 = vld [vmem:[#allocation7 + $0x20] sm:$0xff]
      %v3295 = vld [vmem:[#allocation7 + $0x28] sm:$0xff]
      %v3296 = vld [vmem:[#allocation7 + $0x30] sm:$0xff]
      %v3297 = vld [vmem:[#allocation7 + $0x38] sm:$0xff]
      %v3298 = vld [vmem:[#allocation7 + $0x40] sm:$0xff]
      %v3299 = vld [vmem:[#allocation7 + $0x48] sm:$0xff]
      %v3300 = vld [vmem:[#allocation7 + $0x50] sm:$0xff]
      %v3301 = vld [vmem:[#allocation7 + $0x58] sm:$0xff]
      %v3302 = vld [vmem:[#allocation7 + $0x60] sm:$0xff]
      %v3303 = vld [vmem:[#allocation7 + $0x68] sm:$0xff]
      %v3304 = vld [vmem:[#allocation7 + $0x70] sm:$0xff]
      %v3305 = vld [vmem:[#allocation7 + $0x78] sm:$0xff]
      %v3306 = vld [vmem:[#allocation7 + $0x80] sm:$0xff]
      %v3307 = vld [vmem:[#allocation7 + $0x88] sm:$0xff]
      %v3308 = vld [vmem:[#allocation7 + $0x90] sm:$0xff]
      %v3309 = vld [vmem:[#allocation7 + $0x98] sm:$0xff]
      %v3310 = vld [vmem:[#allocation7 + $0xa0] sm:$0xff]
      %v3311 = vld [vmem:[#allocation7 + $0xa8] sm:$0xff]
      %v3312 = vld [vmem:[#allocation7 + $0xb0] sm:$0xff]
      %v3313 = vld [vmem:[#allocation7 + $0xb8] sm:$0xff]
      %v3314 = vld [vmem:[#allocation7 + $0xc0] sm:$0xff]
      %v3315 = vld [vmem:[#allocation7 + $0xc8] sm:$0xff]
      %v3316 = vld [vmem:[#allocation7 + $0xd0] sm:$0xff]
      %v3317 = vld [vmem:[#allocation7 + $0xd8] sm:$0xff]
      %v3318 = vld [vmem:[#allocation7 + $0xe0] sm:$0xff]
      %v3319 = vld [vmem:[#allocation7 + $0xe8] sm:$0xff]
      %v3320 = vld [vmem:[#allocation7 + $0xf0] sm:$0xff]
      %v3321 = vld [vmem:[#allocation7 + $0xf8] sm:$0xff]
      %v3322 = vld [vmem:[#allocation7 + $0x100] sm:$0xff]
      %v3323 = vld [vmem:[#allocation7 + $0x108] sm:$0xff]
      %v3324 = vld [vmem:[#allocation7 + $0x110] sm:$0xff]
      %v3325 = vld [vmem:[#allocation7 + $0x118] sm:$0xff]
      %v3326 = vld [vmem:[#allocation7 + $0x120] sm:$0xff]
      %v3327 = vld [vmem:[#allocation7 + $0x128] sm:$0xff]
      %v3328 = vld [vmem:[#allocation7 + $0x130] sm:$0xff]
      %v3329 = vld [vmem:[#allocation7 + $0x138] sm:$0xff]
      %v3330 = vld [vmem:[#allocation7 + $0x140] sm:$0xff]
      %v3331 = vld [vmem:[#allocation7 + $0x148] sm:$0xff]
      %v3332 = vld [vmem:[#allocation7 + $0x150] sm:$0xff]
      %v3333 = vld [vmem:[#allocation7 + $0x158] sm:$0xff]
      %v3334 = vld [vmem:[#allocation7 + $0x160] sm:$0xff]
      %v3335 = vld [vmem:[#allocation7 + $0x168] sm:$0xff]
      %v3336 = vld [vmem:[#allocation7 + $0x170] sm:$0xff]
      %v3337 = vld [vmem:[#allocation7 + $0x178] sm:$0xff]
      %v3338 = vld [vmem:[#allocation7 + $0x180] sm:$0xff]
      %v3339 = vld [vmem:[#allocation7 + $0x188] sm:$0xff]
      %v3340 = vld [vmem:[#allocation7 + $0x190] sm:$0xff]
      %v3341 = vld [vmem:[#allocation7 + $0x198] sm:$0xff]
      %v3342 = vld [vmem:[#allocation7 + $0x1a0] sm:$0xff]
      %v3343 = vld [vmem:[#allocation7 + $0x1a8] sm:$0xff]
      %v3344 = vld [vmem:[#allocation7 + $0x1b0] sm:$0xff]
      %v3345 = vld [vmem:[#allocation7 + $0x1b8] sm:$0xff]
      %v3346 = vld [vmem:[#allocation7 + $0x1c0] sm:$0xff]
      %v3347 = vld [vmem:[#allocation7 + $0x1c8] sm:$0xff]
      %v3348 = vld [vmem:[#allocation7 + $0x1d0] sm:$0xff]
      %v3349 = vld [vmem:[#allocation7 + $0x1d8] sm:$0xff]
      %v3350 = vld [vmem:[#allocation7 + $0x1e0] sm:$0xff]
      %v3351 = vld [vmem:[#allocation7 + $0x1e8] sm:$0xff]
      %v3352 = vld [vmem:[#allocation7 + $0x1f0] sm:$0xff]
      %v3353 = vld [vmem:[#allocation7 + $0x1f8] sm:$0xff]
      %3354 = vmatpush.msra.mxu0 %v3350
      %3355 = vmatpush.msra.mxu0 %v3346
      %3356 = vmatpush.msra.mxu0 %v3342
      %3357 = vmatpush.msra.mxu0 %v3338
      %3358 = vmatpush.msra.mxu0 %v3334
      %3359 = vmatpush.msra.mxu0 %v3330
      %3360 = vmatpush.msra.mxu0 %v3326
      %3361 = vmatpush.msra.mxu0 %v3322
      %3362 = vmatpush.msra.mxu0 %v3318
      %3363 = vmatpush.msra.mxu0 %v3314
      %3364 = vmatpush.msra.mxu0 %v3310
      %3365 = vmatpush.msra.mxu0 %v3306
      %3366 = vmatpush.msra.mxu0 %v3302
      %3367 = vmatpush.msra.mxu0 %v3298
      %3368 = vmatpush.msra.mxu0 %v3294
      %3369 = vmatpush.msra.mxu0 %v3290
      %3370 = vmatmul.f32.gmra.mxu0 %v3206
      %v3371 = vpop.f32.mrf.mxu0
      %v3372 = vadd.f32 0.0, %v3371
      %3373 = vdwg.mxu0
      %3374 = vmatpush.msra.mxu0 %v3351
      %3375 = vmatpush.msra.mxu0 %v3347
      %3376 = vmatpush.msra.mxu0 %v3343
      %3377 = vmatpush.msra.mxu0 %v3339
      %3378 = vmatpush.msra.mxu0 %v3335
      %3379 = vmatpush.msra.mxu0 %v3331
      %3380 = vmatpush.msra.mxu0 %v3327
      %3381 = vmatpush.msra.mxu0 %v3323
      %3382 = vmatpush.msra.mxu0 %v3319
      %3383 = vmatpush.msra.mxu0 %v3315
      %3384 = vmatpush.msra.mxu0 %v3311
      %3385 = vmatpush.msra.mxu0 %v3307
      %3386 = vmatpush.msra.mxu0 %v3303
      %3387 = vmatpush.msra.mxu0 %v3299
      %3388 = vmatpush.msra.mxu0 %v3295
      %3389 = vmatpush.msra.mxu0 %v3291
      %3390 = vmatmul.f32.gmra.mxu0 %v3206
      %v3391 = vpop.f32.mrf.mxu0
      %v3392 = vadd.f32 0.0, %v3391
      %3393 = vdwg.mxu0
      %3394 = vmatpush.msra.mxu0 %v3352
      %3395 = vmatpush.msra.mxu0 %v3348
      %3396 = vmatpush.msra.mxu0 %v3344
      %3397 = vmatpush.msra.mxu0 %v3340
      %3398 = vmatpush.msra.mxu0 %v3336
      %3399 = vmatpush.msra.mxu0 %v3332
      %3400 = vmatpush.msra.mxu0 %v3328
      %3401 = vmatpush.msra.mxu0 %v3324
      %3402 = vmatpush.msra.mxu0 %v3320
      %3403 = vmatpush.msra.mxu0 %v3316
      %3404 = vmatpush.msra.mxu0 %v3312
      %3405 = vmatpush.msra.mxu0 %v3308
      %3406 = vmatpush.msra.mxu0 %v3304
      %3407 = vmatpush.msra.mxu0 %v3300
      %3408 = vmatpush.msra.mxu0 %v3296
      %3409 = vmatpush.msra.mxu0 %v3292
      %3410 = vmatmul.f32.gmra.mxu0 %v3206
      %v3411 = vpop.f32.mrf.mxu0
      %v3412 = vadd.f32 0.0, %v3411
      %3413 = vdwg.mxu0
      %3414 = vmatpush.msra.mxu0 %v3353
      %3415 = vmatpush.msra.mxu0 %v3349
      %3416 = vmatpush.msra.mxu0 %v3345
      %3417 = vmatpush.msra.mxu0 %v3341
      %3418 = vmatpush.msra.mxu0 %v3337
      %3419 = vmatpush.msra.mxu0 %v3333
      %3420 = vmatpush.msra.mxu0 %v3329
      %3421 = vmatpush.msra.mxu0 %v3325
      %3422 = vmatpush.msra.mxu0 %v3321
      %3423 = vmatpush.msra.mxu0 %v3317
      %3424 = vmatpush.msra.mxu0 %v3313
      %3425 = vmatpush.msra.mxu0 %v3309
      %3426 = vmatpush.msra.mxu0 %v3305
      %3427 = vmatpush.msra.mxu0 %v3301
      %3428 = vmatpush.msra.mxu0 %v3297
      %3429 = vmatpush.msra.mxu0 %v3293
      %3430 = vmatmul.f32.gmra.mxu0 %v3206
      %v3431 = vpop.f32.mrf.mxu0
      %v3432 = vadd.f32 0.0, %v3431
      %3433 = vdwg.mxu0
      %v3438 = vrot.slane %v3392, 7
      %v3439 = vrot.slane %v3412, 6
      %v3440 = vrot.slane %v3432, 5
      %v3441 = vsel %vm246, %v3372, %v3438
      %v3442 = vsel %vm248, %v3439, %v3440
      %v3443 = vsel %vm250, %v3441, %v3442
      %v3444 = vsel %vm252, %v3372, %v3438
      %v3445 = vsel %vm254, %v3439, %v3440
      %v3446 = vsel %vm256, %v3444, %v3445
      %v3447 = vrot.slane %v3446, 1
      %v3448 = vsel %vm248, %v3372, %v3438
      %v3449 = vsel %vm260, %v3439, %v3440
      %v3450 = vsel %vm262, %v3448, %v3449
      %v3451 = vrot.slane %v3450, 2
      %v3452 = vsel %vm254, %v3372, %v3438
      %v3453 = vsel %vm266, %v3439, %v3440
      %v3454 = vsel %vm268, %v3452, %v3453
      %v3455 = vrot.slane %v3454, 3
      %v3456 = vsel %vm260, %v3372, %v3438
      %v3457 = vsel %vm272, %v3439, %v3440
      %v3458 = vsel %vm274, %v3456, %v3457
      %v3459 = vrot.slane %v3458, 4
      %v3460 = vsel %vm266, %v3372, %v3438
      %v3461 = vsel %vm278, %v3440, %v3439
      %v3462 = vsel %vm280, %v3460, %v3461
      %v3463 = vrot.slane %v3462, 5
      %v3464 = vsel %vm272, %v3372, %v3438
      %v3465 = vsel %vm246, %v3439, %v3440
      %v3466 = vsel %vm285, %v3465, %v3464
      %v3467 = vrot.slane %v3466, 6
      %v3468 = vsel %vm278, %v3438, %v3372
      %v3469 = vsel %vm252, %v3439, %v3440
      %v3470 = vsel %vm290, %v3469, %v3468
      %v3471 = vrot.slane %v3470, 7
      %v3480 = vadd.f32 %v3275, %v3443
      %v3481 = vadd.f32 %v3277, %v3447
      %v3482 = vadd.f32 %v3279, %v3451
      %v3483 = vadd.f32 %v3281, %v3455
      %v3484 = vadd.f32 %v3283, %v3459
      %v3485 = vadd.f32 %v3285, %v3463
      %v3486 = vadd.f32 %v3287, %v3467
      %v3487 = vadd.f32 %v3289, %v3471
      %v3488 = vmul.f32 %v3480, 0.5
      %v3489 = vmul.f32 %v3481, 0.5
      %v3490 = vmul.f32 %v3482, 0.5
      %v3491 = vmul.f32 %v3483, 0.5
      %v3492 = vmul.f32 %v3484, 0.5
      %v3493 = vmul.f32 %v3485, 0.5
      %v3494 = vmul.f32 %v3486, 0.5
      %v3495 = vmul.f32 %v3487, 0.5
      %v3496 = vtanh.pop %v3488
      %v3497 = vtanh.pop %v3489
      %v3498 = vtanh.pop %v3490
      %v3499 = vtanh.pop %v3491
      %v3500 = vtanh.pop %v3492
      %v3501 = vtanh.pop %v3493
      %v3502 = vtanh.pop %v3494
      %v3503 = vtanh.pop %v3495
      %v3504 = vmul.f32 %v3496, 0.5
      %v3505 = vmul.f32 %v3497, 0.5
      %v3506 = vmul.f32 %v3498, 0.5
      %v3507 = vmul.f32 %v3499, 0.5
      %v3508 = vmul.f32 %v3500, 0.5
      %v3509 = vmul.f32 %v3501, 0.5
      %v3510 = vmul.f32 %v3502, 0.5
      %v3511 = vmul.f32 %v3503, 0.5
      %v3512 = vadd.f32 %v3504, 0.5
      %v3513 = vadd.f32 %v3505, 0.5
      %v3514 = vadd.f32 %v3506, 0.5
      %v3515 = vadd.f32 %v3507, 0.5
      %v3516 = vadd.f32 %v3508, 0.5
      %v3517 = vadd.f32 %v3509, 0.5
      %v3518 = vadd.f32 %v3510, 0.5
      %v3519 = vadd.f32 %v3511, 0.5
      %v3528 = vrot.slane %v3480, 1
      %v3529 = vrot.slane %v3481, 1
      %v3530 = vrot.slane %v3482, 1
      %v3531 = vrot.slane %v3483, 1
      %v3532 = vrot.slane %v3484, 1
      %v3533 = vrot.slane %v3485, 1
      %v3534 = vrot.slane %v3486, 1
      %v3535 = vrot.slane %v3487, 1
      %v3544 = vmul.f32 %v3528, 0.5
      %v3545 = vmul.f32 %v3529, 0.5
      %v3546 = vmul.f32 %v3530, 0.5
      %v3547 = vmul.f32 %v3531, 0.5
      %v3548 = vmul.f32 %v3532, 0.5
      %v3549 = vmul.f32 %v3533, 0.5
      %v3550 = vmul.f32 %v3534, 0.5
      %v3551 = vmul.f32 %v3535, 0.5
      %v3552 = vtanh.pop %v3544
      %v3553 = vtanh.pop %v3545
      %v3554 = vtanh.pop %v3546
      %v3555 = vtanh.pop %v3547
      %v3556 = vtanh.pop %v3548
      %v3557 = vtanh.pop %v3549
      %v3558 = vtanh.pop %v3550
      %v3559 = vtanh.pop %v3551
      %v3560 = vmul.f32 %v3552, 0.5
      %v3561 = vmul.f32 %v3553, 0.5
      %v3562 = vmul.f32 %v3554, 0.5
      %v3563 = vmul.f32 %v3555, 0.5
      %v3564 = vmul.f32 %v3556, 0.5
      %v3565 = vmul.f32 %v3557, 0.5
      %v3566 = vmul.f32 %v3558, 0.5
      %v3567 = vmul.f32 %v3559, 0.5
      %v3568 = vadd.f32 %v3560, 0.5
      %v3569 = vadd.f32 %v3561, 0.5
      %v3570 = vadd.f32 %v3562, 0.5
      %v3571 = vadd.f32 %v3563, 0.5
      %v3572 = vadd.f32 %v3564, 0.5
      %v3573 = vadd.f32 %v3565, 0.5
      %v3574 = vadd.f32 %v3566, 0.5
      %v3575 = vadd.f32 %v3567, 0.5
      %v3576 = vrot.slane %v3480, 2
      %v3577 = vrot.slane %v3481, 2
      %v3578 = vrot.slane %v3482, 2
      %v3579 = vrot.slane %v3483, 2
      %v3580 = vrot.slane %v3484, 2
      %v3581 = vrot.slane %v3485, 2
      %v3582 = vrot.slane %v3486, 2
      %v3583 = vrot.slane %v3487, 2
      %v3592 = vtanh.pop %v3576
      %v3593 = vtanh.pop %v3577
      %v3594 = vtanh.pop %v3578
      %v3595 = vtanh.pop %v3579
      %v3596 = vtanh.pop %v3580
      %v3597 = vtanh.pop %v3581
      %v3598 = vtanh.pop %v3582
      %v3599 = vtanh.pop %v3583
      %v3600 = vrot.slane %v3480, 3
      %v3601 = vrot.slane %v3481, 3
      %v3602 = vrot.slane %v3482, 3
      %v3603 = vrot.slane %v3483, 3
      %v3604 = vrot.slane %v3484, 3
      %v3605 = vrot.slane %v3485, 3
      %v3606 = vrot.slane %v3486, 3
      %v3607 = vrot.slane %v3487, 3
      %v3616 = vmul.f32 %v3600, 0.5
      %v3617 = vmul.f32 %v3601, 0.5
      %v3618 = vmul.f32 %v3602, 0.5
      %v3619 = vmul.f32 %v3603, 0.5
      %v3620 = vmul.f32 %v3604, 0.5
      %v3621 = vmul.f32 %v3605, 0.5
      %v3622 = vmul.f32 %v3606, 0.5
      %v3623 = vmul.f32 %v3607, 0.5
      %v3624 = vtanh.pop %v3616
      %v3625 = vtanh.pop %v3617
      %v3626 = vtanh.pop %v3618
      %v3627 = vtanh.pop %v3619
      %v3628 = vtanh.pop %v3620
      %v3629 = vtanh.pop %v3621
      %v3630 = vtanh.pop %v3622
      %v3631 = vtanh.pop %v3623
      %v3632 = vmul.f32 %v3624, 0.5
      %v3633 = vmul.f32 %v3625, 0.5
      %v3634 = vmul.f32 %v3626, 0.5
      %v3635 = vmul.f32 %v3627, 0.5
      %v3636 = vmul.f32 %v3628, 0.5
      %v3637 = vmul.f32 %v3629, 0.5
      %v3638 = vmul.f32 %v3630, 0.5
      %v3639 = vmul.f32 %v3631, 0.5
      %v3640 = vadd.f32 %v3632, 0.5
      %v3641 = vadd.f32 %v3633, 0.5
      %v3642 = vadd.f32 %v3634, 0.5
      %v3643 = vadd.f32 %v3635, 0.5
      %v3644 = vadd.f32 %v3636, 0.5
      %v3645 = vadd.f32 %v3637, 0.5
      %v3646 = vadd.f32 %v3638, 0.5
      %v3647 = vadd.f32 %v3639, 0.5
      %v3649 = vrot.slane %v3232, 1
      %v3650 = vrot.slane %v3232, 2
      %v3651 = vrot.slane %v3232, 3
      %v3652 = vrot.slane %v3232, 4
      %v3653 = vrot.slane %v3232, 5
      %v3654 = vrot.slane %v3232, 6
      %v3655 = vrot.slane %v3232, 7
      %v3663 = vmul.f32 %v3568, %v3232
      %v3664 = vmul.f32 %v3569, %v3649
      %v3665 = vmul.f32 %v3570, %v3650
      %v3666 = vmul.f32 %v3571, %v3651
      %v3667 = vmul.f32 %v3572, %v3652
      %v3668 = vmul.f32 %v3573, %v3653
      %v3669 = vmul.f32 %v3574, %v3654
      %v3670 = vmul.f32 %v3575, %v3655
      %v3671 = vmul.f32 %v3512, %v3592
      %v3672 = vmul.f32 %v3513, %v3593
      %v3673 = vmul.f32 %v3514, %v3594
      %v3674 = vmul.f32 %v3515, %v3595
      %v3675 = vmul.f32 %v3516, %v3596
      %v3676 = vmul.f32 %v3517, %v3597
      %v3677 = vmul.f32 %v3518, %v3598
      %v3678 = vmul.f32 %v3519, %v3599
      %v3679 = vadd.f32 %v3663, %v3671
      %v3680 = vadd.f32 %v3664, %v3672
      %v3681 = vadd.f32 %v3665, %v3673
      %v3682 = vadd.f32 %v3666, %v3674
      %v3683 = vadd.f32 %v3667, %v3675
      %v3684 = vadd.f32 %v3668, %v3676
      %v3685 = vadd.f32 %v3669, %v3677
      %v3686 = vadd.f32 %v3670, %v3678
      %v3687 = vtanh.pop %v3679
      %v3688 = vtanh.pop %v3680
      %v3689 = vtanh.pop %v3681
      %v3690 = vtanh.pop %v3682
      %v3691 = vtanh.pop %v3683
      %v3692 = vtanh.pop %v3684
      %v3693 = vtanh.pop %v3685
      %v3694 = vtanh.pop %v3686
      %v3695 = vmul.f32 %v3640, %v3687
      %v3696 = vmul.f32 %v3641, %v3688
      %v3697 = vmul.f32 %v3642, %v3689
      %v3698 = vmul.f32 %v3643, %v3690
      %v3699 = vmul.f32 %v3644, %v3691
      %v3700 = vmul.f32 %v3645, %v3692
      %v3701 = vmul.f32 %v3646, %v3693
      %v3702 = vmul.f32 %v3647, %v3694
      %s3703 = sadd.s32 %s53, 6
      %v3704 = vstv %s3703
      %vm3705 = vcmp.gt.s32.totalorder %v77, %v3704
      %v3706 = vsel %vm3705, 1, 0
      %3707 = vset.pattern.permute.xlu0 0
      %3708 = vperm.xlu0 %3707, %v3706
      %v3709 = vpop.permute.xlu0 %3708
      %vm3710 = vcmp.eq.s32.totalorder %v3709, 1
      %3719 = vst [vmem:[#allocation1] ss:$9 sm:$0xff] %v3695
      %s3720 = scalar_lea.vmem [#allocation1], 1
      %3721 = vst [vmem:[%s3720] ss:$9 sm:$0xff] %v3696
      %s3722 = scalar_lea.vmem [#allocation1], 2
      %3723 = vst [vmem:[%s3722] ss:$9 sm:$0xff] %v3697
      %s3724 = scalar_lea.vmem [#allocation1], 3
      %3725 = vst [vmem:[%s3724] ss:$9 sm:$0xff] %v3698
      %s3726 = scalar_lea.vmem [#allocation1], 4
      %3727 = vst [vmem:[%s3726] ss:$9 sm:$0xff] %v3699
      %s3728 = scalar_lea.vmem [#allocation1], 5
      %3729 = vst [vmem:[%s3728] ss:$9 sm:$0xff] %v3700
      %s3730 = scalar_lea.vmem [#allocation1], 6
      %3731 = vst [vmem:[%s3730] ss:$9 sm:$0xff] %v3701
      %s3732 = scalar_lea.vmem [#allocation1], 7
      %3733 = vst [vmem:[%s3732] ss:$9 sm:$0xff] %v3702
      %v3734 = vld [vmem:[#allocation1] sm:$0xff]
      %v3736 = vsel %vm3710, %v3734, %v3206
      %3745 = vst [vmem:[#allocation1] ss:$9 sm:$0xff] %v3679
      %s3746 = scalar_lea.vmem [#allocation1], 1
      %3747 = vst [vmem:[%s3746] ss:$9 sm:$0xff] %v3680
      %s3748 = scalar_lea.vmem [#allocation1], 2
      %3749 = vst [vmem:[%s3748] ss:$9 sm:$0xff] %v3681
      %s3750 = scalar_lea.vmem [#allocation1], 3
      %3751 = vst [vmem:[%s3750] ss:$9 sm:$0xff] %v3682
      %s3752 = scalar_lea.vmem [#allocation1], 4
      %3753 = vst [vmem:[%s3752] ss:$9 sm:$0xff] %v3683
      %s3754 = scalar_lea.vmem [#allocation1], 5
      %3755 = vst [vmem:[%s3754] ss:$9 sm:$0xff] %v3684
      %s3756 = scalar_lea.vmem [#allocation1], 6
      %3757 = vst [vmem:[%s3756] ss:$9 sm:$0xff] %v3685
      %s3758 = scalar_lea.vmem [#allocation1], 7
      %3759 = vst [vmem:[%s3758] ss:$9 sm:$0xff] %v3686
      %v3760 = vld [vmem:[#allocation1] sm:$0xff]
      %v3762 = vsel %vm3710, %v3760, %v3232
      %3763 = vst [vmem:[#allocation1] ss:$9 sm:$0xff] %v3695
      %s3764 = scalar_lea.vmem [#allocation1], 1
      %3765 = vst [vmem:[%s3764] ss:$9 sm:$0xff] %v3696
      %s3766 = scalar_lea.vmem [#allocation1], 2
      %3767 = vst [vmem:[%s3766] ss:$9 sm:$0xff] %v3697
      %s3768 = scalar_lea.vmem [#allocation1], 3
      %3769 = vst [vmem:[%s3768] ss:$9 sm:$0xff] %v3698
      %s3770 = scalar_lea.vmem [#allocation1], 4
      %3771 = vst [vmem:[%s3770] ss:$9 sm:$0xff] %v3699
      %s3772 = scalar_lea.vmem [#allocation1], 5
      %3773 = vst [vmem:[%s3772] ss:$9 sm:$0xff] %v3700
      %s3774 = scalar_lea.vmem [#allocation1], 6
      %3775 = vst [vmem:[%s3774] ss:$9 sm:$0xff] %v3701
      %s3776 = scalar_lea.vmem [#allocation1], 7
      %3777 = vst [vmem:[%s3776] ss:$9 sm:$0xff] %v3702
      %v3778 = vld [vmem:[#allocation1] sm:$0xff]
      %v3780 = vsel %vm3710, %v3778, 0.0
      %v3782 = vrot.slane %v3780, 1
      %v3783 = vrot.slane %v3780, 2
      %v3784 = vrot.slane %v3780, 3
      %v3785 = vrot.slane %v3780, 4
      %v3786 = vrot.slane %v3780, 5
      %v3787 = vrot.slane %v3780, 6
      %v3788 = vrot.slane %v3780, 7
      %3796 = vst [vmem:[#allocation9 + $0x6] sm:$0x1] %v3780
      %3797 = vst [vmem:[#allocation9 + $0xe] sm:$0x1] %v3782
      %3798 = vst [vmem:[#allocation9 + $0x16] sm:$0x1] %v3783
      %3799 = vst [vmem:[#allocation9 + $0x1e] sm:$0x1] %v3784
      %3800 = vst [vmem:[#allocation9 + $0x26] sm:$0x1] %v3785
      %3801 = vst [vmem:[#allocation9 + $0x2e] sm:$0x1] %v3786
      %3802 = vst [vmem:[#allocation9 + $0x36] sm:$0x1] %v3787
      %3803 = vst [vmem:[#allocation9 + $0x3e] sm:$0x1] %v3788
      %s3804 = scalar_lea.vmem [#allocation4], 7
      %v3805 = vld [vmem:[%s3804] ss:$8 sm:$0xf]
      %s3806 = scalar_lea.vmem [#allocation4], 39
      %v3807 = vld [vmem:[%s3806] ss:$8 sm:$0xf]
      %s3808 = scalar_lea.vmem [#allocation4], 71
      %v3809 = vld [vmem:[%s3808] ss:$8 sm:$0xf]
      %s3810 = scalar_lea.vmem [#allocation4], 103
      %v3811 = vld [vmem:[%s3810] ss:$8 sm:$0xf]
      %s3812 = scalar_lea.vmem [#allocation4], 135
      %v3813 = vld [vmem:[%s3812] ss:$8 sm:$0xf]
      %s3814 = scalar_lea.vmem [#allocation4], 167
      %v3815 = vld [vmem:[%s3814] ss:$8 sm:$0xf]
      %s3816 = scalar_lea.vmem [#allocation4], 199
      %v3817 = vld [vmem:[%s3816] ss:$8 sm:$0xf]
      %s3818 = scalar_lea.vmem [#allocation4], 231
      %v3819 = vld [vmem:[%s3818] ss:$8 sm:$0xf]
      %v3820 = vld [vmem:[#allocation7] sm:$0xff]
      %v3821 = vld [vmem:[#allocation7 + $0x8] sm:$0xff]
      %v3822 = vld [vmem:[#allocation7 + $0x10] sm:$0xff]
      %v3823 = vld [vmem:[#allocation7 + $0x18] sm:$0xff]
      %v3824 = vld [vmem:[#allocation7 + $0x20] sm:$0xff]
      %v3825 = vld [vmem:[#allocation7 + $0x28] sm:$0xff]
      %v3826 = vld [vmem:[#allocation7 + $0x30] sm:$0xff]
      %v3827 = vld [vmem:[#allocation7 + $0x38] sm:$0xff]
      %v3828 = vld [vmem:[#allocation7 + $0x40] sm:$0xff]
      %v3829 = vld [vmem:[#allocation7 + $0x48] sm:$0xff]
      %v3830 = vld [vmem:[#allocation7 + $0x50] sm:$0xff]
      %v3831 = vld [vmem:[#allocation7 + $0x58] sm:$0xff]
      %v3832 = vld [vmem:[#allocation7 + $0x60] sm:$0xff]
      %v3833 = vld [vmem:[#allocation7 + $0x68] sm:$0xff]
      %v3834 = vld [vmem:[#allocation7 + $0x70] sm:$0xff]
      %v3835 = vld [vmem:[#allocation7 + $0x78] sm:$0xff]
      %v3836 = vld [vmem:[#allocation7 + $0x80] sm:$0xff]
      %v3837 = vld [vmem:[#allocation7 + $0x88] sm:$0xff]
      %v3838 = vld [vmem:[#allocation7 + $0x90] sm:$0xff]
      %v3839 = vld [vmem:[#allocation7 + $0x98] sm:$0xff]
      %v3840 = vld [vmem:[#allocation7 + $0xa0] sm:$0xff]
      %v3841 = vld [vmem:[#allocation7 + $0xa8] sm:$0xff]
      %v3842 = vld [vmem:[#allocation7 + $0xb0] sm:$0xff]
      %v3843 = vld [vmem:[#allocation7 + $0xb8] sm:$0xff]
      %v3844 = vld [vmem:[#allocation7 + $0xc0] sm:$0xff]
      %v3845 = vld [vmem:[#allocation7 + $0xc8] sm:$0xff]
      %v3846 = vld [vmem:[#allocation7 + $0xd0] sm:$0xff]
      %v3847 = vld [vmem:[#allocation7 + $0xd8] sm:$0xff]
      %v3848 = vld [vmem:[#allocation7 + $0xe0] sm:$0xff]
      %v3849 = vld [vmem:[#allocation7 + $0xe8] sm:$0xff]
      %v3850 = vld [vmem:[#allocation7 + $0xf0] sm:$0xff]
      %v3851 = vld [vmem:[#allocation7 + $0xf8] sm:$0xff]
      %v3852 = vld [vmem:[#allocation7 + $0x100] sm:$0xff]
      %v3853 = vld [vmem:[#allocation7 + $0x108] sm:$0xff]
      %v3854 = vld [vmem:[#allocation7 + $0x110] sm:$0xff]
      %v3855 = vld [vmem:[#allocation7 + $0x118] sm:$0xff]
      %v3856 = vld [vmem:[#allocation7 + $0x120] sm:$0xff]
      %v3857 = vld [vmem:[#allocation7 + $0x128] sm:$0xff]
      %v3858 = vld [vmem:[#allocation7 + $0x130] sm:$0xff]
      %v3859 = vld [vmem:[#allocation7 + $0x138] sm:$0xff]
      %v3860 = vld [vmem:[#allocation7 + $0x140] sm:$0xff]
      %v3861 = vld [vmem:[#allocation7 + $0x148] sm:$0xff]
      %v3862 = vld [vmem:[#allocation7 + $0x150] sm:$0xff]
      %v3863 = vld [vmem:[#allocation7 + $0x158] sm:$0xff]
      %v3864 = vld [vmem:[#allocation7 + $0x160] sm:$0xff]
      %v3865 = vld [vmem:[#allocation7 + $0x168] sm:$0xff]
      %v3866 = vld [vmem:[#allocation7 + $0x170] sm:$0xff]
      %v3867 = vld [vmem:[#allocation7 + $0x178] sm:$0xff]
      %v3868 = vld [vmem:[#allocation7 + $0x180] sm:$0xff]
      %v3869 = vld [vmem:[#allocation7 + $0x188] sm:$0xff]
      %v3870 = vld [vmem:[#allocation7 + $0x190] sm:$0xff]
      %v3871 = vld [vmem:[#allocation7 + $0x198] sm:$0xff]
      %v3872 = vld [vmem:[#allocation7 + $0x1a0] sm:$0xff]
      %v3873 = vld [vmem:[#allocation7 + $0x1a8] sm:$0xff]
      %v3874 = vld [vmem:[#allocation7 + $0x1b0] sm:$0xff]
      %v3875 = vld [vmem:[#allocation7 + $0x1b8] sm:$0xff]
      %v3876 = vld [vmem:[#allocation7 + $0x1c0] sm:$0xff]
      %v3877 = vld [vmem:[#allocation7 + $0x1c8] sm:$0xff]
      %v3878 = vld [vmem:[#allocation7 + $0x1d0] sm:$0xff]
      %v3879 = vld [vmem:[#allocation7 + $0x1d8] sm:$0xff]
      %v3880 = vld [vmem:[#allocation7 + $0x1e0] sm:$0xff]
      %v3881 = vld [vmem:[#allocation7 + $0x1e8] sm:$0xff]
      %v3882 = vld [vmem:[#allocation7 + $0x1f0] sm:$0xff]
      %v3883 = vld [vmem:[#allocation7 + $0x1f8] sm:$0xff]
      %3884 = vmatpush.msra.mxu0 %v3880
      %3885 = vmatpush.msra.mxu0 %v3876
      %3886 = vmatpush.msra.mxu0 %v3872
      %3887 = vmatpush.msra.mxu0 %v3868
      %3888 = vmatpush.msra.mxu0 %v3864
      %3889 = vmatpush.msra.mxu0 %v3860
      %3890 = vmatpush.msra.mxu0 %v3856
      %3891 = vmatpush.msra.mxu0 %v3852
      %3892 = vmatpush.msra.mxu0 %v3848
      %3893 = vmatpush.msra.mxu0 %v3844
      %3894 = vmatpush.msra.mxu0 %v3840
      %3895 = vmatpush.msra.mxu0 %v3836
      %3896 = vmatpush.msra.mxu0 %v3832
      %3897 = vmatpush.msra.mxu0 %v3828
      %3898 = vmatpush.msra.mxu0 %v3824
      %3899 = vmatpush.msra.mxu0 %v3820
      %3900 = vmatmul.f32.gmra.mxu0 %v3736
      %v3901 = vpop.f32.mrf.mxu0
      %v3902 = vadd.f32 0.0, %v3901
      %3903 = vdwg.mxu0
      %3904 = vmatpush.msra.mxu0 %v3881
      %3905 = vmatpush.msra.mxu0 %v3877
      %3906 = vmatpush.msra.mxu0 %v3873
      %3907 = vmatpush.msra.mxu0 %v3869
      %3908 = vmatpush.msra.mxu0 %v3865
      %3909 = vmatpush.msra.mxu0 %v3861
      %3910 = vmatpush.msra.mxu0 %v3857
      %3911 = vmatpush.msra.mxu0 %v3853
      %3912 = vmatpush.msra.mxu0 %v3849
      %3913 = vmatpush.msra.mxu0 %v3845
      %3914 = vmatpush.msra.mxu0 %v3841
      %3915 = vmatpush.msra.mxu0 %v3837
      %3916 = vmatpush.msra.mxu0 %v3833
      %3917 = vmatpush.msra.mxu0 %v3829
      %3918 = vmatpush.msra.mxu0 %v3825
      %3919 = vmatpush.msra.mxu0 %v3821
      %3920 = vmatmul.f32.gmra.mxu0 %v3736
      %v3921 = vpop.f32.mrf.mxu0
      %v3922 = vadd.f32 0.0, %v3921
      %3923 = vdwg.mxu0
      %3924 = vmatpush.msra.mxu0 %v3882
      %3925 = vmatpush.msra.mxu0 %v3878
      %3926 = vmatpush.msra.mxu0 %v3874
      %3927 = vmatpush.msra.mxu0 %v3870
      %3928 = vmatpush.msra.mxu0 %v3866
      %3929 = vmatpush.msra.mxu0 %v3862
      %3930 = vmatpush.msra.mxu0 %v3858
      %3931 = vmatpush.msra.mxu0 %v3854
      %3932 = vmatpush.msra.mxu0 %v3850
      %3933 = vmatpush.msra.mxu0 %v3846
      %3934 = vmatpush.msra.mxu0 %v3842
      %3935 = vmatpush.msra.mxu0 %v3838
      %3936 = vmatpush.msra.mxu0 %v3834
      %3937 = vmatpush.msra.mxu0 %v3830
      %3938 = vmatpush.msra.mxu0 %v3826
      %3939 = vmatpush.msra.mxu0 %v3822
      %3940 = vmatmul.f32.gmra.mxu0 %v3736
      %v3941 = vpop.f32.mrf.mxu0
      %v3942 = vadd.f32 0.0, %v3941
      %3943 = vdwg.mxu0
      %3944 = vmatpush.msra.mxu0 %v3883
      %3945 = vmatpush.msra.mxu0 %v3879
      %3946 = vmatpush.msra.mxu0 %v3875
      %3947 = vmatpush.msra.mxu0 %v3871
      %3948 = vmatpush.msra.mxu0 %v3867
      %3949 = vmatpush.msra.mxu0 %v3863
      %3950 = vmatpush.msra.mxu0 %v3859
      %3951 = vmatpush.msra.mxu0 %v3855
      %3952 = vmatpush.msra.mxu0 %v3851
      %3953 = vmatpush.msra.mxu0 %v3847
      %3954 = vmatpush.msra.mxu0 %v3843
      %3955 = vmatpush.msra.mxu0 %v3839
      %3956 = vmatpush.msra.mxu0 %v3835
      %3957 = vmatpush.msra.mxu0 %v3831
      %3958 = vmatpush.msra.mxu0 %v3827
      %3959 = vmatpush.msra.mxu0 %v3823
      %3960 = vmatmul.f32.gmra.mxu0 %v3736
      %v3961 = vpop.f32.mrf.mxu0
      %v3962 = vadd.f32 0.0, %v3961
      %3963 = vdwg.mxu0
      %v3968 = vrot.slane %v3922, 7
      %v3969 = vrot.slane %v3942, 6
      %v3970 = vrot.slane %v3962, 5
      %v3971 = vsel %vm246, %v3902, %v3968
      %v3972 = vsel %vm248, %v3969, %v3970
      %v3973 = vsel %vm250, %v3971, %v3972
      %v3974 = vsel %vm252, %v3902, %v3968
      %v3975 = vsel %vm254, %v3969, %v3970
      %v3976 = vsel %vm256, %v3974, %v3975
      %v3977 = vrot.slane %v3976, 1
      %v3978 = vsel %vm248, %v3902, %v3968
      %v3979 = vsel %vm260, %v3969, %v3970
      %v3980 = vsel %vm262, %v3978, %v3979
      %v3981 = vrot.slane %v3980, 2
      %v3982 = vsel %vm254, %v3902, %v3968
      %v3983 = vsel %vm266, %v3969, %v3970
      %v3984 = vsel %vm268, %v3982, %v3983
      %v3985 = vrot.slane %v3984, 3
      %v3986 = vsel %vm260, %v3902, %v3968
      %v3987 = vsel %vm272, %v3969, %v3970
      %v3988 = vsel %vm274, %v3986, %v3987
      %v3989 = vrot.slane %v3988, 4
      %v3990 = vsel %vm266, %v3902, %v3968
      %v3991 = vsel %vm278, %v3970, %v3969
      %v3992 = vsel %vm280, %v3990, %v3991
      %v3993 = vrot.slane %v3992, 5
      %v3994 = vsel %vm272, %v3902, %v3968
      %v3995 = vsel %vm246, %v3969, %v3970
      %v3996 = vsel %vm285, %v3995, %v3994
      %v3997 = vrot.slane %v3996, 6
      %v3998 = vsel %vm278, %v3968, %v3902
      %v3999 = vsel %vm252, %v3969, %v3970
      %v4000 = vsel %vm290, %v3999, %v3998
      %v4001 = vrot.slane %v4000, 7
      %v4010 = vadd.f32 %v3805, %v3973
      %v4011 = vadd.f32 %v3807, %v3977
      %v4012 = vadd.f32 %v3809, %v3981
      %v4013 = vadd.f32 %v3811, %v3985
      %v4014 = vadd.f32 %v3813, %v3989
      %v4015 = vadd.f32 %v3815, %v3993
      %v4016 = vadd.f32 %v3817, %v3997
      %v4017 = vadd.f32 %v3819, %v4001
      %v4018 = vmul.f32 %v4010, 0.5
      %v4019 = vmul.f32 %v4011, 0.5
      %v4020 = vmul.f32 %v4012, 0.5
      %v4021 = vmul.f32 %v4013, 0.5
      %v4022 = vmul.f32 %v4014, 0.5
      %v4023 = vmul.f32 %v4015, 0.5
      %v4024 = vmul.f32 %v4016, 0.5
      %v4025 = vmul.f32 %v4017, 0.5
      %v4026 = vtanh.pop %v4018
      %v4027 = vtanh.pop %v4019
      %v4028 = vtanh.pop %v4020
      %v4029 = vtanh.pop %v4021
      %v4030 = vtanh.pop %v4022
      %v4031 = vtanh.pop %v4023
      %v4032 = vtanh.pop %v4024
      %v4033 = vtanh.pop %v4025
      %v4034 = vmul.f32 %v4026, 0.5
      %v4035 = vmul.f32 %v4027, 0.5
      %v4036 = vmul.f32 %v4028, 0.5
      %v4037 = vmul.f32 %v4029, 0.5
      %v4038 = vmul.f32 %v4030, 0.5
      %v4039 = vmul.f32 %v4031, 0.5
      %v4040 = vmul.f32 %v4032, 0.5
      %v4041 = vmul.f32 %v4033, 0.5
      %v4042 = vadd.f32 %v4034, 0.5
      %v4043 = vadd.f32 %v4035, 0.5
      %v4044 = vadd.f32 %v4036, 0.5
      %v4045 = vadd.f32 %v4037, 0.5
      %v4046 = vadd.f32 %v4038, 0.5
      %v4047 = vadd.f32 %v4039, 0.5
      %v4048 = vadd.f32 %v4040, 0.5
      %v4049 = vadd.f32 %v4041, 0.5
      %v4058 = vrot.slane %v4010, 1
      %v4059 = vrot.slane %v4011, 1
      %v4060 = vrot.slane %v4012, 1
      %v4061 = vrot.slane %v4013, 1
      %v4062 = vrot.slane %v4014, 1
      %v4063 = vrot.slane %v4015, 1
      %v4064 = vrot.slane %v4016, 1
      %v4065 = vrot.slane %v4017, 1
      %v4074 = vmul.f32 %v4058, 0.5
      %v4075 = vmul.f32 %v4059, 0.5
      %v4076 = vmul.f32 %v4060, 0.5
      %v4077 = vmul.f32 %v4061, 0.5
      %v4078 = vmul.f32 %v4062, 0.5
      %v4079 = vmul.f32 %v4063, 0.5
      %v4080 = vmul.f32 %v4064, 0.5
      %v4081 = vmul.f32 %v4065, 0.5
      %v4082 = vtanh.pop %v4074
      %v4083 = vtanh.pop %v4075
      %v4084 = vtanh.pop %v4076
      %v4085 = vtanh.pop %v4077
      %v4086 = vtanh.pop %v4078
      %v4087 = vtanh.pop %v4079
      %v4088 = vtanh.pop %v4080
      %v4089 = vtanh.pop %v4081
      %v4090 = vmul.f32 %v4082, 0.5
      %v4091 = vmul.f32 %v4083, 0.5
      %v4092 = vmul.f32 %v4084, 0.5
      %v4093 = vmul.f32 %v4085, 0.5
      %v4094 = vmul.f32 %v4086, 0.5
      %v4095 = vmul.f32 %v4087, 0.5
      %v4096 = vmul.f32 %v4088, 0.5
      %v4097 = vmul.f32 %v4089, 0.5
      %v4098 = vadd.f32 %v4090, 0.5
      %v4099 = vadd.f32 %v4091, 0.5
      %v4100 = vadd.f32 %v4092, 0.5
      %v4101 = vadd.f32 %v4093, 0.5
      %v4102 = vadd.f32 %v4094, 0.5
      %v4103 = vadd.f32 %v4095, 0.5
      %v4104 = vadd.f32 %v4096, 0.5
      %v4105 = vadd.f32 %v4097, 0.5
      %v4106 = vrot.slane %v4010, 2
      %v4107 = vrot.slane %v4011, 2
      %v4108 = vrot.slane %v4012, 2
      %v4109 = vrot.slane %v4013, 2
      %v4110 = vrot.slane %v4014, 2
      %v4111 = vrot.slane %v4015, 2
      %v4112 = vrot.slane %v4016, 2
      %v4113 = vrot.slane %v4017, 2
      %v4122 = vtanh.pop %v4106
      %v4123 = vtanh.pop %v4107
      %v4124 = vtanh.pop %v4108
      %v4125 = vtanh.pop %v4109
      %v4126 = vtanh.pop %v4110
      %v4127 = vtanh.pop %v4111
      %v4128 = vtanh.pop %v4112
      %v4129 = vtanh.pop %v4113
      %v4130 = vrot.slane %v4010, 3
      %v4131 = vrot.slane %v4011, 3
      %v4132 = vrot.slane %v4012, 3
      %v4133 = vrot.slane %v4013, 3
      %v4134 = vrot.slane %v4014, 3
      %v4135 = vrot.slane %v4015, 3
      %v4136 = vrot.slane %v4016, 3
      %v4137 = vrot.slane %v4017, 3
      %v4146 = vmul.f32 %v4130, 0.5
      %v4147 = vmul.f32 %v4131, 0.5
      %v4148 = vmul.f32 %v4132, 0.5
      %v4149 = vmul.f32 %v4133, 0.5
      %v4150 = vmul.f32 %v4134, 0.5
      %v4151 = vmul.f32 %v4135, 0.5
      %v4152 = vmul.f32 %v4136, 0.5
      %v4153 = vmul.f32 %v4137, 0.5
      %v4154 = vtanh.pop %v4146
      %v4155 = vtanh.pop %v4147
      %v4156 = vtanh.pop %v4148
      %v4157 = vtanh.pop %v4149
      %v4158 = vtanh.pop %v4150
      %v4159 = vtanh.pop %v4151
      %v4160 = vtanh.pop %v4152
      %v4161 = vtanh.pop %v4153
      %v4162 = vmul.f32 %v4154, 0.5
      %v4163 = vmul.f32 %v4155, 0.5
      %v4164 = vmul.f32 %v4156, 0.5
      %v4165 = vmul.f32 %v4157, 0.5
      %v4166 = vmul.f32 %v4158, 0.5
      %v4167 = vmul.f32 %v4159, 0.5
      %v4168 = vmul.f32 %v4160, 0.5
      %v4169 = vmul.f32 %v4161, 0.5
      %v4170 = vadd.f32 %v4162, 0.5
      %v4171 = vadd.f32 %v4163, 0.5
      %v4172 = vadd.f32 %v4164, 0.5
      %v4173 = vadd.f32 %v4165, 0.5
      %v4174 = vadd.f32 %v4166, 0.5
      %v4175 = vadd.f32 %v4167, 0.5
      %v4176 = vadd.f32 %v4168, 0.5
      %v4177 = vadd.f32 %v4169, 0.5
      %v4179 = vrot.slane %v3762, 1
      %v4180 = vrot.slane %v3762, 2
      %v4181 = vrot.slane %v3762, 3
      %v4182 = vrot.slane %v3762, 4
      %v4183 = vrot.slane %v3762, 5
      %v4184 = vrot.slane %v3762, 6
      %v4185 = vrot.slane %v3762, 7
      %v4193 = vmul.f32 %v4098, %v3762
      %v4194 = vmul.f32 %v4099, %v4179
      %v4195 = vmul.f32 %v4100, %v4180
      %v4196 = vmul.f32 %v4101, %v4181
      %v4197 = vmul.f32 %v4102, %v4182
      %v4198 = vmul.f32 %v4103, %v4183
      %v4199 = vmul.f32 %v4104, %v4184
      %v4200 = vmul.f32 %v4105, %v4185
      %v4201 = vmul.f32 %v4042, %v4122
      %v4202 = vmul.f32 %v4043, %v4123
      %v4203 = vmul.f32 %v4044, %v4124
      %v4204 = vmul.f32 %v4045, %v4125
      %v4205 = vmul.f32 %v4046, %v4126
      %v4206 = vmul.f32 %v4047, %v4127
      %v4207 = vmul.f32 %v4048, %v4128
      %v4208 = vmul.f32 %v4049, %v4129
      %v4209 = vadd.f32 %v4193, %v4201
      %v4210 = vadd.f32 %v4194, %v4202
      %v4211 = vadd.f32 %v4195, %v4203
      %v4212 = vadd.f32 %v4196, %v4204
      %v4213 = vadd.f32 %v4197, %v4205
      %v4214 = vadd.f32 %v4198, %v4206
      %v4215 = vadd.f32 %v4199, %v4207
      %v4216 = vadd.f32 %v4200, %v4208
      %v4217 = vtanh.pop %v4209
      %v4218 = vtanh.pop %v4210
      %v4219 = vtanh.pop %v4211
      %v4220 = vtanh.pop %v4212
      %v4221 = vtanh.pop %v4213
      %v4222 = vtanh.pop %v4214
      %v4223 = vtanh.pop %v4215
      %v4224 = vtanh.pop %v4216
      %v4225 = vmul.f32 %v4170, %v4217
      %v4226 = vmul.f32 %v4171, %v4218
      %v4227 = vmul.f32 %v4172, %v4219
      %v4228 = vmul.f32 %v4173, %v4220
      %v4229 = vmul.f32 %v4174, %v4221
      %v4230 = vmul.f32 %v4175, %v4222
      %v4231 = vmul.f32 %v4176, %v4223
      %v4232 = vmul.f32 %v4177, %v4224
      %s4233 = sadd.s32 %s53, 7
      %v4234 = vstv %s4233
      %vm4235 = vcmp.gt.s32.totalorder %v77, %v4234
      %v4236 = vsel %vm4235, 1, 0
      %4237 = vset.pattern.permute.xlu0 0
      %4238 = vperm.xlu0 %4237, %v4236
      %v4239 = vpop.permute.xlu0 %4238
      %vm4240 = vcmp.eq.s32.totalorder %v4239, 1
      %4249 = vst [vmem:[#allocation1] ss:$9 sm:$0xff] %v4225
      %s4250 = scalar_lea.vmem [#allocation1], 1
      %4251 = vst [vmem:[%s4250] ss:$9 sm:$0xff] %v4226
      %s4252 = scalar_lea.vmem [#allocation1], 2
      %4253 = vst [vmem:[%s4252] ss:$9 sm:$0xff] %v4227
      %s4254 = scalar_lea.vmem [#allocation1], 3
      %4255 = vst [vmem:[%s4254] ss:$9 sm:$0xff] %v4228
      %s4256 = scalar_lea.vmem [#allocation1], 4
      %4257 = vst [vmem:[%s4256] ss:$9 sm:$0xff] %v4229
      %s4258 = scalar_lea.vmem [#allocation1], 5
      %4259 = vst [vmem:[%s4258] ss:$9 sm:$0xff] %v4230
      %s4260 = scalar_lea.vmem [#allocation1], 6
      %4261 = vst [vmem:[%s4260] ss:$9 sm:$0xff] %v4231
      %s4262 = scalar_lea.vmem [#allocation1], 7
      %4263 = vst [vmem:[%s4262] ss:$9 sm:$0xff] %v4232
      %v4264 = vld [vmem:[#allocation1] sm:$0xff]
      %v4266 = vsel %vm4240, %v4264, %v3736
      %4275 = vst [vmem:[#allocation1] ss:$9 sm:$0xff] %v4209
      %s4276 = scalar_lea.vmem [#allocation1], 1
      %4277 = vst [vmem:[%s4276] ss:$9 sm:$0xff] %v4210
      %s4278 = scalar_lea.vmem [#allocation1], 2
      %4279 = vst [vmem:[%s4278] ss:$9 sm:$0xff] %v4211
      %s4280 = scalar_lea.vmem [#allocation1], 3
      %4281 = vst [vmem:[%s4280] ss:$9 sm:$0xff] %v4212
      %s4282 = scalar_lea.vmem [#allocation1], 4
      %4283 = vst [vmem:[%s4282] ss:$9 sm:$0xff] %v4213
      %s4284 = scalar_lea.vmem [#allocation1], 5
      %4285 = vst [vmem:[%s4284] ss:$9 sm:$0xff] %v4214
      %s4286 = scalar_lea.vmem [#allocation1], 6
      %4287 = vst [vmem:[%s4286] ss:$9 sm:$0xff] %v4215
      %s4288 = scalar_lea.vmem [#allocation1], 7
      %4289 = vst [vmem:[%s4288] ss:$9 sm:$0xff] %v4216
      %v4290 = vld [vmem:[#allocation1] sm:$0xff]
      %v4292 = vsel %vm4240, %v4290, %v3762
      %4293 = vst [vmem:[#allocation1] ss:$9 sm:$0xff] %v4225
      %s4294 = scalar_lea.vmem [#allocation1], 1
      %4295 = vst [vmem:[%s4294] ss:$9 sm:$0xff] %v4226
      %s4296 = scalar_lea.vmem [#allocation1], 2
      %4297 = vst [vmem:[%s4296] ss:$9 sm:$0xff] %v4227
      %s4298 = scalar_lea.vmem [#allocation1], 3
      %4299 = vst [vmem:[%s4298] ss:$9 sm:$0xff] %v4228
      %s4300 = scalar_lea.vmem [#allocation1], 4
      %4301 = vst [vmem:[%s4300] ss:$9 sm:$0xff] %v4229
      %s4302 = scalar_lea.vmem [#allocation1], 5
      %4303 = vst [vmem:[%s4302] ss:$9 sm:$0xff] %v4230
      %s4304 = scalar_lea.vmem [#allocation1], 6
      %4305 = vst [vmem:[%s4304] ss:$9 sm:$0xff] %v4231
      %s4306 = scalar_lea.vmem [#allocation1], 7
      %4307 = vst [vmem:[%s4306] ss:$9 sm:$0xff] %v4232
      %v4308 = vld [vmem:[#allocation1] sm:$0xff]
      %v4310 = vsel %vm4240, %v4308, 0.0
      %v4312 = vrot.slane %v4310, 1
      %v4313 = vrot.slane %v4310, 2
      %v4314 = vrot.slane %v4310, 3
      %v4315 = vrot.slane %v4310, 4
      %v4316 = vrot.slane %v4310, 5
      %v4317 = vrot.slane %v4310, 6
      %v4318 = vrot.slane %v4310, 7
      %4326 = vst [vmem:[#allocation9 + $0x7] sm:$0x1] %v4310
      %4327 = vst [vmem:[#allocation9 + $0xf] sm:$0x1] %v4312
      %4328 = vst [vmem:[#allocation9 + $0x17] sm:$0x1] %v4313
      %4329 = vst [vmem:[#allocation9 + $0x1f] sm:$0x1] %v4314
      %4330 = vst [vmem:[#allocation9 + $0x27] sm:$0x1] %v4315
      %4331 = vst [vmem:[#allocation9 + $0x2f] sm:$0x1] %v4316
      %4332 = vst [vmem:[#allocation9 + $0x37] sm:$0x1] %v4317
      %4333 = vst [vmem:[#allocation9 + $0x3f] sm:$0x1] %v4318
      %4334 = vst [vmem:[#allocation10] sm:$0xff] %v4266
      %4335 = vst [vmem:[#allocation12] sm:$0xff] %v4292
    $region33: #{tpu_custom_call.1} parent=1 // pred_fallthru
      _
    // Predicated region
    $region34: #{tpu_custom_call.1} parent=1 // pred_check
      _
    $region35: #{tpu_custom_call.1} parent=1 // pred_check_branch
      %4337 = sbr.rel (0) target = $region37
    $region36: #{tpu_custom_call.1} parent=1 // pred_region
      %4339 = vsyncadd [#allocation6], 0
      %s4340 = sshll.u32 [#allocation9], 4
      %s4341 = int_to_ptr.vmem [resolvable:$true] %s4340
      %s4342 = sshll.u32 %s4, 4
      %s4343 = int_to_ptr.hbm [resolvable:$true] %s4342
      %4348 = dma.vmem_to_hbm [thread:$0]  %s4341, 1024, %s4343, [#allocation6], 128, 128, 8
    $region37: #{tpu_custom_call.1} parent=1 // pred_fallthru
      _
    // Predicated region
    $region38: #{tpu_custom_call.1} parent=1 // pred_check
      _
    $region39: #{tpu_custom_call.1} parent=1 // pred_check_branch
      %4350 = sbr.rel (0) target = $region41
    $region40: #{tpu_custom_call.1} parent=1 // pred_region
      %4352 = vsyncadd [#allocation11], 0
      %s4354 = sshll.u32 [#allocation10], 4
      %s4355 = int_to_ptr.vmem [resolvable:$true] %s4354
      %s4356 = sshll.u32 %s5, 4
      %s4357 = int_to_ptr.hbm [resolvable:$true] %s4356
      %4359 = dma.vmem_to_hbm [thread:$0]  %s4355, 128, %s4357, [#allocation11]
    $region41: #{tpu_custom_call.1} parent=1 // pred_fallthru
      _
    // Predicated region
    $region42: #{tpu_custom_call.1} parent=1 // pred_check
      _
    $region43: #{tpu_custom_call.1} parent=1 // pred_check_branch
      %4361 = sbr.rel (0) target = $region45
    $region44: #{tpu_custom_call.1} parent=1 // pred_region
      %4363 = vsyncadd [#allocation11], 0
      %s4365 = sshll.u32 [#allocation12], 4
      %s4366 = int_to_ptr.vmem [resolvable:$true] %s4365
      %s4367 = sshll.u32 %s6, 4
      %s4368 = int_to_ptr.hbm [resolvable:$true] %s4367
      %4370 = dma.vmem_to_hbm [thread:$0]  %s4366, 128, %s4368, [#allocation11]
    $region45: #{tpu_custom_call.1} parent=1 // pred_fallthru
      _
    // Predicated region
    $region46: #{tpu_custom_call.1} parent=1 // pred_check
      _
    $region47: #{tpu_custom_call.1} parent=1 // pred_check_branch
      %4372 = sbr.rel (0) target = $region49
    $region48: #{tpu_custom_call.1} parent=1 // pred_region
      %4374 = dma.done [#allocation6], 1024
    $region49: #{tpu_custom_call.1} parent=1 // pred_fallthru
      _
    // Predicated region
    $region50: #{tpu_custom_call.1} parent=1 // pred_check
      _
    $region51: #{tpu_custom_call.1} parent=1 // pred_check_branch
      %4376 = sbr.rel (0) target = $region53
    $region52: #{tpu_custom_call.1} parent=1 // pred_region
      %4378 = dma.done [#allocation11], 128
    $region53: #{tpu_custom_call.1} parent=1 // pred_fallthru
      _
    // Predicated region
    $region54: #{tpu_custom_call.1} parent=1 // pred_check
      _
    $region55: #{tpu_custom_call.1} parent=1 // pred_check_branch
      %4380 = sbr.rel (0) target = $region57
    $region56: #{tpu_custom_call.1} parent=1 // pred_region
      %4382 = dma.done [#allocation11], 128
    $region57: #{tpu_custom_call.1} parent=1 // pred_fallthru
      _
    %4383 = vsyncpa [#allocation5], 1
    %4384 = vsyncpa [#allocation8], 1
    %4385 = vsyncpa [#allocation6], 1
    %4386 = vsyncpa [#allocation11], 1

</llo_original>
